<compile_context>
chip_gen: v7x
topology: tpu7x:2x2x1
jax: 0.10.0
libtpu: 0.0.40
codegen_flags: <defaults>
</compile_context>

<pallas_src>
import functools

import jax
import jax.numpy as jnp
from jax.experimental import pallas as pl
from jax.experimental.pallas import tpu as pltpu


# Packed feature-row layout (rays on the lane axis).
_PRED = 0      # 0:3   predicted color
_GT = 3        # 3:6   ground-truth color
_OMASK = 6     # 6     object mask
_NMASK = 7     # 7     network_object_mask
_WSUM = 8      # 8     weights_sum
_NORMAL = 9    # 9:12  surface normal
_PNORM = 12    # 12:15 pretrain normal
_RINV = 15     # 15:24 inv(R) row-major
_NROWS = 24


def _inv3x3(m):
    """Closed-form inverse of a batch of 3x3 matrices (adjugate / det)."""
    a, b, c = m[:, 0, 0], m[:, 0, 1], m[:, 0, 2]
    d, e, f = m[:, 1, 0], m[:, 1, 1], m[:, 1, 2]
    g, h, i = m[:, 2, 0], m[:, 2, 1], m[:, 2, 2]
    A = e * i - f * h
    B = f * g - d * i
    C = d * h - e * g
    det = a * A + b * B + c * C
    inv = jnp.stack([
        jnp.stack([A, c * h - b * i, b * f - c * e], axis=-1),
        jnp.stack([B, a * i - c * g, c * d - a * f], axis=-1),
        jnp.stack([C, b * g - a * h, a * e - b * d], axis=-1),
    ], axis=-2)
    return inv / det[:, None, None]


def _neus_loss_kernel(
    scal_ref,            # SMEM (3,): [gradient_error, hessian_error, colmap_sdf_error]
    x_ref,               # VMEM (24, TL): packed per-ray features, rays on lanes
    out_ref,             # SMEM (8,) output: losses
    acc_ref,             # VMEM (8, TL): per-lane partial sums
    *,
    n_true, tile_l, loss_type, use_pretrain_normal,
    mask_weight, eikonal_weight, normal_weight,
    hessian_weight, colmap_sdf_weight,
):
    i = pl.program_id(0)

    @pl.when(i == 0)
    def _init():
        acc_ref[...] = jnp.zeros_like(acc_ref)

    x = x_ref[...]                                    # one dense (24, TL) load
    pred = x[_PRED:_PRED + 3, :]
    gt = x[_GT:_GT + 3, :]
    omask = x[_OMASK:_OMASK + 1, :]
    nmask_raw = x[_NMASK:_NMASK + 1, :]
    wsum = x[_WSUM:_WSUM + 1, :]

    # Tail mask generated in-kernel: lanes >= n_true are padding.
    lane = jax.lax.broadcasted_iota(jnp.int32, (1, tile_l), 1)
    valid = ((i * tile_l + lane) < n_true).astype(jnp.float32)   # (1, TL)

    nmask = nmask_raw * valid                         # network_object_mask (0/1)
    obj = (omask > 0.0).astype(jnp.float32)
    mflag = obj * valid                               # mask = object_mask[:,0] > 0
    not_m = (1.0 - obj) * valid                       # ~mask (padding excluded)

    if loss_type == "L1":
        elem1 = jnp.abs(pred - gt)
        elem2 = jnp.abs(pred)
    else:                                             # "L2"
        d0 = pred - gt
        elem1 = d0 * d0
        elem2 = pred * pred

    # color_error1 = mean(elem1 over rows with network mask) -> sum / (3*count)
    acc_ref[0:1, :] += jnp.sum(elem1, axis=0, keepdims=True) * nmask
    acc_ref[1:2, :] += nmask
    # color_error2 = mean(elem2 over rows with ~mask) * 0.5
    acc_ref[2:3, :] += jnp.sum(elem2, axis=0, keepdims=True) * not_m
    acc_ref[3:4, :] += not_m

    # binary cross entropy between clipped weights_sum and object mask
    p = jnp.clip(wsum, 0.001, 1.0 - 0.0001)
    bce = -(omask * jnp.log(p) + (1.0 - omask) * jnp.log(1.0 - p))
    acc_ref[4:5, :] += bce * valid

    if use_pretrain_normal:
        normal = x[_NORMAL:_NORMAL + 3, :]
        pnorm = x[_PNORM:_PNORM + 3, :]
        # inv(R) @ normal: one multiply-add chain per output row (pure VPU).
        rows = []
        for r in range(3):
            acc = x[_RINV + 3 * r + 0:_RINV + 3 * r + 1, :] * normal[0:1, :]
            acc = acc + x[_RINV + 3 * r + 1:_RINV + 3 * r + 2, :] * normal[1:2, :]
            acc = acc + x[_RINV + 3 * r + 2:_RINV + 3 * r + 3, :] * normal[2:3, :]
            rows.append(acc)
        nc = jnp.concatenate(rows, axis=0)            # (3, TL)
        nc = jnp.clip((nc + 1.0) * 0.5, 0.0, 1.0)     # clip_img((x+1)/2)

        # gt normal normalized twice (forward + get_normal_loss); the eps guard
        # keeps zero-padded lanes finite (they are masked out by `mn` anyway).
        gt_n = pnorm / jnp.maximum(
            jnp.sqrt(jnp.sum(pnorm * pnorm, axis=0, keepdims=True)), 1e-12)
        gt_n = gt_n / jnp.maximum(
            jnp.sqrt(jnp.sum(gt_n * gt_n, axis=0, keepdims=True)), 1e-12)
        nc_n = nc / jnp.maximum(
            jnp.sqrt(jnp.sum(nc * nc, axis=0, keepdims=True)), 1e-12)

        mn = mflag * nmask                            # mask & network_mask
        d = nc_n - gt_n
        ad = jnp.abs(d)
        sl1 = jnp.where(ad < 1.0, 0.5 * d * d, ad - 0.5)   # smooth_l1, beta=1
        acc_ref[5:6, :] += jnp.sum(sl1, axis=0, keepdims=True) * mn
        acc_ref[6:7, :] += (1.0 - jnp.sum(nc_n * gt_n, axis=0, keepdims=True)) * mn
        acc_ref[7:8, :] += mn

    @pl.when(i == pl.num_programs(0) - 1)
    def _finalize():
        s0 = jnp.sum(acc_ref[0:1, :])
        s1 = jnp.sum(acc_ref[1:2, :])
        s2 = jnp.sum(acc_ref[2:3, :])
        s3 = jnp.sum(acc_ref[3:4, :])
        s4 = jnp.sum(acc_ref[4:5, :])
        color = s0 / (3.0 * s1) + s2 / (3.0 * s3) * 0.5
        eik = scal_ref[0] * eikonal_weight
        hess = scal_ref[1] * hessian_weight
        colmap = scal_ref[2] * colmap_sdf_weight
        mask_l = s4 / jnp.float32(n_true) * mask_weight
        if use_pretrain_normal:
            s5 = jnp.sum(acc_ref[5:6, :])
            s6 = jnp.sum(acc_ref[6:7, :])
            s7 = jnp.sum(acc_ref[7:8, :])
            # smooth_l1 * 3 = sum/(3*cnt)*3 = sum/cnt ; cos mean = sum/cnt
            nl = ((s5 / s7) + (s6 / s7)) * 0.05 * normal_weight
        else:
            nl = jnp.float32(0.0)
        total = color + eik + mask_l + nl + hess + colmap
        out_ref[0] = total
        out_ref[1] = color
        out_ref[2] = eik
        out_ref[3] = hess
        out_ref[4] = colmap
        out_ref[5] = mask_l
        out_ref[6] = nl
        out_ref[7] = jnp.float32(0.0)


def neus_loss(model_output, ground_truth, *, mask_weight, eikonal_weight,
              normal_weight, loss_type="L1", use_pretrain_normal=False,
              tile_l=2048):
    if loss_type not in ("L1", "L2"):
        raise Exception("Unknown loss_type!")

    pred = jnp.asarray(model_output["color"], jnp.float32)
    n = pred.shape[0]

    def rows(x, c):
        return jnp.reshape(jnp.asarray(x, jnp.float32), (n, c)).T   # (c, N)

    pred_r = rows(pred, 3)
    gt_r = rows(ground_truth["color"], 3)
    omask_r = rows(ground_truth["mask"], 1)
    nmask_r = rows(model_output["network_object_mask"], 1)
    wsum_r = rows(model_output["weights_sum"], 1)

    if use_pretrain_normal:
        normal_r = rows(model_output["surface_normal"], 3)
        pnorm_r = rows(ground_truth["pretrain_normal"], 3)
        rot = jnp.asarray(ground_truth["pose"], jnp.float32)[:, 0:3, 0:3]
        rinv_r = _inv3x3(rot).reshape(n, 9).T          # closed-form, no batched LU
    else:
        normal_r = jnp.zeros((3, n), jnp.float32)
        pnorm_r = jnp.zeros((3, n), jnp.float32)
        rinv_r = jnp.zeros((9, n), jnp.float32)

    # One packed (24, N) array -> one pad -> one DMA stream into the kernel.
    packed = jnp.concatenate(
        [pred_r, gt_r, omask_r, nmask_r, wsum_r, normal_r, pnorm_r, rinv_r],
        axis=0)
    assert packed.shape[0] == _NROWS

    n_pad128 = ((n + 127) // 128) * 128
    tl = min(tile_l, n_pad128)                        # lane tile, multiple of 128
    n_pad = ((n + tl - 1) // tl) * tl
    packed = jnp.pad(packed, ((0, 0), (0, n_pad - n)))

    scalars = jnp.stack([
        jnp.asarray(model_output["gradient_error"], jnp.float32).reshape(()),
        jnp.asarray(model_output["hessian_error"], jnp.float32).reshape(()),
        jnp.asarray(model_output["colmap_sdf_error"], jnp.float32).reshape(()),
    ])

    kernel = functools.partial(
        _neus_loss_kernel,
        n_true=n, tile_l=tl, loss_type=loss_type,
        use_pretrain_normal=use_pretrain_normal,
        mask_weight=mask_weight, eikonal_weight=eikonal_weight,
        normal_weight=normal_weight, hessian_weight=0.0005,
        colmap_sdf_weight=1.0)

    out = pl.pallas_call(
        kernel,
        out_shape=jax.ShapeDtypeStruct((8,), jnp.float32),
        grid_spec=pltpu.PrefetchScalarGridSpec(
            num_scalar_prefetch=0,
            grid=(n_pad // tl,),
            in_specs=[
                pl.BlockSpec(memory_space=pltpu.MemorySpace.SMEM),   # scalars
                pl.BlockSpec((_NROWS, tl), lambda i: (0, i)),        # packed rays
            ],
            out_specs=pl.BlockSpec(memory_space=pltpu.MemorySpace.SMEM),
            scratch_shapes=[pltpu.VMEM((8, tl), jnp.float32)],
        ),
        compiler_params=pltpu.CompilerParams(dimension_semantics=("arbitrary",)),
    )(scalars, packed)

    return {
        "neus_total_loss": out[0],
        "color_loss": out[1],
        "eikonal_loss": out[2],
        "hessian_loss": out[3],
        "colmap_sdf_loss": out[4],
        "mask_loss": out[5],
        "normal_loss": out[6],
    }


def neus_loss_ref(model_output, ground_truth, *, mask_weight, eikonal_weight,
                  normal_weight, loss_type, use_pretrain_normal):
    """Pure-JAX (eager) reference mirroring the PyTorch forward exactly."""
    omask = ground_truth["mask"]
    nmask = model_output["network_object_mask"].astype(bool)
    mask = omask[:, 0] > 0
    wsum = jnp.clip(model_output["weights_sum"], 0.001, 1.0 - 0.0001)
    normal = model_output["surface_normal"]
    pred = model_output["color"]
    gtc = ground_truth["color"]

    def img_loss(a, b):
        if loss_type == "L1":
            return jnp.mean(jnp.abs(a - b))
        return jnp.mean((a - b) ** 2)

    ce1 = img_loss(pred[nmask], gtc[nmask])
    ce2 = img_loss(pred[~mask], jnp.zeros_like(pred[~mask])) * 0.5
    color_error = ce1 + ce2
    eik = model_output["gradient_error"] * eikonal_weight
    hess = model_output["hessian_error"] * 0.0005
    colmap = model_output["colmap_sdf_error"] * 1.0
    bce = -(omask * jnp.log(wsum) + (1.0 - omask) * jnp.log(1.0 - wsum))
    mask_loss = jnp.mean(bce) * mask_weight

    nl = jnp.float32(0.0)
    if use_pretrain_normal:
        rinv = jnp.linalg.inv(ground_truth["pose"][:, 0:3, 0:3])
        nc = jnp.matmul(rinv, normal[:, :, None])[..., 0]
        nc = jnp.clip((nc + 1.0) / 2.0, 0.0, 1.0)
        gtn = ground_truth["pretrain_normal"]
        gtn = gtn / jnp.linalg.norm(gtn, axis=-1, keepdims=True)
        sel = mask & nmask
        gtn = gtn[sel]
        nc = nc[sel]

        def normz(x):
            return x / jnp.maximum(jnp.linalg.norm(x, axis=-1, keepdims=True), 1e-12)

        gtn = normz(gtn)
        nc = normz(nc)
        d = nc - gtn
        ad = jnp.abs(d)
        sl1 = jnp.mean(jnp.where(ad < 1.0, 0.5 * d * d, ad - 0.5)) * 3.0
        cos = jnp.mean(1.0 - jnp.sum(nc * gtn, axis=-1))
        nl = (sl1 + cos) * 0.05 * normal_weight

    total = color_error + eik + mask_loss + nl + hess + colmap
    return {
        "neus_total_loss": total, "color_loss": color_error, "eikonal_loss": eik,
        "hessian_loss": hess, "colmap_sdf_loss": colmap, "mask_loss": mask_loss,
        "normal_loss": nl,
    }


if __name__ == "__main__":
    key = jax.random.PRNGKey(0)
    N = 2500                        # rays: exercises 2 grid steps + tail masking
    ks = jax.random.split(key, 10)

    pred_color = jax.random.uniform(ks[0], (N, 3), jnp.float32)
    gt_color = jax.random.uniform(ks[1], (N, 3), jnp.float32)
    object_mask = (jax.random.uniform(ks[2], (N, 1)) > 0.4).astype(jnp.float32)
    network_mask = jax.random.uniform(ks[3], (N,)) > 0.3
    weights_sum = jax.random.uniform(ks[4], (N, 1), jnp.float32)
    surface_normal = jax.random.normal(ks[5], (N, 3), jnp.float32)
    pretrain_normal = jax.random.normal(ks[6], (N, 3), jnp.float32)
    q, _ = jnp.linalg.qr(jax.random.normal(ks[7], (N, 3, 3), jnp.float32))
    pose = jnp.tile(jnp.eye(4, dtype=jnp.float32)[None], (N, 1, 1))
    pose = pose.at[:, :3, :3].set(q)

    model_output = {
        "network_object_mask": network_mask,
        "weights_sum": weights_sum,
        "surface_normal": surface_normal,
        "color": pred_color,
        "gradient_error": jnp.float32(0.123),
        "hessian_error": jnp.float32(0.456),
        "colmap_sdf_error": jnp.float32(0.789),
    }
    ground_truth = {
        "mask": object_mask,
        "color": gt_color,
        "pose": pose,
        "pretrain_normal": pretrain_normal,
    }

    hparams = dict(mask_weight=0.1, eikonal_weight=0.1, normal_weight=1.0,
                   loss_type="L1", use_pretrain_normal=True)

    out = neus_loss(model_output, ground_truth, **hparams)
    out = jax.tree_util.tree_map(jax.block_until_ready, out)

    ref = neus_loss_ref(model_output, ground_truth, **hparams)
    for k in out:
        a = float(out[k])
        b = float(ref[k])
        assert abs(a - b) <= 1e-4 + 1e-3 * abs(b), (k, a, b)

    print("KERNEL_OK")
</pallas_src>

<mosaic_0001>
module attributes {stable_mosaic.version = 11 : i64} {
  func.func @_neus_loss_kernel(%arg0: i32, %arg1: memref<3xf32, #tpu.memory_space<smem>>, %arg2: memref<24x2048xf32, #tpu.memory_space<vmem>>, %arg3: memref<8xf32, #tpu.memory_space<smem>>, %arg4: memref<8x2048xf32, #tpu.memory_space<vmem>>) attributes {dimension_semantics = [#tpu.dimension_semantics<arbitrary>], iteration_bounds = array<i64: 2>, scalar_prefetch = 0 : i64, scratch_operands = 1 : i64, tpu.core_type = #tpu.core_type<tc>, window_params = [{transform_indices = @transform_0, window_bounds = array<i64: 3>}, {transform_indices = @transform_1, window_bounds = array<i64: 24, 2048>}, {transform_indices = @transform_2, window_bounds = array<i64: 8>}]} {
    %c0_i32 = arith.constant 0 : i32
    %0 = arith.cmpi eq, %arg0, %c0_i32 : i32
    %1 = arith.extui %0 : i1 to i32
    %c0_i32_0 = arith.constant 0 : i32
    %2 = arith.cmpi ne, %1, %c0_i32_0 : i32
    scf.if %2 {
      %cst_52 = arith.constant 0.000000e+00 : f32
      %166 = vector.broadcast %cst_52 : f32 to vector<8x2048xf32>
      %c0_53 = arith.constant 0 : index
      %c0_54 = arith.constant 0 : index
      %167 = vector.load %arg4[%c0_53, %c0_54] : memref<8x2048xf32, #tpu.memory_space<vmem>>, vector<8x2048xf32>
      tpu.vector_store %arg4[%c0_53, %c0_54], %166 {strides = array<i32>} : memref<8x2048xf32, #tpu.memory_space<vmem>>, vector<8x2048xf32>,
    } else {
    }
    %c0 = arith.constant 0 : index
    %c0_1 = arith.constant 0 : index
    %3 = vector.load %arg2[%c0, %c0_1] : memref<24x2048xf32, #tpu.memory_space<vmem>>, vector<24x2048xf32>
    %4 = vector.extract_strided_slice %3 {offsets = [0, 0], sizes = [3, 2048], strides = [1, 1]} : vector<24x2048xf32> to vector<3x2048xf32>
    %5 = vector.extract_strided_slice %3 {offsets = [3, 0], sizes = [3, 2048], strides = [1, 1]} : vector<24x2048xf32> to vector<3x2048xf32>
    %6 = vector.extract_strided_slice %3 {offsets = [6, 0], sizes = [1, 2048], strides = [1, 1]} : vector<24x2048xf32> to vector<1x2048xf32>
    %7 = vector.extract_strided_slice %3 {offsets = [7, 0], sizes = [1, 2048], strides = [1, 1]} : vector<24x2048xf32> to vector<1x2048xf32>
    %8 = vector.extract_strided_slice %3 {offsets = [8, 0], sizes = [1, 2048], strides = [1, 1]} : vector<24x2048xf32> to vector<1x2048xf32>
    %9 = tpu.iota {dimensions = array<i32: 1>} : vector<1x2048xi32>
    %c2048_i32 = arith.constant 2048 : i32
    %10 = arith.muli %arg0, %c2048_i32 : i32
    %11 = vector.broadcast %10 : i32 to vector<1x2048xi32>
    %12 = arith.addi %11, %9 : vector<1x2048xi32>
    %c2500_i32 = arith.constant 2500 : i32
    %13 = vector.broadcast %c2500_i32 : i32 to vector<1x2048xi32>
    %14 = arith.cmpi slt, %12, %13 : vector<1x2048xi32>
    %15 = arith.extui %14 : vector<1x2048xi1> to vector<1x2048xi32>
    %16 = arith.sitofp %15 : vector<1x2048xi32> to vector<1x2048xf32>
    %17 = arith.mulf %7, %16 : vector<1x2048xf32>
    %cst = arith.constant 0.000000e+00 : f32
    %18 = vector.broadcast %cst : f32 to vector<1x2048xf32>
    %19 = arith.cmpf ogt, %6, %18 : vector<1x2048xf32>
    %20 = arith.extui %19 : vector<1x2048xi1> to vector<1x2048xi32>
    %21 = arith.sitofp %20 : vector<1x2048xi32> to vector<1x2048xf32>
    %22 = arith.mulf %21, %16 : vector<1x2048xf32>
    %cst_2 = arith.constant 1.000000e+00 : f32
    %23 = vector.broadcast %cst_2 : f32 to vector<1x2048xf32>
    %24 = arith.subf %23, %21 : vector<1x2048xf32>
    %25 = arith.mulf %24, %16 : vector<1x2048xf32>
    %26 = arith.subf %4, %5 : vector<3x2048xf32>
    %27 = math.absf %26 : vector<3x2048xf32>
    %28 = math.absf %4 : vector<3x2048xf32>
    %c0_3 = arith.constant 0 : index
    %c0_4 = arith.constant 0 : index
    %29 = vector.load %arg4[%c0_3, %c0_4] : memref<8x2048xf32, #tpu.memory_space<vmem>>, vector<1x2048xf32>
    %cst_5 = arith.constant dense<0.000000e+00> : vector<2048xf32>
    %30 = vector.multi_reduction <add>, %27, %cst_5 [0] : vector<3x2048xf32> to vector<2048xf32>
    %31 = vector.shape_cast %30 : vector<2048xf32> to vector<1x2048xf32>
    %32 = arith.mulf %31, %17 : vector<1x2048xf32>
    %33 = arith.addf %29, %32 : vector<1x2048xf32>
    %c0_6 = arith.constant 0 : index
    %c0_7 = arith.constant 0 : index
    %34 = vector.load %arg4[%c0_6, %c0_7] : memref<8x2048xf32, #tpu.memory_space<vmem>>, vector<1x2048xf32>
    tpu.vector_store %arg4[%c0_6, %c0_7], %33 {strides = array<i32>} : memref<8x2048xf32, #tpu.memory_space<vmem>>, vector<1x2048xf32>,
    %c1 = arith.constant 1 : index
    %c0_8 = arith.constant 0 : index
    %35 = vector.load %arg4[%c1, %c0_8] : memref<8x2048xf32, #tpu.memory_space<vmem>>, vector<1x2048xf32>
    %36 = arith.addf %35, %17 : vector<1x2048xf32>
    %c1_9 = arith.constant 1 : index
    %c0_10 = arith.constant 0 : index
    %37 = vector.load %arg4[%c1_9, %c0_10] : memref<8x2048xf32, #tpu.memory_space<vmem>>, vector<1x2048xf32>
    tpu.vector_store %arg4[%c1_9, %c0_10], %36 {strides = array<i32>} : memref<8x2048xf32, #tpu.memory_space<vmem>>, vector<1x2048xf32>,
    %c2 = arith.constant 2 : index
    %c0_11 = arith.constant 0 : index
    %38 = vector.load %arg4[%c2, %c0_11] : memref<8x2048xf32, #tpu.memory_space<vmem>>, vector<1x2048xf32>
    %cst_12 = arith.constant dense<0.000000e+00> : vector<2048xf32>
    %39 = vector.multi_reduction <add>, %28, %cst_12 [0] : vector<3x2048xf32> to vector<2048xf32>
    %40 = vector.shape_cast %39 : vector<2048xf32> to vector<1x2048xf32>
    %41 = arith.mulf %40, %25 : vector<1x2048xf32>
    %42 = arith.addf %38, %41 : vector<1x2048xf32>
    %c2_13 = arith.constant 2 : index
    %c0_14 = arith.constant 0 : index
    %43 = vector.load %arg4[%c2_13, %c0_14] : memref<8x2048xf32, #tpu.memory_space<vmem>>, vector<1x2048xf32>
    tpu.vector_store %arg4[%c2_13, %c0_14], %42 {strides = array<i32>} : memref<8x2048xf32, #tpu.memory_space<vmem>>, vector<1x2048xf32>,
    %c3 = arith.constant 3 : index
    %c0_15 = arith.constant 0 : index
    %44 = vector.load %arg4[%c3, %c0_15] : memref<8x2048xf32, #tpu.memory_space<vmem>>, vector<1x2048xf32>
    %45 = arith.addf %44, %25 : vector<1x2048xf32>
    %c3_16 = arith.constant 3 : index
    %c0_17 = arith.constant 0 : index
    %46 = vector.load %arg4[%c3_16, %c0_17] : memref<8x2048xf32, #tpu.memory_space<vmem>>, vector<1x2048xf32>
    tpu.vector_store %arg4[%c3_16, %c0_17], %45 {strides = array<i32>} : memref<8x2048xf32, #tpu.memory_space<vmem>>, vector<1x2048xf32>,
    %cst_18 = arith.constant 1.000000e-03 : f32
    %cst_19 = arith.constant 0.999899983 : f32
    %47 = vector.broadcast %cst_18 : f32 to vector<1x2048xf32>
    %48 = arith.maximumf %47, %8 : vector<1x2048xf32>
    %49 = vector.broadcast %cst_19 : f32 to vector<1x2048xf32>
    %50 = arith.minimumf %49, %48 : vector<1x2048xf32>
    %51 = math.log %50 : vector<1x2048xf32>
    %52 = arith.mulf %6, %51 : vector<1x2048xf32>
    %cst_20 = arith.constant 1.000000e+00 : f32
    %53 = vector.broadcast %cst_20 : f32 to vector<1x2048xf32>
    %54 = arith.subf %53, %6 : vector<1x2048xf32>
    %cst_21 = arith.constant 1.000000e+00 : f32
    %55 = vector.broadcast %cst_21 : f32 to vector<1x2048xf32>
    %56 = arith.subf %55, %50 : vector<1x2048xf32>
    %57 = math.log %56 : vector<1x2048xf32>
    %58 = arith.mulf %54, %57 : vector<1x2048xf32>
    %59 = arith.addf %52, %58 : vector<1x2048xf32>
    %cst_22 = arith.constant 0.000000e+00 : f32
    %60 = vector.broadcast %cst_22 : f32 to vector<1x2048xf32>
    %61 = arith.subf %60, %59 : vector<1x2048xf32>
    %c4 = arith.constant 4 : index
    %c0_23 = arith.constant 0 : index
    %62 = vector.load %arg4[%c4, %c0_23] : memref<8x2048xf32, #tpu.memory_space<vmem>>, vector<1x2048xf32>
    %63 = arith.mulf %61, %16 : vector<1x2048xf32>
    %64 = arith.addf %62, %63 : vector<1x2048xf32>
    %c4_24 = arith.constant 4 : index
    %c0_25 = arith.constant 0 : index
    %65 = vector.load %arg4[%c4_24, %c0_25] : memref<8x2048xf32, #tpu.memory_space<vmem>>, vector<1x2048xf32>
    tpu.vector_store %arg4[%c4_24, %c0_25], %64 {strides = array<i32>} : memref<8x2048xf32, #tpu.memory_space<vmem>>, vector<1x2048xf32>,
    %66 = vector.extract_strided_slice %3 {offsets = [9, 0], sizes = [3, 2048], strides = [1, 1]} : vector<24x2048xf32> to vector<3x2048xf32>
    %67 = vector.extract_strided_slice %3 {offsets = [12, 0], sizes = [3, 2048], strides = [1, 1]} : vector<24x2048xf32> to vector<3x2048xf32>
    %68 = vector.extract_strided_slice %3 {offsets = [15, 0], sizes = [1, 2048], strides = [1, 1]} : vector<24x2048xf32> to vector<1x2048xf32>
    %69 = vector.extract_strided_slice %66 {offsets = [0, 0], sizes = [1, 2048], strides = [1, 1]} : vector<3x2048xf32> to vector<1x2048xf32>
    %70 = arith.mulf %68, %69 : vector<1x2048xf32>
    %71 = vector.extract_strided_slice %3 {offsets = [16, 0], sizes = [1, 2048], strides = [1, 1]} : vector<24x2048xf32> to vector<1x2048xf32>
    %72 = vector.extract_strided_slice %66 {offsets = [1, 0], sizes = [1, 2048], strides = [1, 1]} : vector<3x2048xf32> to vector<1x2048xf32>
    %73 = arith.mulf %71, %72 : vector<1x2048xf32>
    %74 = arith.addf %70, %73 : vector<1x2048xf32>
    %75 = vector.extract_strided_slice %3 {offsets = [17, 0], sizes = [1, 2048], strides = [1, 1]} : vector<24x2048xf32> to vector<1x2048xf32>
    %76 = vector.extract_strided_slice %66 {offsets = [2, 0], sizes = [1, 2048], strides = [1, 1]} : vector<3x2048xf32> to vector<1x2048xf32>
    %77 = arith.mulf %75, %76 : vector<1x2048xf32>
    %78 = arith.addf %74, %77 : vector<1x2048xf32>
    %79 = vector.extract_strided_slice %3 {offsets = [18, 0], sizes = [1, 2048], strides = [1, 1]} : vector<24x2048xf32> to vector<1x2048xf32>
    %80 = vector.extract_strided_slice %66 {offsets = [0, 0], sizes = [1, 2048], strides = [1, 1]} : vector<3x2048xf32> to vector<1x2048xf32>
    %81 = arith.mulf %79, %80 : vector<1x2048xf32>
    %82 = vector.extract_strided_slice %3 {offsets = [19, 0], sizes = [1, 2048], strides = [1, 1]} : vector<24x2048xf32> to vector<1x2048xf32>
    %83 = vector.extract_strided_slice %66 {offsets = [1, 0], sizes = [1, 2048], strides = [1, 1]} : vector<3x2048xf32> to vector<1x2048xf32>
    %84 = arith.mulf %82, %83 : vector<1x2048xf32>
    %85 = arith.addf %81, %84 : vector<1x2048xf32>
    %86 = vector.extract_strided_slice %3 {offsets = [20, 0], sizes = [1, 2048], strides = [1, 1]} : vector<24x2048xf32> to vector<1x2048xf32>
    %87 = vector.extract_strided_slice %66 {offsets = [2, 0], sizes = [1, 2048], strides = [1, 1]} : vector<3x2048xf32> to vector<1x2048xf32>
    %88 = arith.mulf %86, %87 : vector<1x2048xf32>
    %89 = arith.addf %85, %88 : vector<1x2048xf32>
    %90 = vector.extract_strided_slice %3 {offsets = [21, 0], sizes = [1, 2048], strides = [1, 1]} : vector<24x2048xf32> to vector<1x2048xf32>
    %91 = vector.extract_strided_slice %66 {offsets = [0, 0], sizes = [1, 2048], strides = [1, 1]} : vector<3x2048xf32> to vector<1x2048xf32>
    %92 = arith.mulf %90, %91 : vector<1x2048xf32>
    %93 = vector.extract_strided_slice %3 {offsets = [22, 0], sizes = [1, 2048], strides = [1, 1]} : vector<24x2048xf32> to vector<1x2048xf32>
    %94 = vector.extract_strided_slice %66 {offsets = [1, 0], sizes = [1, 2048], strides = [1, 1]} : vector<3x2048xf32> to vector<1x2048xf32>
    %95 = arith.mulf %93, %94 : vector<1x2048xf32>
    %96 = arith.addf %92, %95 : vector<1x2048xf32>
    %97 = vector.extract_strided_slice %3 {offsets = [23, 0], sizes = [1, 2048], strides = [1, 1]} : vector<24x2048xf32> to vector<1x2048xf32>
    %98 = vector.extract_strided_slice %66 {offsets = [2, 0], sizes = [1, 2048], strides = [1, 1]} : vector<3x2048xf32> to vector<1x2048xf32>
    %99 = arith.mulf %97, %98 : vector<1x2048xf32>
    %100 = arith.addf %96, %99 : vector<1x2048xf32>
    %101 = tpu.concatenate %78, %89, %100 in 0 : vector<1x2048xf32>, vector<1x2048xf32>, vector<1x2048xf32> -> vector<3x2048xf32>
    %cst_26 = arith.constant 1.000000e+00 : f32
    %102 = vector.broadcast %cst_26 : f32 to vector<3x2048xf32>
    %103 = arith.addf %101, %102 : vector<3x2048xf32>
    %cst_27 = arith.constant 5.000000e-01 : f32
    %104 = vector.broadcast %cst_27 : f32 to vector<3x2048xf32>
    %105 = arith.mulf %103, %104 : vector<3x2048xf32>
    %cst_28 = arith.constant 0.000000e+00 : f32
    %cst_29 = arith.constant 1.000000e+00 : f32
    %106 = vector.broadcast %cst_28 : f32 to vector<3x2048xf32>
    %107 = arith.maximumf %106, %105 : vector<3x2048xf32>
    %108 = vector.broadcast %cst_29 : f32 to vector<3x2048xf32>
    %109 = arith.minimumf %108, %107 : vector<3x2048xf32>
    %110 = arith.mulf %67, %67 : vector<3x2048xf32>
    %cst_30 = arith.constant dense<0.000000e+00> : vector<2048xf32>
    %111 = vector.multi_reduction <add>, %110, %cst_30 [0] : vector<3x2048xf32> to vector<2048xf32>
    %112 = vector.shape_cast %111 : vector<2048xf32> to vector<1x2048xf32>
    %113 = math.sqrt %112 : vector<1x2048xf32>
    %cst_31 = arith.constant 9.99999996E-13 : f32
    %114 = vector.broadcast %cst_31 : f32 to vector<1x2048xf32>
    %115 = arith.maximumf %113, %114 : vector<1x2048xf32>
    %116 = vector.broadcast %115 : vector<1x2048xf32> to vector<3x2048xf32>
    %117 = arith.divf %67, %116 : vector<3x2048xf32>
    %118 = arith.mulf %117, %117 : vector<3x2048xf32>
    %cst_32 = arith.constant dense<0.000000e+00> : vector<2048xf32>
    %119 = vector.multi_reduction <add>, %118, %cst_32 [0] : vector<3x2048xf32> to vector<2048xf32>
    %120 = vector.shape_cast %119 : vector<2048xf32> to vector<1x2048xf32>
    %121 = math.sqrt %120 : vector<1x2048xf32>
    %cst_33 = arith.constant 9.99999996E-13 : f32
    %122 = vector.broadcast %cst_33 : f32 to vector<1x2048xf32>
    %123 = arith.maximumf %121, %122 : vector<1x2048xf32>
    %124 = vector.broadcast %123 : vector<1x2048xf32> to vector<3x2048xf32>
    %125 = arith.divf %117, %124 : vector<3x2048xf32>
    %126 = arith.mulf %109, %109 : vector<3x2048xf32>
    %cst_34 = arith.constant dense<0.000000e+00> : vector<2048xf32>
    %127 = vector.multi_reduction <add>, %126, %cst_34 [0] : vector<3x2048xf32> to vector<2048xf32>
    %128 = vector.shape_cast %127 : vector<2048xf32> to vector<1x2048xf32>
    %129 = math.sqrt %128 : vector<1x2048xf32>
    %cst_35 = arith.constant 9.99999996E-13 : f32
    %130 = vector.broadcast %cst_35 : f32 to vector<1x2048xf32>
    %131 = arith.maximumf %129, %130 : vector<1x2048xf32>
    %132 = vector.broadcast %131 : vector<1x2048xf32> to vector<3x2048xf32>
    %133 = arith.divf %109, %132 : vector<3x2048xf32>
    %134 = arith.mulf %22, %17 : vector<1x2048xf32>
    %135 = arith.subf %133, %125 : vector<3x2048xf32>
    %136 = math.absf %135 : vector<3x2048xf32>
    %cst_36 = arith.constant 1.000000e+00 : f32
    %137 = vector.broadcast %cst_36 : f32 to vector<3x2048xf32>
    %138 = arith.cmpf olt, %136, %137 : vector<3x2048xf32>
    %cst_37 = arith.constant 5.000000e-01 : f32
    %139 = vector.broadcast %cst_37 : f32 to vector<3x2048xf32>
    %140 = arith.mulf %139, %135 : vector<3x2048xf32>
    %141 = arith.mulf %140, %135 : vector<3x2048xf32>
    %cst_38 = arith.constant 5.000000e-01 : f32
    %142 = vector.broadcast %cst_38 : f32 to vector<3x2048xf32>
    %143 = arith.subf %136, %142 : vector<3x2048xf32>
    %144 = arith.select %138, %141, %143 : vector<3x2048xi1>, vector<3x2048xf32>
    %c5 = arith.constant 5 : index
    %c0_39 = arith.constant 0 : index
    %145 = vector.load %arg4[%c5, %c0_39] : memref<8x2048xf32, #tpu.memory_space<vmem>>, vector<1x2048xf32>
    %cst_40 = arith.constant dense<0.000000e+00> : vector<2048xf32>
    %146 = vector.multi_reduction <add>, %144, %cst_40 [0] : vector<3x2048xf32> to vector<2048xf32>
    %147 = vector.shape_cast %146 : vector<2048xf32> to vector<1x2048xf32>
    %148 = arith.mulf %147, %134 : vector<1x2048xf32>
    %149 = arith.addf %145, %148 : vector<1x2048xf32>
    %c5_41 = arith.constant 5 : index
    %c0_42 = arith.constant 0 : index
    %150 = vector.load %arg4[%c5_41, %c0_42] : memref<8x2048xf32, #tpu.memory_space<vmem>>, vector<1x2048xf32>
    tpu.vector_store %arg4[%c5_41, %c0_42], %149 {strides = array<i32>} : memref<8x2048xf32, #tpu.memory_space<vmem>>, vector<1x2048xf32>,
    %c6 = arith.constant 6 : index
    %c0_43 = arith.constant 0 : index
    %151 = vector.load %arg4[%c6, %c0_43] : memref<8x2048xf32, #tpu.memory_space<vmem>>, vector<1x2048xf32>
    %152 = arith.mulf %133, %125 : vector<3x2048xf32>
    %cst_44 = arith.constant dense<0.000000e+00> : vector<2048xf32>
    %153 = vector.multi_reduction <add>, %152, %cst_44 [0] : vector<3x2048xf32> to vector<2048xf32>
    %154 = vector.shape_cast %153 : vector<2048xf32> to vector<1x2048xf32>
    %cst_45 = arith.constant 1.000000e+00 : f32
    %155 = vector.broadcast %cst_45 : f32 to vector<1x2048xf32>
    %156 = arith.subf %155, %154 : vector<1x2048xf32>
    %157 = arith.mulf %156, %134 : vector<1x2048xf32>
    %158 = arith.addf %151, %157 : vector<1x2048xf32>
    %c6_46 = arith.constant 6 : index
    %c0_47 = arith.constant 0 : index
    %159 = vector.load %arg4[%c6_46, %c0_47] : memref<8x2048xf32, #tpu.memory_space<vmem>>, vector<1x2048xf32>
    tpu.vector_store %arg4[%c6_46, %c0_47], %158 {strides = array<i32>} : memref<8x2048xf32, #tpu.memory_space<vmem>>, vector<1x2048xf32>,
    %c7 = arith.constant 7 : index
    %c0_48 = arith.constant 0 : index
    %160 = vector.load %arg4[%c7, %c0_48] : memref<8x2048xf32, #tpu.memory_space<vmem>>, vector<1x2048xf32>
    %161 = arith.addf %160, %134 : vector<1x2048xf32>
    %c7_49 = arith.constant 7 : index
    %c0_50 = arith.constant 0 : index
    %162 = vector.load %arg4[%c7_49, %c0_50] : memref<8x2048xf32, #tpu.memory_space<vmem>>, vector<1x2048xf32>
    tpu.vector_store %arg4[%c7_49, %c0_50], %161 {strides = array<i32>} : memref<8x2048xf32, #tpu.memory_space<vmem>>, vector<1x2048xf32>,
    %c1_i32 = arith.constant 1 : i32
    %163 = arith.cmpi eq, %arg0, %c1_i32 : i32
    %164 = arith.extui %163 : i1 to i32
    %c0_i32_51 = arith.constant 0 : i32
    %165 = arith.cmpi ne, %164, %c0_i32_51 : i32
    scf.if %165 {
      %c0_52 = arith.constant 0 : index
      %c0_53 = arith.constant 0 : index
      %166 = vector.load %arg4[%c0_52, %c0_53] : memref<8x2048xf32, #tpu.memory_space<vmem>>, vector<1x2048xf32>
      %167 = vector.shape_cast %166 : vector<1x2048xf32> to vector<1x1x2048xf32>
      %cst_54 = arith.constant dense<0.000000e+00> : vector<1xf32>
      %168 = vector.multi_reduction <add>, %167, %cst_54 [1, 2] : vector<1x1x2048xf32> to vector<1xf32>
      %169 = vector.shape_cast %168 : vector<1xf32> to vector<1x1x1xf32>
      %170 = vector.extract %169[0, 0, 0] : f32 from vector<1x1x1xf32>
      %c1_55 = arith.constant 1 : index
      %c0_56 = arith.constant 0 : index
      %171 = vector.load %arg4[%c1_55, %c0_56] : memref<8x2048xf32, #tpu.memory_space<vmem>>, vector<1x2048xf32>
      %172 = vector.shape_cast %171 : vector<1x2048xf32> to vector<1x1x2048xf32>
      %cst_57 = arith.constant dense<0.000000e+00> : vector<1xf32>
      %173 = vector.multi_reduction <add>, %172, %cst_57 [1, 2] : vector<1x1x2048xf32> to vector<1xf32>
      %174 = vector.shape_cast %173 : vector<1xf32> to vector<1x1x1xf32>
      %175 = vector.extract %174[0, 0, 0] : f32 from vector<1x1x1xf32>
      %c2_58 = arith.constant 2 : index
      %c0_59 = arith.constant 0 : index
      %176 = vector.load %arg4[%c2_58, %c0_59] : memref<8x2048xf32, #tpu.memory_space<vmem>>, vector<1x2048xf32>
      %177 = vector.shape_cast %176 : vector<1x2048xf32> to vector<1x1x2048xf32>
      %cst_60 = arith.constant dense<0.000000e+00> : vector<1xf32>
      %178 = vector.multi_reduction <add>, %177, %cst_60 [1, 2] : vector<1x1x2048xf32> to vector<1xf32>
      %179 = vector.shape_cast %178 : vector<1xf32> to vector<1x1x1xf32>
      %180 = vector.extract %179[0, 0, 0] : f32 from vector<1x1x1xf32>
      %c3_61 = arith.constant 3 : index
      %c0_62 = arith.constant 0 : index
      %181 = vector.load %arg4[%c3_61, %c0_62] : memref<8x2048xf32, #tpu.memory_space<vmem>>, vector<1x2048xf32>
      %182 = vector.shape_cast %181 : vector<1x2048xf32> to vector<1x1x2048xf32>
      %cst_63 = arith.constant dense<0.000000e+00> : vector<1xf32>
      %183 = vector.multi_reduction <add>, %182, %cst_63 [1, 2] : vector<1x1x2048xf32> to vector<1xf32>
      %184 = vector.shape_cast %183 : vector<1xf32> to vector<1x1x1xf32>
      %185 = vector.extract %184[0, 0, 0] : f32 from vector<1x1x1xf32>
      %c4_64 = arith.constant 4 : index
      %c0_65 = arith.constant 0 : index
      %186 = vector.load %arg4[%c4_64, %c0_65] : memref<8x2048xf32, #tpu.memory_space<vmem>>, vector<1x2048xf32>
      %187 = vector.shape_cast %186 : vector<1x2048xf32> to vector<1x1x2048xf32>
      %cst_66 = arith.constant dense<0.000000e+00> : vector<1xf32>
      %188 = vector.multi_reduction <add>, %187, %cst_66 [1, 2] : vector<1x1x2048xf32> to vector<1xf32>
      %189 = vector.shape_cast %188 : vector<1xf32> to vector<1x1x1xf32>
      %190 = vector.extract %189[0, 0, 0] : f32 from vector<1x1x1xf32>
      %cst_67 = arith.constant 3.000000e+00 : f32
      %191 = arith.mulf %cst_67, %175 : f32
      %192 = arith.divf %170, %191 : f32
      %cst_68 = arith.constant 3.000000e+00 : f32
      %193 = arith.mulf %cst_68, %185 : f32
      %194 = arith.divf %180, %193 : f32
      %cst_69 = arith.constant 5.000000e-01 : f32
      %195 = arith.mulf %194, %cst_69 : f32
      %196 = arith.addf %192, %195 : f32
      %c0_70 = arith.constant 0 : index
      %197 = memref.load %arg1[%c0_70] : memref<3xf32, #tpu.memory_space<smem>>
      %cst_71 = arith.constant 1.000000e-01 : f32
      %198 = arith.mulf %197, %cst_71 : f32
      %c1_72 = arith.constant 1 : index
      %199 = memref.load %arg1[%c1_72] : memref<3xf32, #tpu.memory_space<smem>>
      %cst_73 = arith.constant 5.000000e-04 : f32
      %200 = arith.mulf %199, %cst_73 : f32
      %c2_74 = arith.constant 2 : index
      %201 = memref.load %arg1[%c2_74] : memref<3xf32, #tpu.memory_space<smem>>
      %cst_75 = arith.constant 1.000000e+00 : f32
      %202 = arith.mulf %201, %cst_75 : f32
      %cst_76 = arith.constant 2.500000e+03 : f32
      %203 = arith.divf %190, %cst_76 : f32
      %cst_77 = arith.constant 1.000000e-01 : f32
      %204 = arith.mulf %203, %cst_77 : f32
      %c5_78 = arith.constant 5 : index
      %c0_79 = arith.constant 0 : index
      %205 = vector.load %arg4[%c5_78, %c0_79] : memref<8x2048xf32, #tpu.memory_space<vmem>>, vector<1x2048xf32>
      %206 = vector.shape_cast %205 : vector<1x2048xf32> to vector<1x1x2048xf32>
      %cst_80 = arith.constant dense<0.000000e+00> : vector<1xf32>
      %207 = vector.multi_reduction <add>, %206, %cst_80 [1, 2] : vector<1x1x2048xf32> to vector<1xf32>
      %208 = vector.shape_cast %207 : vector<1xf32> to vector<1x1x1xf32>
      %209 = vector.extract %208[0, 0, 0] : f32 from vector<1x1x1xf32>
      %c6_81 = arith.constant 6 : index
      %c0_82 = arith.constant 0 : index
      %210 = vector.load %arg4[%c6_81, %c0_82] : memref<8x2048xf32, #tpu.memory_space<vmem>>, vector<1x2048xf32>
      %211 = vector.shape_cast %210 : vector<1x2048xf32> to vector<1x1x2048xf32>
      %cst_83 = arith.constant dense<0.000000e+00> : vector<1xf32>
      %212 = vector.multi_reduction <add>, %211, %cst_83 [1, 2] : vector<1x1x2048xf32> to vector<1xf32>
      %213 = vector.shape_cast %212 : vector<1xf32> to vector<1x1x1xf32>
      %214 = vector.extract %213[0, 0, 0] : f32 from vector<1x1x1xf32>
      %c7_84 = arith.constant 7 : index
      %c0_85 = arith.constant 0 : index
      %215 = vector.load %arg4[%c7_84, %c0_85] : memref<8x2048xf32, #tpu.memory_space<vmem>>, vector<1x2048xf32>
      %216 = vector.shape_cast %215 : vector<1x2048xf32> to vector<1x1x2048xf32>
      %cst_86 = arith.constant dense<0.000000e+00> : vector<1xf32>
      %217 = vector.multi_reduction <add>, %216, %cst_86 [1, 2] : vector<1x1x2048xf32> to vector<1xf32>
      %218 = vector.shape_cast %217 : vector<1xf32> to vector<1x1x1xf32>
      %219 = vector.extract %218[0, 0, 0] : f32 from vector<1x1x1xf32>
      %220 = arith.divf %209, %219 : f32
      %221 = arith.divf %214, %219 : f32
      %222 = arith.addf %220, %221 : f32
      %cst_87 = arith.constant 5.000000e-02 : f32
      %223 = arith.mulf %222, %cst_87 : f32
      %cst_88 = arith.constant 1.000000e+00 : f32
      %224 = arith.mulf %223, %cst_88 : f32
      %225 = arith.addf %196, %198 : f32
      %226 = arith.addf %225, %204 : f32
      %227 = arith.addf %226, %224 : f32
      %228 = arith.addf %227, %200 : f32
      %229 = arith.addf %228, %202 : f32
      %c0_89 = arith.constant 0 : index
      %230 = memref.load %arg3[%c0_89] : memref<8xf32, #tpu.memory_space<smem>>
      memref.store %229, %arg3[%c0_89] : memref<8xf32, #tpu.memory_space<smem>>
      %c1_90 = arith.constant 1 : index
      %231 = memref.load %arg3[%c1_90] : memref<8xf32, #tpu.memory_space<smem>>
      memref.store %196, %arg3[%c1_90] : memref<8xf32, #tpu.memory_space<smem>>
      %c2_91 = arith.constant 2 : index
      %232 = memref.load %arg3[%c2_91] : memref<8xf32, #tpu.memory_space<smem>>
      memref.store %198, %arg3[%c2_91] : memref<8xf32, #tpu.memory_space<smem>>
      %c3_92 = arith.constant 3 : index
      %233 = memref.load %arg3[%c3_92] : memref<8xf32, #tpu.memory_space<smem>>
      memref.store %200, %arg3[%c3_92] : memref<8xf32, #tpu.memory_space<smem>>
      %c4_93 = arith.constant 4 : index
      %234 = memref.load %arg3[%c4_93] : memref<8xf32, #tpu.memory_space<smem>>
      memref.store %202, %arg3[%c4_93] : memref<8xf32, #tpu.memory_space<smem>>
      %c5_94 = arith.constant 5 : index
      %235 = memref.load %arg3[%c5_94] : memref<8xf32, #tpu.memory_space<smem>>
      memref.store %204, %arg3[%c5_94] : memref<8xf32, #tpu.memory_space<smem>>
      %c6_95 = arith.constant 6 : index
      %236 = memref.load %arg3[%c6_95] : memref<8xf32, #tpu.memory_space<smem>>
      memref.store %224, %arg3[%c6_95] : memref<8xf32, #tpu.memory_space<smem>>
      %cst_96 = arith.constant 0.000000e+00 : f32
      %c7_97 = arith.constant 7 : index
      %237 = memref.load %arg3[%c7_97] : memref<8xf32, #tpu.memory_space<smem>>
      memref.store %cst_96, %arg3[%c7_97] : memref<8xf32, #tpu.memory_space<smem>>
    } else {
    }
    return
  }
  func.func @transform_0(%arg0: i32) -> i32 {
    %c0_i32 = arith.constant 0 : i32
    %c0_i32_0 = arith.constant 0 : i32
    return %c0_i32 : i32
  }
  func.func @transform_1(%arg0: i32) -> (i32, i32) {
    %c0_i32 = arith.constant 0 : i32
    %c0_i32_0 = arith.constant 0 : i32
    return %c0_i32, %arg0 : i32, i32
  }
  func.func @transform_2(%arg0: i32) -> i32 {
    %c0_i32 = arith.constant 0 : i32
    %c0_i32_0 = arith.constant 0 : i32
    return %c0_i32 : i32
  }
}

</mosaic_0001>

<llo_original>
// kernel: tpu_custom_call.1
$region0: #{tpu_custom_call.1}
  #allocation0 [shape = 'u32[]', space=smem, size = 0x4, offset = 0x4, fixed_abs, tag = 'smem constant byte address 0x4 - core index']
  #allocation1 [shape = 'u32[144,128]{1,0:T(1,128)}', space=vmem, size = 0x12000, scoped, tag = 'internal scratch']
  #allocation2 [shape = 'f32[8,2048]{1,0:T(8,128)}', space=vmem, size = 0x10000, scoped, tag = 'scratch operand']
  %s0 = inlined_call_operand.hbm [shape: f32[3], index: 0, kind: input, shape index: {}]
  %s1 = inlined_call_operand.hbm [shape: f32[24,4096], index: 1, kind: input, shape index: {}]
  %s2 = inlined_call_operand.hbm [shape: f32[8], index: 2, kind: output, shape index: {}]
  %s3 = sld [smem:[#allocation0]]
  $region57: #{tpu_custom_call.1} parent=0
    _
  %s5 = ssub.s32 1, %s3
  %s6 = scalar_select 0, %s5, %s3
  $region1: #{tpu_custom_call.1} parent=0
    #allocation3 [shape = 'u8[512]{0}', space=smem, size = 0x200, scoped, tag = 'input window, operand 0, single buffered']
    #allocation4 [shape = 's32[2]{0}', space=sflag, size = 0x8, scoped, tag = 'scoped memory for tpu_custom_call.1']
    #allocation5 [shape = 's32[2]{0}', space=sflag, size = 0x8, scoped, tag = 'scoped memory for tpu_custom_call.1']
    #allocation6 [shape = 's32[2]{0}', space=sflag, size = 0x8, scoped, tag = 'scoped memory for tpu_custom_call.1']
    #allocation7 [shape = 'u8[393216]{0}', space=vmem, size = 0x60000, scoped, tag = 'input window, operand 1']
    #allocation8 [shape = 'u8[512]{0}', space=smem, size = 0x200, scoped, tag = 'output window, operand 0, single buffered']
    %7 = vsyncpa [#allocation5], 0
    %8 = vsyncpa [#allocation4], 0
    %s9 = scalar_lea.sflag [#allocation4], 1
    %10 = vsyncpa %s9, 0
    %11 = vsyncpa [#allocation6], 0
    loop: start=0, step=1, limit=4
    $region2: #{tpu_custom_call.1} parent=1 // loop_pre_header
      _
    $region3: #{tpu_custom_call.1} parent=1 // loop_header
      %s13 = sphi 0, %s17
      %p14 = scmp.ge.s32.totalorder %s13, 4
      %s21 = sphi 0, %s21
      %s23 = sphi 0, %s21
      %s24 = sphi 0, %s23
      %s38 = sphi 0, %s24
      %s44 = sphi 0, %s46
      %s47 = sphi 0, %s44
      %s48 = sphi 0, %s47
      %s64 = sphi 0, %s48
      %s68 = sphi 0, %s68
      %s70 = sphi 0, %s68
      %s71 = sphi 0, %s70
      %s85 = sphi 0, %s71
    $region4: #{tpu_custom_call.1} parent=1 // loop_header_branch
      %16 = sbr.rel (%p14) target = $region8
    $region5: #{tpu_custom_call.1} parent=1 // loop_body
      %s18 = ssub.s32 %s13, 1
      %s19 = ssub.s32 %s13, 2
      %s20 = sadd.s32 %s13, 1
      %s22 = sadd.s32 %s21, 1
      %p25 = scmp.eq.s32.totalorder %s13, 1
      %p26 = scmp.ne.s32.totalorder %s21, %s23
      %p27 = scmp.eq.s32.totalorder %s13, 0
      %p28 = por %p26, %p27
      %p29 = scmp.ne.s32.totalorder %s21, %s23
      %p30 = scmp.eq.s32.totalorder %s18, 1
      %p31 = por %p29, %p30
      %p32 = scmp.ne.s32.totalorder %s23, %s24
      %p33 = scmp.eq.s32.totalorder %s18, 0
      %p34 = por %p32, %p33
      %p35 = scmp.ne.s32.totalorder %s23, %s24
      %p36 = scmp.eq.s32.totalorder %s19, 1
      %p37 = por %p35, %p36
      %p39 = scmp.ne.s32.totalorder %s24, %s38
      %p40 = scmp.eq.s32.totalorder %s19, 0
      %p41 = por %p39, %p40
      %s42 = ssub.s32 %s13, %s20
      %p43 = scmp.eq.s32.totalorder %s42, 0
      %s45 = sadd.s32 %s44, 1
      %s46 = scalar_select %p43, %s44, %s45
      %p49 = pneg %p43
      %p50 = scmp.eq.s32.totalorder %s13, 1
      %p51 = por %p49, %p50
      %p52 = scmp.ne.s32.totalorder %s44, %s47
      %p53 = scmp.eq.s32.totalorder %s13, 0
      %p54 = por %p52, %p53
      %p55 = scmp.ne.s32.totalorder %s44, %s47
      %p56 = scmp.eq.s32.totalorder %s18, 1
      %p57 = por %p55, %p56
      %p58 = scmp.ne.s32.totalorder %s47, %s48
      %p59 = scmp.eq.s32.totalorder %s18, 0
      %p60 = por %p58, %p59
      %p61 = scmp.ne.s32.totalorder %s47, %s48
      %p62 = scmp.eq.s32.totalorder %s19, 1
      %p63 = por %p61, %p62
      %p65 = scmp.ne.s32.totalorder %s48, %s64
      %p66 = scmp.eq.s32.totalorder %s19, 0
      %p67 = por %p65, %p66
      %s69 = sadd.s32 %s68, 1
      %p72 = scmp.eq.s32.totalorder %s13, 1
      %p73 = scmp.ne.s32.totalorder %s68, %s70
      %p74 = scmp.eq.s32.totalorder %s13, 0
      %p75 = por %p73, %p74
      %p76 = scmp.ne.s32.totalorder %s68, %s70
      %p77 = scmp.eq.s32.totalorder %s18, 1
      %p78 = por %p76, %p77
      %p79 = scmp.ne.s32.totalorder %s70, %s71
      %p80 = scmp.eq.s32.totalorder %s18, 0
      %p81 = por %p79, %p80
      %p82 = scmp.ne.s32.totalorder %s70, %s71
      %p83 = scmp.eq.s32.totalorder %s19, 1
      %p84 = por %p82, %p83
      %p86 = scmp.ne.s32.totalorder %s71, %s85
      %p87 = scmp.eq.s32.totalorder %s19, 0
      %p88 = por %p86, %p87
      %p89 = scmp.le.s32.totalorder 1, %s13
      %p90 = scmp.lt.s32.totalorder %s13, 3
      %p91 = pnand %p89, %p90
      %p92 = pneg %p91
      // Predicated region
      $region9: #{tpu_custom_call.1} parent=5 // pred_check
        _
      $region10: #{tpu_custom_call.1} parent=5 // pred_check_branch
        %94 = sbr.rel (%p91) target = $region12
      $region11: #{tpu_custom_call.1} parent=5 // pred_region
        %s95 = ssub.s32 %s13, 1
        // Predicated region
        $region13: #{tpu_custom_call.1} parent=11 // pred_check
          %p96 = pneg %p34
        $region14: #{tpu_custom_call.1} parent=11 // pred_check_branch
          %98 = sbr.rel (%p96) target = $region16
        $region15: #{tpu_custom_call.1} parent=11 // pred_region
          %s100 = ssub.s32 16, 16
          %101 = vsyncadd [#allocation5], %s100
          %104 = dma.hbm_to_smem %s0, 16, [#allocation3], [#allocation5]
        $region16: #{tpu_custom_call.1} parent=11 // pred_fallthru
          _
      $region12: #{tpu_custom_call.1} parent=5 // pred_fallthru
        _
      %p105 = scmp.lt.s32.totalorder %s13, 2
      // Predicated region
      $region17: #{tpu_custom_call.1} parent=5 // pred_check
        %p106 = pneg %p105
      $region18: #{tpu_custom_call.1} parent=5 // pred_check_branch
        %108 = sbr.rel (%p106) target = $region20
      $region19: #{tpu_custom_call.1} parent=5 // pred_region
        // Predicated region
        $region21: #{tpu_custom_call.1} parent=19 // pred_check
          %p109 = pneg %p54
        $region22: #{tpu_custom_call.1} parent=19 // pred_check_branch
          %111 = sbr.rel (%p109) target = $region24
        $region23: #{tpu_custom_call.1} parent=19 // pred_region
          %s112 = sand.u32 %s44, 1
          %s113 = scalar_lea.sflag [#allocation4], %s112
          %s114 = sand.u32 %s44, 1
          %s115 = smul.addr %s114, 384
          %s116 = scalar_lea.vmem [#allocation7], %s115
          %s117 = smul.u32 16, %s13
          %s119 = ssub.s32 6144, 6144
          %120 = vsyncadd %s113, %s119
          %s121 = smul.addr %s117, 128
          %s122 = scalar_lea.hbm %s1, %s121
          %s123 = sshll.u32 %s116, 4
          %s124 = int_to_ptr.vmem [resolvable:$true] %s123
          %129 = dma.hbm_to_vmem [thread:$0]  %s122, 6144, %s124, %s113, 4096, 2048, 128
        $region24: #{tpu_custom_call.1} parent=19 // pred_fallthru
          _
      $region20: #{tpu_custom_call.1} parent=5 // pred_fallthru
        _
      %p130 = scmp.le.s32.totalorder 1, %s13
      %p131 = scmp.lt.s32.totalorder %s13, 3
      %p132 = pnand %p130, %p131
      %p133 = pneg %p132
      // Predicated region
      $region25: #{tpu_custom_call.1} parent=5 // pred_check
        _
      $region26: #{tpu_custom_call.1} parent=5 // pred_check_branch
        %135 = sbr.rel (%p132) target = $region28
      $region27: #{tpu_custom_call.1} parent=5 // pred_region
        %s136 = ssub.s32 %s13, 1
        // Predicated region
        $region29: #{tpu_custom_call.1} parent=27 // pred_check
          %p137 = pneg %p34
        $region30: #{tpu_custom_call.1} parent=27 // pred_check_branch
          %139 = sbr.rel (%p137) target = $region32
        $region31: #{tpu_custom_call.1} parent=27 // pred_region
          %140 = dma.done [#allocation5], 16
        $region32: #{tpu_custom_call.1} parent=27 // pred_fallthru
          _
        %s141 = sand.u32 %s47, 1
        %s142 = scalar_lea.sflag [#allocation4], %s141
        %s143 = sand.u32 %s47, 1
        %s144 = smul.addr %s143, 384
        %s145 = scalar_lea.vmem [#allocation7], %s144
        // Predicated region
        $region33: #{tpu_custom_call.1} parent=27 // pred_check
          %p146 = pneg %p60
        $region34: #{tpu_custom_call.1} parent=27 // pred_check_branch
          %148 = sbr.rel (%p146) target = $region36
        $region35: #{tpu_custom_call.1} parent=27 // pred_region
          %149 = dma.done %s142, 6144
        $region36: #{tpu_custom_call.1} parent=27 // pred_fallthru
          _
        %150 = sfence
        %p151 = pneg %p34
        %p152 = pneg %p31
        %s153 = sand.u32 %s47, 1
        %s154 = scalar_lea.sflag [#allocation4], %s153
        %s155 = sand.u32 %s47, 1
        %s156 = smul.addr %s155, 384
        %s157 = scalar_lea.vmem [#allocation7], %s156
        %p158 = pneg %p60
        %p159 = pneg %p57
        %p160 = pneg %p81
        %p161 = pneg %p78
        %s162 = smul.u32 16, %s18
        %p163 = scmp.eq.s32.totalorder %s18, 0
        // Predicated region
        $region37: #{tpu_custom_call.1} parent=27 // pred_check
          %p164 = pneg %p163
        $region38: #{tpu_custom_call.1} parent=27 // pred_check_branch
          %166 = sbr.rel (%p164) target = $region40
        $region39: #{tpu_custom_call.1} parent=27 // pred_region
          %167 = vst [vmem:[#allocation2] sm:$0xff] 0.0
          %168 = vst [vmem:[#allocation2 + $0x8] sm:$0xff] 0.0
          %169 = vst [vmem:[#allocation2 + $0x10] sm:$0xff] 0.0
          %170 = vst [vmem:[#allocation2 + $0x18] sm:$0xff] 0.0
          %171 = vst [vmem:[#allocation2 + $0x20] sm:$0xff] 0.0
          %172 = vst [vmem:[#allocation2 + $0x28] sm:$0xff] 0.0
          %173 = vst [vmem:[#allocation2 + $0x30] sm:$0xff] 0.0
          %174 = vst [vmem:[#allocation2 + $0x38] sm:$0xff] 0.0
          %175 = vst [vmem:[#allocation2 + $0x40] sm:$0xff] 0.0
          %176 = vst [vmem:[#allocation2 + $0x48] sm:$0xff] 0.0
          %177 = vst [vmem:[#allocation2 + $0x50] sm:$0xff] 0.0
          %178 = vst [vmem:[#allocation2 + $0x58] sm:$0xff] 0.0
          %179 = vst [vmem:[#allocation2 + $0x60] sm:$0xff] 0.0
          %180 = vst [vmem:[#allocation2 + $0x68] sm:$0xff] 0.0
          %181 = vst [vmem:[#allocation2 + $0x70] sm:$0xff] 0.0
          %182 = vst [vmem:[#allocation2 + $0x78] sm:$0xff] 0.0
        $region40: #{tpu_custom_call.1} parent=27 // pred_fallthru
          _
        %v183 = vld [vmem:[%s145] sm:$0xff]
        %v184 = vld [vmem:[%s145 + $0x8] sm:$0xff]
        %v185 = vld [vmem:[%s145 + $0x10] sm:$0xff]
        %v186 = vld [vmem:[%s145 + $0x18] sm:$0xff]
        %v187 = vld [vmem:[%s145 + $0x20] sm:$0xff]
        %v188 = vld [vmem:[%s145 + $0x28] sm:$0xff]
        %v189 = vld [vmem:[%s145 + $0x30] sm:$0xff]
        %v190 = vld [vmem:[%s145 + $0x38] sm:$0xff]
        %v191 = vld [vmem:[%s145 + $0x40] sm:$0xff]
        %v192 = vld [vmem:[%s145 + $0x48] sm:$0xff]
        %v193 = vld [vmem:[%s145 + $0x50] sm:$0xff]
        %v194 = vld [vmem:[%s145 + $0x58] sm:$0xff]
        %v195 = vld [vmem:[%s145 + $0x60] sm:$0xff]
        %v196 = vld [vmem:[%s145 + $0x68] sm:$0xff]
        %v197 = vld [vmem:[%s145 + $0x70] sm:$0xff]
        %v198 = vld [vmem:[%s145 + $0x78] sm:$0xff]
        %v199 = vld [vmem:[%s145 + $0x80] sm:$0xff]
        %v200 = vld [vmem:[%s145 + $0x88] sm:$0xff]
        %v201 = vld [vmem:[%s145 + $0x90] sm:$0xff]
        %v202 = vld [vmem:[%s145 + $0x98] sm:$0xff]
        %v203 = vld [vmem:[%s145 + $0xa0] sm:$0xff]
        %v204 = vld [vmem:[%s145 + $0xa8] sm:$0xff]
        %v205 = vld [vmem:[%s145 + $0xb0] sm:$0xff]
        %v206 = vld [vmem:[%s145 + $0xb8] sm:$0xff]
        %v207 = vld [vmem:[%s145 + $0xc0] sm:$0xff]
        %v208 = vld [vmem:[%s145 + $0xc8] sm:$0xff]
        %v209 = vld [vmem:[%s145 + $0xd0] sm:$0xff]
        %v210 = vld [vmem:[%s145 + $0xd8] sm:$0xff]
        %v211 = vld [vmem:[%s145 + $0xe0] sm:$0xff]
        %v212 = vld [vmem:[%s145 + $0xe8] sm:$0xff]
        %v213 = vld [vmem:[%s145 + $0xf0] sm:$0xff]
        %v214 = vld [vmem:[%s145 + $0xf8] sm:$0xff]
        %v215 = vld [vmem:[%s145 + $0x100] sm:$0xff]
        %v216 = vld [vmem:[%s145 + $0x108] sm:$0xff]
        %v217 = vld [vmem:[%s145 + $0x110] sm:$0xff]
        %v218 = vld [vmem:[%s145 + $0x118] sm:$0xff]
        %v219 = vld [vmem:[%s145 + $0x120] sm:$0xff]
        %v220 = vld [vmem:[%s145 + $0x128] sm:$0xff]
        %v221 = vld [vmem:[%s145 + $0x130] sm:$0xff]
        %v222 = vld [vmem:[%s145 + $0x138] sm:$0xff]
        %v223 = vld [vmem:[%s145 + $0x140] sm:$0xff]
        %v224 = vld [vmem:[%s145 + $0x148] sm:$0xff]
        %v225 = vld [vmem:[%s145 + $0x150] sm:$0xff]
        %v226 = vld [vmem:[%s145 + $0x158] sm:$0xff]
        %v227 = vld [vmem:[%s145 + $0x160] sm:$0xff]
        %v228 = vld [vmem:[%s145 + $0x168] sm:$0xff]
        %v229 = vld [vmem:[%s145 + $0x170] sm:$0xff]
        %v230 = vld [vmem:[%s145 + $0x178] sm:$0xff]
        %v231 = vlaneseq
        %v232 = vand.u32 %v231, 127
        %v233 = vadd.s32 %v232, 128
        %v234 = vadd.s32 %v232, 256
        %v235 = vadd.s32 %v232, 384
        %v236 = vadd.s32 %v232, 512
        %v237 = vadd.s32 %v232, 640
        %v238 = vadd.s32 %v232, 768
        %v239 = vadd.s32 %v232, 896
        %v240 = vadd.s32 %v232, 1024
        %v241 = vadd.s32 %v232, 1152
        %v242 = vadd.s32 %v232, 1280
        %v243 = vadd.s32 %v232, 1408
        %v244 = vadd.s32 %v232, 1536
        %v245 = vadd.s32 %v232, 1664
        %v246 = vadd.s32 %v232, 1792
        %v247 = vadd.s32 %v232, 1920
        %s248 = smul.u32 %s18, 2048
        %v249 = vstv %s248
        %v250 = vadd.s32 %v249, %v232
        %v251 = vadd.s32 %v249, %v233
        %v252 = vadd.s32 %v249, %v234
        %v253 = vadd.s32 %v249, %v235
        %v254 = vadd.s32 %v249, %v236
        %v255 = vadd.s32 %v249, %v237
        %v256 = vadd.s32 %v249, %v238
        %v257 = vadd.s32 %v249, %v239
        %v258 = vadd.s32 %v249, %v240
        %v259 = vadd.s32 %v249, %v241
        %v260 = vadd.s32 %v249, %v242
        %v261 = vadd.s32 %v249, %v243
        %v262 = vadd.s32 %v249, %v244
        %v263 = vadd.s32 %v249, %v245
        %v264 = vadd.s32 %v249, %v246
        %v265 = vadd.s32 %v249, %v247
        %vm266 = vcmp.lt.s32.totalorder %v250, 2500
        %vm267 = vcmp.lt.s32.totalorder %v251, 2500
        %vm268 = vcmp.lt.s32.totalorder %v252, 2500
        %vm269 = vcmp.lt.s32.totalorder %v253, 2500
        %vm270 = vcmp.lt.s32.totalorder %v254, 2500
        %vm271 = vcmp.lt.s32.totalorder %v255, 2500
        %vm272 = vcmp.lt.s32.totalorder %v256, 2500
        %vm273 = vcmp.lt.s32.totalorder %v257, 2500
        %vm274 = vcmp.lt.s32.totalorder %v258, 2500
        %vm275 = vcmp.lt.s32.totalorder %v259, 2500
        %vm276 = vcmp.lt.s32.totalorder %v260, 2500
        %vm277 = vcmp.lt.s32.totalorder %v261, 2500
        %vm278 = vcmp.lt.s32.totalorder %v262, 2500
        %vm279 = vcmp.lt.s32.totalorder %v263, 2500
        %vm280 = vcmp.lt.s32.totalorder %v264, 2500
        %vm281 = vcmp.lt.s32.totalorder %v265, 2500
        %v282 = vsel %vm266, 1, 0
        %v283 = vsel %vm267, 1, 0
        %v284 = vsel %vm268, 1, 0
        %v285 = vsel %vm269, 1, 0
        %v286 = vsel %vm270, 1, 0
        %v287 = vsel %vm271, 1, 0
        %v288 = vsel %vm272, 1, 0
        %v289 = vsel %vm273, 1, 0
        %v290 = vsel %vm274, 1, 0
        %v291 = vsel %vm275, 1, 0
        %v292 = vsel %vm276, 1, 0
        %v293 = vsel %vm277, 1, 0
        %v294 = vsel %vm278, 1, 0
        %v295 = vsel %vm279, 1, 0
        %v296 = vsel %vm280, 1, 0
        %v297 = vsel %vm281, 1, 0
        %v298 = vcvt.s32.f32 %v282
        %v299 = vcvt.s32.f32 %v283
        %v300 = vcvt.s32.f32 %v284
        %v301 = vcvt.s32.f32 %v285
        %v302 = vcvt.s32.f32 %v286
        %v303 = vcvt.s32.f32 %v287
        %v304 = vcvt.s32.f32 %v288
        %v305 = vcvt.s32.f32 %v289
        %v306 = vcvt.s32.f32 %v290
        %v307 = vcvt.s32.f32 %v291
        %v308 = vcvt.s32.f32 %v292
        %v309 = vcvt.s32.f32 %v293
        %v310 = vcvt.s32.f32 %v294
        %v311 = vcvt.s32.f32 %v295
        %v312 = vcvt.s32.f32 %v296
        %v313 = vcvt.s32.f32 %v297
        %v314 = vmul.f32 %v183, %v298
        %v315 = vmul.f32 %v184, %v299
        %v316 = vmul.f32 %v185, %v300
        %v317 = vmul.f32 %v186, %v301
        %v318 = vmul.f32 %v187, %v302
        %v319 = vmul.f32 %v188, %v303
        %v320 = vmul.f32 %v189, %v304
        %v321 = vmul.f32 %v190, %v305
        %v322 = vmul.f32 %v191, %v306
        %v323 = vmul.f32 %v192, %v307
        %v324 = vmul.f32 %v193, %v308
        %v325 = vmul.f32 %v194, %v309
        %v326 = vmul.f32 %v195, %v310
        %v327 = vmul.f32 %v196, %v311
        %v328 = vmul.f32 %v197, %v312
        %v329 = vmul.f32 %v198, %v313
        %vm330 = vcmp.gt.f32.partialorder %v183, 0.0
        %vm331 = vcmp.gt.f32.partialorder %v184, 0.0
        %vm332 = vcmp.gt.f32.partialorder %v185, 0.0
        %vm333 = vcmp.gt.f32.partialorder %v186, 0.0
        %vm334 = vcmp.gt.f32.partialorder %v187, 0.0
        %vm335 = vcmp.gt.f32.partialorder %v188, 0.0
        %vm336 = vcmp.gt.f32.partialorder %v189, 0.0
        %vm337 = vcmp.gt.f32.partialorder %v190, 0.0
        %vm338 = vcmp.gt.f32.partialorder %v191, 0.0
        %vm339 = vcmp.gt.f32.partialorder %v192, 0.0
        %vm340 = vcmp.gt.f32.partialorder %v193, 0.0
        %vm341 = vcmp.gt.f32.partialorder %v194, 0.0
        %vm342 = vcmp.gt.f32.partialorder %v195, 0.0
        %vm343 = vcmp.gt.f32.partialorder %v196, 0.0
        %vm344 = vcmp.gt.f32.partialorder %v197, 0.0
        %vm345 = vcmp.gt.f32.partialorder %v198, 0.0
        %v346 = vsel %vm330, 1, 0
        %v347 = vsel %vm331, 1, 0
        %v348 = vsel %vm332, 1, 0
        %v349 = vsel %vm333, 1, 0
        %v350 = vsel %vm334, 1, 0
        %v351 = vsel %vm335, 1, 0
        %v352 = vsel %vm336, 1, 0
        %v353 = vsel %vm337, 1, 0
        %v354 = vsel %vm338, 1, 0
        %v355 = vsel %vm339, 1, 0
        %v356 = vsel %vm340, 1, 0
        %v357 = vsel %vm341, 1, 0
        %v358 = vsel %vm342, 1, 0
        %v359 = vsel %vm343, 1, 0
        %v360 = vsel %vm344, 1, 0
        %v361 = vsel %vm345, 1, 0
        %v362 = vcvt.s32.f32 %v346
        %v363 = vcvt.s32.f32 %v347
        %v364 = vcvt.s32.f32 %v348
        %v365 = vcvt.s32.f32 %v349
        %v366 = vcvt.s32.f32 %v350
        %v367 = vcvt.s32.f32 %v351
        %v368 = vcvt.s32.f32 %v352
        %v369 = vcvt.s32.f32 %v353
        %v370 = vcvt.s32.f32 %v354
        %v371 = vcvt.s32.f32 %v355
        %v372 = vcvt.s32.f32 %v356
        %v373 = vcvt.s32.f32 %v357
        %v374 = vcvt.s32.f32 %v358
        %v375 = vcvt.s32.f32 %v359
        %v376 = vcvt.s32.f32 %v360
        %v377 = vcvt.s32.f32 %v361
        %v378 = vmul.f32 %v362, %v298
        %v379 = vmul.f32 %v363, %v299
        %v380 = vmul.f32 %v364, %v300
        %v381 = vmul.f32 %v365, %v301
        %v382 = vmul.f32 %v366, %v302
        %v383 = vmul.f32 %v367, %v303
        %v384 = vmul.f32 %v368, %v304
        %v385 = vmul.f32 %v369, %v305
        %v386 = vmul.f32 %v370, %v306
        %v387 = vmul.f32 %v371, %v307
        %v388 = vmul.f32 %v372, %v308
        %v389 = vmul.f32 %v373, %v309
        %v390 = vmul.f32 %v374, %v310
        %v391 = vmul.f32 %v375, %v311
        %v392 = vmul.f32 %v376, %v312
        %v393 = vmul.f32 %v377, %v313
        %v394 = vsub.f32 1.0, %v362
        %v395 = vsub.f32 1.0, %v363
        %v396 = vsub.f32 1.0, %v364
        %v397 = vsub.f32 1.0, %v365
        %v398 = vsub.f32 1.0, %v366
        %v399 = vsub.f32 1.0, %v367
        %v400 = vsub.f32 1.0, %v368
        %v401 = vsub.f32 1.0, %v369
        %v402 = vsub.f32 1.0, %v370
        %v403 = vsub.f32 1.0, %v371
        %v404 = vsub.f32 1.0, %v372
        %v405 = vsub.f32 1.0, %v373
        %v406 = vsub.f32 1.0, %v374
        %v407 = vsub.f32 1.0, %v375
        %v408 = vsub.f32 1.0, %v376
        %v409 = vsub.f32 1.0, %v377
        %v410 = vmul.f32 %v394, %v298
        %v411 = vmul.f32 %v395, %v299
        %v412 = vmul.f32 %v396, %v300
        %v413 = vmul.f32 %v397, %v301
        %v414 = vmul.f32 %v398, %v302
        %v415 = vmul.f32 %v399, %v303
        %v416 = vmul.f32 %v400, %v304
        %v417 = vmul.f32 %v401, %v305
        %v418 = vmul.f32 %v402, %v306
        %v419 = vmul.f32 %v403, %v307
        %v420 = vmul.f32 %v404, %v308
        %v421 = vmul.f32 %v405, %v309
        %v422 = vmul.f32 %v406, %v310
        %v423 = vmul.f32 %v407, %v311
        %v424 = vmul.f32 %v408, %v312
        %v425 = vmul.f32 %v409, %v313
        %v442 = vrot.slane %v183, 3
        %v443 = vrot.slane %v184, 3
        %v444 = vrot.slane %v185, 3
        %v445 = vrot.slane %v186, 3
        %v446 = vrot.slane %v187, 3
        %v447 = vrot.slane %v188, 3
        %v448 = vrot.slane %v189, 3
        %v449 = vrot.slane %v190, 3
        %v450 = vrot.slane %v191, 3
        %v451 = vrot.slane %v192, 3
        %v452 = vrot.slane %v193, 3
        %v453 = vrot.slane %v194, 3
        %v454 = vrot.slane %v195, 3
        %v455 = vrot.slane %v196, 3
        %v456 = vrot.slane %v197, 3
        %v457 = vrot.slane %v198, 3
        %v474 = vsub.f32 %v183, %v442
        %v475 = vsub.f32 %v184, %v443
        %v476 = vsub.f32 %v185, %v444
        %v477 = vsub.f32 %v186, %v445
        %v478 = vsub.f32 %v187, %v446
        %v479 = vsub.f32 %v188, %v447
        %v480 = vsub.f32 %v189, %v448
        %v481 = vsub.f32 %v190, %v449
        %v482 = vsub.f32 %v191, %v450
        %v483 = vsub.f32 %v192, %v451
        %v484 = vsub.f32 %v193, %v452
        %v485 = vsub.f32 %v194, %v453
        %v486 = vsub.f32 %v195, %v454
        %v487 = vsub.f32 %v196, %v455
        %v488 = vsub.f32 %v197, %v456
        %v489 = vsub.f32 %v198, %v457
        %v490 = vand.u32 2147483647, %v474
        %v491 = vand.u32 2147483647, %v475
        %v492 = vand.u32 2147483647, %v476
        %v493 = vand.u32 2147483647, %v477
        %v494 = vand.u32 2147483647, %v478
        %v495 = vand.u32 2147483647, %v479
        %v496 = vand.u32 2147483647, %v480
        %v497 = vand.u32 2147483647, %v481
        %v498 = vand.u32 2147483647, %v482
        %v499 = vand.u32 2147483647, %v483
        %v500 = vand.u32 2147483647, %v484
        %v501 = vand.u32 2147483647, %v485
        %v502 = vand.u32 2147483647, %v486
        %v503 = vand.u32 2147483647, %v487
        %v504 = vand.u32 2147483647, %v488
        %v505 = vand.u32 2147483647, %v489
        %v506 = vand.u32 2147483647, %v183
        %v507 = vand.u32 2147483647, %v184
        %v508 = vand.u32 2147483647, %v185
        %v509 = vand.u32 2147483647, %v186
        %v510 = vand.u32 2147483647, %v187
        %v511 = vand.u32 2147483647, %v188
        %v512 = vand.u32 2147483647, %v189
        %v513 = vand.u32 2147483647, %v190
        %v514 = vand.u32 2147483647, %v191
        %v515 = vand.u32 2147483647, %v192
        %v516 = vand.u32 2147483647, %v193
        %v517 = vand.u32 2147483647, %v194
        %v518 = vand.u32 2147483647, %v195
        %v519 = vand.u32 2147483647, %v196
        %v520 = vand.u32 2147483647, %v197
        %v521 = vand.u32 2147483647, %v198
        %v522 = vld [vmem:[#allocation2] ss:$8 sm:$0xf]
        %v523 = vld [vmem:[#allocation2] ss:$8 sm:$0xf0]
        %v524 = vor.u32 %v522, %v523
        %s525 = scalar_lea.vmem [#allocation2], 64
        %v526 = vld [vmem:[%s525] ss:$8 sm:$0xf]
        %v527 = vld [vmem:[%s525] ss:$8 sm:$0xf0]
        %v528 = vor.u32 %v526, %v527
        %vm529 = vcmask 1042432
        %v530 = vsel %vm529, %v490, 0.0
        %v531 = vrot.slane %v530, 4
        %v532 = vadd.f32 %v530, %v531
        %v533 = vrot.slane %v532, 2
        %v534 = vadd.f32 %v532, %v533
        %v535 = vrot.slane %v534, 1
        %v536 = vadd.f32 %v534, %v535
        %v537 = vsel %vm529, %v491, 0.0
        %v538 = vrot.slane %v537, 4
        %v539 = vadd.f32 %v537, %v538
        %v540 = vrot.slane %v539, 2
        %v541 = vadd.f32 %v539, %v540
        %v542 = vrot.slane %v541, 1
        %v543 = vadd.f32 %v541, %v542
        %v544 = vsel %vm529, %v492, 0.0
        %v545 = vrot.slane %v544, 4
        %v546 = vadd.f32 %v544, %v545
        %v547 = vrot.slane %v546, 2
        %v548 = vadd.f32 %v546, %v547
        %v549 = vrot.slane %v548, 1
        %v550 = vadd.f32 %v548, %v549
        %v551 = vsel %vm529, %v493, 0.0
        %v552 = vrot.slane %v551, 4
        %v553 = vadd.f32 %v551, %v552
        %v554 = vrot.slane %v553, 2
        %v555 = vadd.f32 %v553, %v554
        %v556 = vrot.slane %v555, 1
        %v557 = vadd.f32 %v555, %v556
        %v558 = vsel %vm529, %v494, 0.0
        %v559 = vrot.slane %v558, 4
        %v560 = vadd.f32 %v558, %v559
        %v561 = vrot.slane %v560, 2
        %v562 = vadd.f32 %v560, %v561
        %v563 = vrot.slane %v562, 1
        %v564 = vadd.f32 %v562, %v563
        %v565 = vsel %vm529, %v495, 0.0
        %v566 = vrot.slane %v565, 4
        %v567 = vadd.f32 %v565, %v566
        %v568 = vrot.slane %v567, 2
        %v569 = vadd.f32 %v567, %v568
        %v570 = vrot.slane %v569, 1
        %v571 = vadd.f32 %v569, %v570
        %v572 = vsel %vm529, %v496, 0.0
        %v573 = vrot.slane %v572, 4
        %v574 = vadd.f32 %v572, %v573
        %v575 = vrot.slane %v574, 2
        %v576 = vadd.f32 %v574, %v575
        %v577 = vrot.slane %v576, 1
        %v578 = vadd.f32 %v576, %v577
        %v579 = vsel %vm529, %v497, 0.0
        %v580 = vrot.slane %v579, 4
        %v581 = vadd.f32 %v579, %v580
        %v582 = vrot.slane %v581, 2
        %v583 = vadd.f32 %v581, %v582
        %v584 = vrot.slane %v583, 1
        %v585 = vadd.f32 %v583, %v584
        %v586 = vsel %vm529, %v498, 0.0
        %v587 = vrot.slane %v586, 4
        %v588 = vadd.f32 %v586, %v587
        %v589 = vrot.slane %v588, 2
        %v590 = vadd.f32 %v588, %v589
        %v591 = vrot.slane %v590, 1
        %v592 = vadd.f32 %v590, %v591
        %v593 = vsel %vm529, %v499, 0.0
        %v594 = vrot.slane %v593, 4
        %v595 = vadd.f32 %v593, %v594
        %v596 = vrot.slane %v595, 2
        %v597 = vadd.f32 %v595, %v596
        %v598 = vrot.slane %v597, 1
        %v599 = vadd.f32 %v597, %v598
        %v600 = vsel %vm529, %v500, 0.0
        %v601 = vrot.slane %v600, 4
        %v602 = vadd.f32 %v600, %v601
        %v603 = vrot.slane %v602, 2
        %v604 = vadd.f32 %v602, %v603
        %v605 = vrot.slane %v604, 1
        %v606 = vadd.f32 %v604, %v605
        %v607 = vsel %vm529, %v501, 0.0
        %v608 = vrot.slane %v607, 4
        %v609 = vadd.f32 %v607, %v608
        %v610 = vrot.slane %v609, 2
        %v611 = vadd.f32 %v609, %v610
        %v612 = vrot.slane %v611, 1
        %v613 = vadd.f32 %v611, %v612
        %v614 = vsel %vm529, %v502, 0.0
        %v615 = vrot.slane %v614, 4
        %v616 = vadd.f32 %v614, %v615
        %v617 = vrot.slane %v616, 2
        %v618 = vadd.f32 %v616, %v617
        %v619 = vrot.slane %v618, 1
        %v620 = vadd.f32 %v618, %v619
        %v621 = vsel %vm529, %v503, 0.0
        %v622 = vrot.slane %v621, 4
        %v623 = vadd.f32 %v621, %v622
        %v624 = vrot.slane %v623, 2
        %v625 = vadd.f32 %v623, %v624
        %v626 = vrot.slane %v625, 1
        %v627 = vadd.f32 %v625, %v626
        %v628 = vsel %vm529, %v504, 0.0
        %v629 = vrot.slane %v628, 4
        %v630 = vadd.f32 %v628, %v629
        %v631 = vrot.slane %v630, 2
        %v632 = vadd.f32 %v630, %v631
        %v633 = vrot.slane %v632, 1
        %v634 = vadd.f32 %v632, %v633
        %v635 = vsel %vm529, %v505, 0.0
        %v636 = vrot.slane %v635, 4
        %v637 = vadd.f32 %v635, %v636
        %v638 = vrot.slane %v637, 2
        %v639 = vadd.f32 %v637, %v638
        %v640 = vrot.slane %v639, 1
        %v641 = vadd.f32 %v639, %v640
        %v642 = vmul.f32 %v536, %v314
        %v643 = vmul.f32 %v543, %v315
        %v644 = vmul.f32 %v550, %v316
        %v645 = vmul.f32 %v557, %v317
        %v646 = vmul.f32 %v564, %v318
        %v647 = vmul.f32 %v571, %v319
        %v648 = vmul.f32 %v578, %v320
        %v649 = vmul.f32 %v585, %v321
        %v650 = vmul.f32 %v592, %v322
        %v651 = vmul.f32 %v599, %v323
        %v652 = vmul.f32 %v606, %v324
        %v653 = vmul.f32 %v613, %v325
        %v654 = vmul.f32 %v620, %v326
        %v655 = vmul.f32 %v627, %v327
        %v656 = vmul.f32 %v634, %v328
        %v657 = vmul.f32 %v641, %v329
        %v674 = vcombine.high %v642, %v643
        %v675 = vcombine.high %v644, %v645
        %v676 = vcombine.high %v646, %v647
        %v677 = vcombine.high %v648, %v649
        %v679 = vunpack.c.l.s4 1966171168
        %v680 = vunpack.c.0.s8 %v679
        %v681 = vlaneseq
        %v682 = vshrl.u32 %v681, 7
        %v683 = vsub.s32 %v680, %v682
        %v684 = vrot.slane %v674, %v683
        %v686 = vunpack.c.l.s4 1966171168
        %v687 = vunpack.c.0.s8 %v686
        %v688 = vlaneseq
        %v689 = vshrl.u32 %v688, 7
        %v690 = vsub.s32 %v687, %v689
        %v691 = vrot.slane %v675, %v690
        %v693 = vunpack.c.l.s4 1966171168
        %v694 = vunpack.c.0.s8 %v693
        %v695 = vlaneseq
        %v696 = vshrl.u32 %v695, 7
        %v697 = vsub.s32 %v694, %v696
        %v698 = vrot.slane %v676, %v697
        %v700 = vunpack.c.l.s4 1966171168
        %v701 = vunpack.c.0.s8 %v700
        %v702 = vlaneseq
        %v703 = vshrl.u32 %v702, 7
        %v704 = vsub.s32 %v701, %v703
        %v705 = vrot.slane %v677, %v704
        %v706 = vcombine.high %v684, %v691
        %v707 = vcombine.high %v698, %v705
        %v709 = vunpack.c.l.s4 1966171168
        %v710 = vunpack.c.0.s8 %v709
        %v711 = vlaneseq
        %v712 = vshrl.u32 %v711, 7
        %v713 = vsub.s32 %v710, %v712
        %v714 = vrot.slane %v706, %v713
        %v716 = vunpack.c.l.s4 1966171168
        %v717 = vunpack.c.0.s8 %v716
        %v718 = vlaneseq
        %v719 = vshrl.u32 %v718, 7
        %v720 = vsub.s32 %v717, %v719
        %v721 = vrot.slane %v707, %v720
        %v722 = vcombine.high %v714, %v721
        %v723 = vcombine.high %v650, %v651
        %v724 = vcombine.high %v652, %v653
        %v725 = vcombine.high %v654, %v655
        %v726 = vcombine.high %v656, %v657
        %v728 = vunpack.c.l.s4 1966171168
        %v729 = vunpack.c.0.s8 %v728
        %v730 = vlaneseq
        %v731 = vshrl.u32 %v730, 7
        %v732 = vsub.s32 %v729, %v731
        %v733 = vrot.slane %v723, %v732
        %v735 = vunpack.c.l.s4 1966171168
        %v736 = vunpack.c.0.s8 %v735
        %v737 = vlaneseq
        %v738 = vshrl.u32 %v737, 7
        %v739 = vsub.s32 %v736, %v738
        %v740 = vrot.slane %v724, %v739
        %v742 = vunpack.c.l.s4 1966171168
        %v743 = vunpack.c.0.s8 %v742
        %v744 = vlaneseq
        %v745 = vshrl.u32 %v744, 7
        %v746 = vsub.s32 %v743, %v745
        %v747 = vrot.slane %v725, %v746
        %v749 = vunpack.c.l.s4 1966171168
        %v750 = vunpack.c.0.s8 %v749
        %v751 = vlaneseq
        %v752 = vshrl.u32 %v751, 7
        %v753 = vsub.s32 %v750, %v752
        %v754 = vrot.slane %v726, %v753
        %v755 = vcombine.high %v733, %v740
        %v756 = vcombine.high %v747, %v754
        %v758 = vunpack.c.l.s4 1966171168
        %v759 = vunpack.c.0.s8 %v758
        %v760 = vlaneseq
        %v761 = vshrl.u32 %v760, 7
        %v762 = vsub.s32 %v759, %v761
        %v763 = vrot.slane %v755, %v762
        %v765 = vunpack.c.l.s4 1966171168
        %v766 = vunpack.c.0.s8 %v765
        %v767 = vlaneseq
        %v768 = vshrl.u32 %v767, 7
        %v769 = vsub.s32 %v766, %v768
        %v770 = vrot.slane %v756, %v769
        %v771 = vcombine.high %v763, %v770
        %v774 = vadd.f32 %v524, %v722
        %v775 = vadd.f32 %v528, %v771
        %776 = vst [vmem:[#allocation2] ss:$8 sm:$0xf] %v774
        %777 = vst [vmem:[#allocation2] ss:$8 sm:$0xf0] %v774
        %778 = vst [vmem:[%s525] ss:$8 sm:$0xf] %v775
        %779 = vst [vmem:[%s525] ss:$8 sm:$0xf0] %v775
        %s780 = scalar_lea.vmem [#allocation2], 1
        %v781 = vld [vmem:[%s780] ss:$8 sm:$0xf]
        %v782 = vld [vmem:[%s780] ss:$8 sm:$0xf0]
        %v783 = vor.u32 %v781, %v782
        %s784 = scalar_lea.vmem [#allocation2], 65
        %v785 = vld [vmem:[%s784] ss:$8 sm:$0xf]
        %v786 = vld [vmem:[%s784] ss:$8 sm:$0xf0]
        %v787 = vor.u32 %v785, %v786
        %v804 = vcombine.high %v314, %v315
        %v805 = vcombine.high %v316, %v317
        %v806 = vcombine.high %v318, %v319
        %v807 = vcombine.high %v320, %v321
        %v809 = vunpack.c.l.s4 1966171168
        %v810 = vunpack.c.0.s8 %v809
        %v811 = vlaneseq
        %v812 = vshrl.u32 %v811, 7
        %v813 = vsub.s32 %v810, %v812
        %v814 = vrot.slane %v804, %v813
        %v816 = vunpack.c.l.s4 1966171168
        %v817 = vunpack.c.0.s8 %v816
        %v818 = vlaneseq
        %v819 = vshrl.u32 %v818, 7
        %v820 = vsub.s32 %v817, %v819
        %v821 = vrot.slane %v805, %v820
        %v823 = vunpack.c.l.s4 1966171168
        %v824 = vunpack.c.0.s8 %v823
        %v825 = vlaneseq
        %v826 = vshrl.u32 %v825, 7
        %v827 = vsub.s32 %v824, %v826
        %v828 = vrot.slane %v806, %v827
        %v830 = vunpack.c.l.s4 1966171168
        %v831 = vunpack.c.0.s8 %v830
        %v832 = vlaneseq
        %v833 = vshrl.u32 %v832, 7
        %v834 = vsub.s32 %v831, %v833
        %v835 = vrot.slane %v807, %v834
        %v836 = vcombine.high %v814, %v821
        %v837 = vcombine.high %v828, %v835
        %v839 = vunpack.c.l.s4 1966171168
        %v840 = vunpack.c.0.s8 %v839
        %v841 = vlaneseq
        %v842 = vshrl.u32 %v841, 7
        %v843 = vsub.s32 %v840, %v842
        %v844 = vrot.slane %v836, %v843
        %v846 = vunpack.c.l.s4 1966171168
        %v847 = vunpack.c.0.s8 %v846
        %v848 = vlaneseq
        %v849 = vshrl.u32 %v848, 7
        %v850 = vsub.s32 %v847, %v849
        %v851 = vrot.slane %v837, %v850
        %v852 = vcombine.high %v844, %v851
        %v853 = vcombine.high %v322, %v323
        %v854 = vcombine.high %v324, %v325
        %v855 = vcombine.high %v326, %v327
        %v856 = vcombine.high %v328, %v329
        %v858 = vunpack.c.l.s4 1966171168
        %v859 = vunpack.c.0.s8 %v858
        %v860 = vlaneseq
        %v861 = vshrl.u32 %v860, 7
        %v862 = vsub.s32 %v859, %v861
        %v863 = vrot.slane %v853, %v862
        %v865 = vunpack.c.l.s4 1966171168
        %v866 = vunpack.c.0.s8 %v865
        %v867 = vlaneseq
        %v868 = vshrl.u32 %v867, 7
        %v869 = vsub.s32 %v866, %v868
        %v870 = vrot.slane %v854, %v869
        %v872 = vunpack.c.l.s4 1966171168
        %v873 = vunpack.c.0.s8 %v872
        %v874 = vlaneseq
        %v875 = vshrl.u32 %v874, 7
        %v876 = vsub.s32 %v873, %v875
        %v877 = vrot.slane %v855, %v876
        %v879 = vunpack.c.l.s4 1966171168
        %v880 = vunpack.c.0.s8 %v879
        %v881 = vlaneseq
        %v882 = vshrl.u32 %v881, 7
        %v883 = vsub.s32 %v880, %v882
        %v884 = vrot.slane %v856, %v883
        %v885 = vcombine.high %v863, %v870
        %v886 = vcombine.high %v877, %v884
        %v888 = vunpack.c.l.s4 1966171168
        %v889 = vunpack.c.0.s8 %v888
        %v890 = vlaneseq
        %v891 = vshrl.u32 %v890, 7
        %v892 = vsub.s32 %v889, %v891
        %v893 = vrot.slane %v885, %v892
        %v895 = vunpack.c.l.s4 1966171168
        %v896 = vunpack.c.0.s8 %v895
        %v897 = vlaneseq
        %v898 = vshrl.u32 %v897, 7
        %v899 = vsub.s32 %v896, %v898
        %v900 = vrot.slane %v886, %v899
        %v901 = vcombine.high %v893, %v900
        %v904 = vadd.f32 %v783, %v852
        %v905 = vadd.f32 %v787, %v901
        %906 = vst [vmem:[%s780] ss:$8 sm:$0xf] %v904
        %907 = vst [vmem:[%s780] ss:$8 sm:$0xf0] %v904
        %908 = vst [vmem:[%s784] ss:$8 sm:$0xf] %v905
        %909 = vst [vmem:[%s784] ss:$8 sm:$0xf0] %v905
        %s910 = scalar_lea.vmem [#allocation2], 2
        %v911 = vld [vmem:[%s910] ss:$8 sm:$0xf]
        %v912 = vld [vmem:[%s910] ss:$8 sm:$0xf0]
        %v913 = vor.u32 %v911, %v912
        %s914 = scalar_lea.vmem [#allocation2], 66
        %v915 = vld [vmem:[%s914] ss:$8 sm:$0xf]
        %v916 = vld [vmem:[%s914] ss:$8 sm:$0xf0]
        %v917 = vor.u32 %v915, %v916
        %v918 = vsel %vm529, %v506, 0.0
        %v919 = vrot.slane %v918, 4
        %v920 = vadd.f32 %v918, %v919
        %v921 = vrot.slane %v920, 2
        %v922 = vadd.f32 %v920, %v921
        %v923 = vrot.slane %v922, 1
        %v924 = vadd.f32 %v922, %v923
        %v925 = vsel %vm529, %v507, 0.0
        %v926 = vrot.slane %v925, 4
        %v927 = vadd.f32 %v925, %v926
        %v928 = vrot.slane %v927, 2
        %v929 = vadd.f32 %v927, %v928
        %v930 = vrot.slane %v929, 1
        %v931 = vadd.f32 %v929, %v930
        %v932 = vsel %vm529, %v508, 0.0
        %v933 = vrot.slane %v932, 4
        %v934 = vadd.f32 %v932, %v933
        %v935 = vrot.slane %v934, 2
        %v936 = vadd.f32 %v934, %v935
        %v937 = vrot.slane %v936, 1
        %v938 = vadd.f32 %v936, %v937
        %v939 = vsel %vm529, %v509, 0.0
        %v940 = vrot.slane %v939, 4
        %v941 = vadd.f32 %v939, %v940
        %v942 = vrot.slane %v941, 2
        %v943 = vadd.f32 %v941, %v942
        %v944 = vrot.slane %v943, 1
        %v945 = vadd.f32 %v943, %v944
        %v946 = vsel %vm529, %v510, 0.0
        %v947 = vrot.slane %v946, 4
        %v948 = vadd.f32 %v946, %v947
        %v949 = vrot.slane %v948, 2
        %v950 = vadd.f32 %v948, %v949
        %v951 = vrot.slane %v950, 1
        %v952 = vadd.f32 %v950, %v951
        %v953 = vsel %vm529, %v511, 0.0
        %v954 = vrot.slane %v953, 4
        %v955 = vadd.f32 %v953, %v954
        %v956 = vrot.slane %v955, 2
        %v957 = vadd.f32 %v955, %v956
        %v958 = vrot.slane %v957, 1
        %v959 = vadd.f32 %v957, %v958
        %v960 = vsel %vm529, %v512, 0.0
        %v961 = vrot.slane %v960, 4
        %v962 = vadd.f32 %v960, %v961
        %v963 = vrot.slane %v962, 2
        %v964 = vadd.f32 %v962, %v963
        %v965 = vrot.slane %v964, 1
        %v966 = vadd.f32 %v964, %v965
        %v967 = vsel %vm529, %v513, 0.0
        %v968 = vrot.slane %v967, 4
        %v969 = vadd.f32 %v967, %v968
        %v970 = vrot.slane %v969, 2
        %v971 = vadd.f32 %v969, %v970
        %v972 = vrot.slane %v971, 1
        %v973 = vadd.f32 %v971, %v972
        %v974 = vsel %vm529, %v514, 0.0
        %v975 = vrot.slane %v974, 4
        %v976 = vadd.f32 %v974, %v975
        %v977 = vrot.slane %v976, 2
        %v978 = vadd.f32 %v976, %v977
        %v979 = vrot.slane %v978, 1
        %v980 = vadd.f32 %v978, %v979
        %v981 = vsel %vm529, %v515, 0.0
        %v982 = vrot.slane %v981, 4
        %v983 = vadd.f32 %v981, %v982
        %v984 = vrot.slane %v983, 2
        %v985 = vadd.f32 %v983, %v984
        %v986 = vrot.slane %v985, 1
        %v987 = vadd.f32 %v985, %v986
        %v988 = vsel %vm529, %v516, 0.0
        %v989 = vrot.slane %v988, 4
        %v990 = vadd.f32 %v988, %v989
        %v991 = vrot.slane %v990, 2
        %v992 = vadd.f32 %v990, %v991
        %v993 = vrot.slane %v992, 1
        %v994 = vadd.f32 %v992, %v993
        %v995 = vsel %vm529, %v517, 0.0
        %v996 = vrot.slane %v995, 4
        %v997 = vadd.f32 %v995, %v996
        %v998 = vrot.slane %v997, 2
        %v999 = vadd.f32 %v997, %v998
        %v1000 = vrot.slane %v999, 1
        %v1001 = vadd.f32 %v999, %v1000
        %v1002 = vsel %vm529, %v518, 0.0
        %v1003 = vrot.slane %v1002, 4
        %v1004 = vadd.f32 %v1002, %v1003
        %v1005 = vrot.slane %v1004, 2
        %v1006 = vadd.f32 %v1004, %v1005
        %v1007 = vrot.slane %v1006, 1
        %v1008 = vadd.f32 %v1006, %v1007
        %v1009 = vsel %vm529, %v519, 0.0
        %v1010 = vrot.slane %v1009, 4
        %v1011 = vadd.f32 %v1009, %v1010
        %v1012 = vrot.slane %v1011, 2
        %v1013 = vadd.f32 %v1011, %v1012
        %v1014 = vrot.slane %v1013, 1
        %v1015 = vadd.f32 %v1013, %v1014
        %v1016 = vsel %vm529, %v520, 0.0
        %v1017 = vrot.slane %v1016, 4
        %v1018 = vadd.f32 %v1016, %v1017
        %v1019 = vrot.slane %v1018, 2
        %v1020 = vadd.f32 %v1018, %v1019
        %v1021 = vrot.slane %v1020, 1
        %v1022 = vadd.f32 %v1020, %v1021
        %v1023 = vsel %vm529, %v521, 0.0
        %v1024 = vrot.slane %v1023, 4
        %v1025 = vadd.f32 %v1023, %v1024
        %v1026 = vrot.slane %v1025, 2
        %v1027 = vadd.f32 %v1025, %v1026
        %v1028 = vrot.slane %v1027, 1
        %v1029 = vadd.f32 %v1027, %v1028
        %v1030 = vmul.f32 %v924, %v410
        %v1031 = vmul.f32 %v931, %v411
        %v1032 = vmul.f32 %v938, %v412
        %v1033 = vmul.f32 %v945, %v413
        %v1034 = vmul.f32 %v952, %v414
        %v1035 = vmul.f32 %v959, %v415
        %v1036 = vmul.f32 %v966, %v416
        %v1037 = vmul.f32 %v973, %v417
        %v1038 = vmul.f32 %v980, %v418
        %v1039 = vmul.f32 %v987, %v419
        %v1040 = vmul.f32 %v994, %v420
        %v1041 = vmul.f32 %v1001, %v421
        %v1042 = vmul.f32 %v1008, %v422
        %v1043 = vmul.f32 %v1015, %v423
        %v1044 = vmul.f32 %v1022, %v424
        %v1045 = vmul.f32 %v1029, %v425
        %v1062 = vcombine.high %v1030, %v1031
        %v1063 = vcombine.high %v1032, %v1033
        %v1064 = vcombine.high %v1034, %v1035
        %v1065 = vcombine.high %v1036, %v1037
        %v1067 = vunpack.c.l.s4 1966171168
        %v1068 = vunpack.c.0.s8 %v1067
        %v1069 = vlaneseq
        %v1070 = vshrl.u32 %v1069, 7
        %v1071 = vsub.s32 %v1068, %v1070
        %v1072 = vrot.slane %v1062, %v1071
        %v1074 = vunpack.c.l.s4 1966171168
        %v1075 = vunpack.c.0.s8 %v1074
        %v1076 = vlaneseq
        %v1077 = vshrl.u32 %v1076, 7
        %v1078 = vsub.s32 %v1075, %v1077
        %v1079 = vrot.slane %v1063, %v1078
        %v1081 = vunpack.c.l.s4 1966171168
        %v1082 = vunpack.c.0.s8 %v1081
        %v1083 = vlaneseq
        %v1084 = vshrl.u32 %v1083, 7
        %v1085 = vsub.s32 %v1082, %v1084
        %v1086 = vrot.slane %v1064, %v1085
        %v1088 = vunpack.c.l.s4 1966171168
        %v1089 = vunpack.c.0.s8 %v1088
        %v1090 = vlaneseq
        %v1091 = vshrl.u32 %v1090, 7
        %v1092 = vsub.s32 %v1089, %v1091
        %v1093 = vrot.slane %v1065, %v1092
        %v1094 = vcombine.low %v1072, %v1079
        %v1095 = vcombine.low %v1086, %v1093
        %v1097 = vunpack.c.l.s4 1966171168
        %v1098 = vunpack.c.0.s8 %v1097
        %v1099 = vlaneseq
        %v1100 = vshrl.u32 %v1099, 7
        %v1101 = vsub.s32 %v1098, %v1100
        %v1102 = vrot.slane %v1094, %v1101
        %v1104 = vunpack.c.l.s4 1966171168
        %v1105 = vunpack.c.0.s8 %v1104
        %v1106 = vlaneseq
        %v1107 = vshrl.u32 %v1106, 7
        %v1108 = vsub.s32 %v1105, %v1107
        %v1109 = vrot.slane %v1095, %v1108
        %v1110 = vcombine.high %v1102, %v1109
        %v1111 = vcombine.high %v1038, %v1039
        %v1112 = vcombine.high %v1040, %v1041
        %v1113 = vcombine.high %v1042, %v1043
        %v1114 = vcombine.high %v1044, %v1045
        %v1116 = vunpack.c.l.s4 1966171168
        %v1117 = vunpack.c.0.s8 %v1116
        %v1118 = vlaneseq
        %v1119 = vshrl.u32 %v1118, 7
        %v1120 = vsub.s32 %v1117, %v1119
        %v1121 = vrot.slane %v1111, %v1120
        %v1123 = vunpack.c.l.s4 1966171168
        %v1124 = vunpack.c.0.s8 %v1123
        %v1125 = vlaneseq
        %v1126 = vshrl.u32 %v1125, 7
        %v1127 = vsub.s32 %v1124, %v1126
        %v1128 = vrot.slane %v1112, %v1127
        %v1130 = vunpack.c.l.s4 1966171168
        %v1131 = vunpack.c.0.s8 %v1130
        %v1132 = vlaneseq
        %v1133 = vshrl.u32 %v1132, 7
        %v1134 = vsub.s32 %v1131, %v1133
        %v1135 = vrot.slane %v1113, %v1134
        %v1137 = vunpack.c.l.s4 1966171168
        %v1138 = vunpack.c.0.s8 %v1137
        %v1139 = vlaneseq
        %v1140 = vshrl.u32 %v1139, 7
        %v1141 = vsub.s32 %v1138, %v1140
        %v1142 = vrot.slane %v1114, %v1141
        %v1143 = vcombine.low %v1121, %v1128
        %v1144 = vcombine.low %v1135, %v1142
        %v1146 = vunpack.c.l.s4 1966171168
        %v1147 = vunpack.c.0.s8 %v1146
        %v1148 = vlaneseq
        %v1149 = vshrl.u32 %v1148, 7
        %v1150 = vsub.s32 %v1147, %v1149
        %v1151 = vrot.slane %v1143, %v1150
        %v1153 = vunpack.c.l.s4 1966171168
        %v1154 = vunpack.c.0.s8 %v1153
        %v1155 = vlaneseq
        %v1156 = vshrl.u32 %v1155, 7
        %v1157 = vsub.s32 %v1154, %v1156
        %v1158 = vrot.slane %v1144, %v1157
        %v1159 = vcombine.high %v1151, %v1158
        %v1162 = vadd.f32 %v913, %v1110
        %v1163 = vadd.f32 %v917, %v1159
        %1164 = vst [vmem:[%s910] ss:$8 sm:$0xf] %v1162
        %1165 = vst [vmem:[%s910] ss:$8 sm:$0xf0] %v1162
        %1166 = vst [vmem:[%s914] ss:$8 sm:$0xf] %v1163
        %1167 = vst [vmem:[%s914] ss:$8 sm:$0xf0] %v1163
        %s1168 = scalar_lea.vmem [#allocation2], 3
        %v1169 = vld [vmem:[%s1168] ss:$8 sm:$0xf]
        %v1170 = vld [vmem:[%s1168] ss:$8 sm:$0xf0]
        %v1171 = vor.u32 %v1169, %v1170
        %s1172 = scalar_lea.vmem [#allocation2], 67
        %v1173 = vld [vmem:[%s1172] ss:$8 sm:$0xf]
        %v1174 = vld [vmem:[%s1172] ss:$8 sm:$0xf0]
        %v1175 = vor.u32 %v1173, %v1174
        %v1192 = vcombine.high %v410, %v411
        %v1193 = vcombine.high %v412, %v413
        %v1194 = vcombine.high %v414, %v415
        %v1195 = vcombine.high %v416, %v417
        %v1197 = vunpack.c.l.s4 1966171168
        %v1198 = vunpack.c.0.s8 %v1197
        %v1199 = vlaneseq
        %v1200 = vshrl.u32 %v1199, 7
        %v1201 = vsub.s32 %v1198, %v1200
        %v1202 = vrot.slane %v1192, %v1201
        %v1204 = vunpack.c.l.s4 1966171168
        %v1205 = vunpack.c.0.s8 %v1204
        %v1206 = vlaneseq
        %v1207 = vshrl.u32 %v1206, 7
        %v1208 = vsub.s32 %v1205, %v1207
        %v1209 = vrot.slane %v1193, %v1208
        %v1211 = vunpack.c.l.s4 1966171168
        %v1212 = vunpack.c.0.s8 %v1211
        %v1213 = vlaneseq
        %v1214 = vshrl.u32 %v1213, 7
        %v1215 = vsub.s32 %v1212, %v1214
        %v1216 = vrot.slane %v1194, %v1215
        %v1218 = vunpack.c.l.s4 1966171168
        %v1219 = vunpack.c.0.s8 %v1218
        %v1220 = vlaneseq
        %v1221 = vshrl.u32 %v1220, 7
        %v1222 = vsub.s32 %v1219, %v1221
        %v1223 = vrot.slane %v1195, %v1222
        %v1224 = vcombine.low %v1202, %v1209
        %v1225 = vcombine.low %v1216, %v1223
        %v1227 = vunpack.c.l.s4 1966171168
        %v1228 = vunpack.c.0.s8 %v1227
        %v1229 = vlaneseq
        %v1230 = vshrl.u32 %v1229, 7
        %v1231 = vsub.s32 %v1228, %v1230
        %v1232 = vrot.slane %v1224, %v1231
        %v1234 = vunpack.c.l.s4 1966171168
        %v1235 = vunpack.c.0.s8 %v1234
        %v1236 = vlaneseq
        %v1237 = vshrl.u32 %v1236, 7
        %v1238 = vsub.s32 %v1235, %v1237
        %v1239 = vrot.slane %v1225, %v1238
        %v1240 = vcombine.high %v1232, %v1239
        %v1241 = vcombine.high %v418, %v419
        %v1242 = vcombine.high %v420, %v421
        %v1243 = vcombine.high %v422, %v423
        %v1244 = vcombine.high %v424, %v425
        %v1246 = vunpack.c.l.s4 1966171168
        %v1247 = vunpack.c.0.s8 %v1246
        %v1248 = vlaneseq
        %v1249 = vshrl.u32 %v1248, 7
        %v1250 = vsub.s32 %v1247, %v1249
        %v1251 = vrot.slane %v1241, %v1250
        %v1253 = vunpack.c.l.s4 1966171168
        %v1254 = vunpack.c.0.s8 %v1253
        %v1255 = vlaneseq
        %v1256 = vshrl.u32 %v1255, 7
        %v1257 = vsub.s32 %v1254, %v1256
        %v1258 = vrot.slane %v1242, %v1257
        %v1260 = vunpack.c.l.s4 1966171168
        %v1261 = vunpack.c.0.s8 %v1260
        %v1262 = vlaneseq
        %v1263 = vshrl.u32 %v1262, 7
        %v1264 = vsub.s32 %v1261, %v1263
        %v1265 = vrot.slane %v1243, %v1264
        %v1267 = vunpack.c.l.s4 1966171168
        %v1268 = vunpack.c.0.s8 %v1267
        %v1269 = vlaneseq
        %v1270 = vshrl.u32 %v1269, 7
        %v1271 = vsub.s32 %v1268, %v1270
        %v1272 = vrot.slane %v1244, %v1271
        %v1273 = vcombine.low %v1251, %v1258
        %v1274 = vcombine.low %v1265, %v1272
        %v1276 = vunpack.c.l.s4 1966171168
        %v1277 = vunpack.c.0.s8 %v1276
        %v1278 = vlaneseq
        %v1279 = vshrl.u32 %v1278, 7
        %v1280 = vsub.s32 %v1277, %v1279
        %v1281 = vrot.slane %v1273, %v1280
        %v1283 = vunpack.c.l.s4 1966171168
        %v1284 = vunpack.c.0.s8 %v1283
        %v1285 = vlaneseq
        %v1286 = vshrl.u32 %v1285, 7
        %v1287 = vsub.s32 %v1284, %v1286
        %v1288 = vrot.slane %v1274, %v1287
        %v1289 = vcombine.high %v1281, %v1288
        %v1292 = vadd.f32 %v1171, %v1240
        %v1293 = vadd.f32 %v1175, %v1289
        %1294 = vst [vmem:[%s1168] ss:$8 sm:$0xf] %v1292
        %1295 = vst [vmem:[%s1168] ss:$8 sm:$0xf0] %v1292
        %1296 = vst [vmem:[%s1172] ss:$8 sm:$0xf] %v1293
        %1297 = vst [vmem:[%s1172] ss:$8 sm:$0xf0] %v1293
        %v1298 = vmax.f32 %v199, 0.001
        %v1299 = vmax.f32 %v200, 0.001
        %v1300 = vmax.f32 %v201, 0.001
        %v1301 = vmax.f32 %v202, 0.001
        %v1302 = vmax.f32 %v203, 0.001
        %v1303 = vmax.f32 %v204, 0.001
        %v1304 = vmax.f32 %v205, 0.001
        %v1305 = vmax.f32 %v206, 0.001
        %v1306 = vmax.f32 %v207, 0.001
        %v1307 = vmax.f32 %v208, 0.001
        %v1308 = vmax.f32 %v209, 0.001
        %v1309 = vmax.f32 %v210, 0.001
        %v1310 = vmax.f32 %v211, 0.001
        %v1311 = vmax.f32 %v212, 0.001
        %v1312 = vmax.f32 %v213, 0.001
        %v1313 = vmax.f32 %v214, 0.001
        %v1314 = vmin.f32 %v1298, 0.9999
        %v1315 = vmin.f32 %v1299, 0.9999
        %v1316 = vmin.f32 %v1300, 0.9999
        %v1317 = vmin.f32 %v1301, 0.9999
        %v1318 = vmin.f32 %v1302, 0.9999
        %v1319 = vmin.f32 %v1303, 0.9999
        %v1320 = vmin.f32 %v1304, 0.9999
        %v1321 = vmin.f32 %v1305, 0.9999
        %v1322 = vmin.f32 %v1306, 0.9999
        %v1323 = vmin.f32 %v1307, 0.9999
        %v1324 = vmin.f32 %v1308, 0.9999
        %v1325 = vmin.f32 %v1309, 0.9999
        %v1326 = vmin.f32 %v1310, 0.9999
        %v1327 = vmin.f32 %v1311, 0.9999
        %v1328 = vmin.f32 %v1312, 0.9999
        %v1329 = vmin.f32 %v1313, 0.9999
        %v1330 = vlog2.pop %v1314
        %v1331 = vmul.f32 %v1330, 0.6931472
        %v1332 = vlog2.pop %v1315
        %v1333 = vmul.f32 %v1332, 0.6931472
        %v1334 = vlog2.pop %v1316
        %v1335 = vmul.f32 %v1334, 0.6931472
        %v1336 = vlog2.pop %v1317
        %v1337 = vmul.f32 %v1336, 0.6931472
        %v1338 = vlog2.pop %v1318
        %v1339 = vmul.f32 %v1338, 0.6931472
        %v1340 = vlog2.pop %v1319
        %v1341 = vmul.f32 %v1340, 0.6931472
        %v1342 = vlog2.pop %v1320
        %v1343 = vmul.f32 %v1342, 0.6931472
        %v1344 = vlog2.pop %v1321
        %v1345 = vmul.f32 %v1344, 0.6931472
        %v1346 = vlog2.pop %v1322
        %v1347 = vmul.f32 %v1346, 0.6931472
        %v1348 = vlog2.pop %v1323
        %v1349 = vmul.f32 %v1348, 0.6931472
        %v1350 = vlog2.pop %v1324
        %v1351 = vmul.f32 %v1350, 0.6931472
        %v1352 = vlog2.pop %v1325
        %v1353 = vmul.f32 %v1352, 0.6931472
        %v1354 = vlog2.pop %v1326
        %v1355 = vmul.f32 %v1354, 0.6931472
        %v1356 = vlog2.pop %v1327
        %v1357 = vmul.f32 %v1356, 0.6931472
        %v1358 = vlog2.pop %v1328
        %v1359 = vmul.f32 %v1358, 0.6931472
        %v1360 = vlog2.pop %v1329
        %v1361 = vmul.f32 %v1360, 0.6931472
        %v1378 = vrot.slane %v1331, 2
        %v1379 = vrot.slane %v1333, 2
        %v1380 = vrot.slane %v1335, 2
        %v1381 = vrot.slane %v1337, 2
        %v1382 = vrot.slane %v1339, 2
        %v1383 = vrot.slane %v1341, 2
        %v1384 = vrot.slane %v1343, 2
        %v1385 = vrot.slane %v1345, 2
        %v1386 = vrot.slane %v1347, 2
        %v1387 = vrot.slane %v1349, 2
        %v1388 = vrot.slane %v1351, 2
        %v1389 = vrot.slane %v1353, 2
        %v1390 = vrot.slane %v1355, 2
        %v1391 = vrot.slane %v1357, 2
        %v1392 = vrot.slane %v1359, 2
        %v1393 = vrot.slane %v1361, 2
        %v1410 = vmul.f32 %v183, %v1378
        %v1411 = vmul.f32 %v184, %v1379
        %v1412 = vmul.f32 %v185, %v1380
        %v1413 = vmul.f32 %v186, %v1381
        %v1414 = vmul.f32 %v187, %v1382
        %v1415 = vmul.f32 %v188, %v1383
        %v1416 = vmul.f32 %v189, %v1384
        %v1417 = vmul.f32 %v190, %v1385
        %v1418 = vmul.f32 %v191, %v1386
        %v1419 = vmul.f32 %v192, %v1387
        %v1420 = vmul.f32 %v193, %v1388
        %v1421 = vmul.f32 %v194, %v1389
        %v1422 = vmul.f32 %v195, %v1390
        %v1423 = vmul.f32 %v196, %v1391
        %v1424 = vmul.f32 %v197, %v1392
        %v1425 = vmul.f32 %v198, %v1393
        %v1426 = vsub.f32 1.0, %v183
        %v1427 = vsub.f32 1.0, %v184
        %v1428 = vsub.f32 1.0, %v185
        %v1429 = vsub.f32 1.0, %v186
        %v1430 = vsub.f32 1.0, %v187
        %v1431 = vsub.f32 1.0, %v188
        %v1432 = vsub.f32 1.0, %v189
        %v1433 = vsub.f32 1.0, %v190
        %v1434 = vsub.f32 1.0, %v191
        %v1435 = vsub.f32 1.0, %v192
        %v1436 = vsub.f32 1.0, %v193
        %v1437 = vsub.f32 1.0, %v194
        %v1438 = vsub.f32 1.0, %v195
        %v1439 = vsub.f32 1.0, %v196
        %v1440 = vsub.f32 1.0, %v197
        %v1441 = vsub.f32 1.0, %v198
        %v1442 = vsub.f32 1.0, %v1314
        %v1443 = vsub.f32 1.0, %v1315
        %v1444 = vsub.f32 1.0, %v1316
        %v1445 = vsub.f32 1.0, %v1317
        %v1446 = vsub.f32 1.0, %v1318
        %v1447 = vsub.f32 1.0, %v1319
        %v1448 = vsub.f32 1.0, %v1320
        %v1449 = vsub.f32 1.0, %v1321
        %v1450 = vsub.f32 1.0, %v1322
        %v1451 = vsub.f32 1.0, %v1323
        %v1452 = vsub.f32 1.0, %v1324
        %v1453 = vsub.f32 1.0, %v1325
        %v1454 = vsub.f32 1.0, %v1326
        %v1455 = vsub.f32 1.0, %v1327
        %v1456 = vsub.f32 1.0, %v1328
        %v1457 = vsub.f32 1.0, %v1329
        %v1458 = vlog2.pop %v1442
        %v1459 = vmul.f32 %v1458, 0.6931472
        %v1460 = vlog2.pop %v1443
        %v1461 = vmul.f32 %v1460, 0.6931472
        %v1462 = vlog2.pop %v1444
        %v1463 = vmul.f32 %v1462, 0.6931472
        %v1464 = vlog2.pop %v1445
        %v1465 = vmul.f32 %v1464, 0.6931472
        %v1466 = vlog2.pop %v1446
        %v1467 = vmul.f32 %v1466, 0.6931472
        %v1468 = vlog2.pop %v1447
        %v1469 = vmul.f32 %v1468, 0.6931472
        %v1470 = vlog2.pop %v1448
        %v1471 = vmul.f32 %v1470, 0.6931472
        %v1472 = vlog2.pop %v1449
        %v1473 = vmul.f32 %v1472, 0.6931472
        %v1474 = vlog2.pop %v1450
        %v1475 = vmul.f32 %v1474, 0.6931472
        %v1476 = vlog2.pop %v1451
        %v1477 = vmul.f32 %v1476, 0.6931472
        %v1478 = vlog2.pop %v1452
        %v1479 = vmul.f32 %v1478, 0.6931472
        %v1480 = vlog2.pop %v1453
        %v1481 = vmul.f32 %v1480, 0.6931472
        %v1482 = vlog2.pop %v1454
        %v1483 = vmul.f32 %v1482, 0.6931472
        %v1484 = vlog2.pop %v1455
        %v1485 = vmul.f32 %v1484, 0.6931472
        %v1486 = vlog2.pop %v1456
        %v1487 = vmul.f32 %v1486, 0.6931472
        %v1488 = vlog2.pop %v1457
        %v1489 = vmul.f32 %v1488, 0.6931472
        %v1506 = vrot.slane %v1459, 2
        %v1507 = vrot.slane %v1461, 2
        %v1508 = vrot.slane %v1463, 2
        %v1509 = vrot.slane %v1465, 2
        %v1510 = vrot.slane %v1467, 2
        %v1511 = vrot.slane %v1469, 2
        %v1512 = vrot.slane %v1471, 2
        %v1513 = vrot.slane %v1473, 2
        %v1514 = vrot.slane %v1475, 2
        %v1515 = vrot.slane %v1477, 2
        %v1516 = vrot.slane %v1479, 2
        %v1517 = vrot.slane %v1481, 2
        %v1518 = vrot.slane %v1483, 2
        %v1519 = vrot.slane %v1485, 2
        %v1520 = vrot.slane %v1487, 2
        %v1521 = vrot.slane %v1489, 2
        %v1538 = vmul.f32 %v1426, %v1506
        %v1539 = vmul.f32 %v1427, %v1507
        %v1540 = vmul.f32 %v1428, %v1508
        %v1541 = vmul.f32 %v1429, %v1509
        %v1542 = vmul.f32 %v1430, %v1510
        %v1543 = vmul.f32 %v1431, %v1511
        %v1544 = vmul.f32 %v1432, %v1512
        %v1545 = vmul.f32 %v1433, %v1513
        %v1546 = vmul.f32 %v1434, %v1514
        %v1547 = vmul.f32 %v1435, %v1515
        %v1548 = vmul.f32 %v1436, %v1516
        %v1549 = vmul.f32 %v1437, %v1517
        %v1550 = vmul.f32 %v1438, %v1518
        %v1551 = vmul.f32 %v1439, %v1519
        %v1552 = vmul.f32 %v1440, %v1520
        %v1553 = vmul.f32 %v1441, %v1521
        %v1554 = vadd.f32 %v1410, %v1538
        %v1555 = vadd.f32 %v1411, %v1539
        %v1556 = vadd.f32 %v1412, %v1540
        %v1557 = vadd.f32 %v1413, %v1541
        %v1558 = vadd.f32 %v1414, %v1542
        %v1559 = vadd.f32 %v1415, %v1543
        %v1560 = vadd.f32 %v1416, %v1544
        %v1561 = vadd.f32 %v1417, %v1545
        %v1562 = vadd.f32 %v1418, %v1546
        %v1563 = vadd.f32 %v1419, %v1547
        %v1564 = vadd.f32 %v1420, %v1548
        %v1565 = vadd.f32 %v1421, %v1549
        %v1566 = vadd.f32 %v1422, %v1550
        %v1567 = vadd.f32 %v1423, %v1551
        %v1568 = vadd.f32 %v1424, %v1552
        %v1569 = vadd.f32 %v1425, %v1553
        %v1570 = vsub.f32 0.0, %v1554
        %v1571 = vsub.f32 0.0, %v1555
        %v1572 = vsub.f32 0.0, %v1556
        %v1573 = vsub.f32 0.0, %v1557
        %v1574 = vsub.f32 0.0, %v1558
        %v1575 = vsub.f32 0.0, %v1559
        %v1576 = vsub.f32 0.0, %v1560
        %v1577 = vsub.f32 0.0, %v1561
        %v1578 = vsub.f32 0.0, %v1562
        %v1579 = vsub.f32 0.0, %v1563
        %v1580 = vsub.f32 0.0, %v1564
        %v1581 = vsub.f32 0.0, %v1565
        %v1582 = vsub.f32 0.0, %v1566
        %v1583 = vsub.f32 0.0, %v1567
        %v1584 = vsub.f32 0.0, %v1568
        %v1585 = vsub.f32 0.0, %v1569
        %s1586 = scalar_lea.vmem [#allocation2], 4
        %v1587 = vld [vmem:[%s1586] ss:$8 sm:$0xf]
        %v1588 = vld [vmem:[%s1586] ss:$8 sm:$0xf0]
        %v1589 = vor.u32 %v1587, %v1588
        %s1590 = scalar_lea.vmem [#allocation2], 68
        %v1591 = vld [vmem:[%s1590] ss:$8 sm:$0xf]
        %v1592 = vld [vmem:[%s1590] ss:$8 sm:$0xf0]
        %v1593 = vor.u32 %v1591, %v1592
        %v1594 = vmul.f32 %v1570, %v298
        %v1595 = vmul.f32 %v1571, %v299
        %v1596 = vmul.f32 %v1572, %v300
        %v1597 = vmul.f32 %v1573, %v301
        %v1598 = vmul.f32 %v1574, %v302
        %v1599 = vmul.f32 %v1575, %v303
        %v1600 = vmul.f32 %v1576, %v304
        %v1601 = vmul.f32 %v1577, %v305
        %v1602 = vmul.f32 %v1578, %v306
        %v1603 = vmul.f32 %v1579, %v307
        %v1604 = vmul.f32 %v1580, %v308
        %v1605 = vmul.f32 %v1581, %v309
        %v1606 = vmul.f32 %v1582, %v310
        %v1607 = vmul.f32 %v1583, %v311
        %v1608 = vmul.f32 %v1584, %v312
        %v1609 = vmul.f32 %v1585, %v313
        %v1626 = vcombine.high %v1594, %v1595
        %v1627 = vcombine.high %v1596, %v1597
        %v1628 = vcombine.high %v1598, %v1599
        %v1629 = vcombine.high %v1600, %v1601
        %v1631 = vunpack.c.l.s4 1966171168
        %v1632 = vunpack.c.0.s8 %v1631
        %v1633 = vlaneseq
        %v1634 = vshrl.u32 %v1633, 7
        %v1635 = vsub.s32 %v1632, %v1634
        %v1636 = vrot.slane %v1626, %v1635
        %v1638 = vunpack.c.l.s4 1966171168
        %v1639 = vunpack.c.0.s8 %v1638
        %v1640 = vlaneseq
        %v1641 = vshrl.u32 %v1640, 7
        %v1642 = vsub.s32 %v1639, %v1641
        %v1643 = vrot.slane %v1627, %v1642
        %v1645 = vunpack.c.l.s4 1966171168
        %v1646 = vunpack.c.0.s8 %v1645
        %v1647 = vlaneseq
        %v1648 = vshrl.u32 %v1647, 7
        %v1649 = vsub.s32 %v1646, %v1648
        %v1650 = vrot.slane %v1628, %v1649
        %v1652 = vunpack.c.l.s4 1966171168
        %v1653 = vunpack.c.0.s8 %v1652
        %v1654 = vlaneseq
        %v1655 = vshrl.u32 %v1654, 7
        %v1656 = vsub.s32 %v1653, %v1655
        %v1657 = vrot.slane %v1629, %v1656
        %v1658 = vcombine.low %v1636, %v1643
        %v1659 = vcombine.low %v1650, %v1657
        %v1661 = vunpack.c.l.s4 1966171168
        %v1662 = vunpack.c.0.s8 %v1661
        %v1663 = vlaneseq
        %v1664 = vshrl.u32 %v1663, 7
        %v1665 = vsub.s32 %v1662, %v1664
        %v1666 = vrot.slane %v1658, %v1665
        %v1668 = vunpack.c.l.s4 1966171168
        %v1669 = vunpack.c.0.s8 %v1668
        %v1670 = vlaneseq
        %v1671 = vshrl.u32 %v1670, 7
        %v1672 = vsub.s32 %v1669, %v1671
        %v1673 = vrot.slane %v1659, %v1672
        %v1674 = vcombine.high %v1666, %v1673
        %v1675 = vcombine.high %v1602, %v1603
        %v1676 = vcombine.high %v1604, %v1605
        %v1677 = vcombine.high %v1606, %v1607
        %v1678 = vcombine.high %v1608, %v1609
        %v1680 = vunpack.c.l.s4 1966171168
        %v1681 = vunpack.c.0.s8 %v1680
        %v1682 = vlaneseq
        %v1683 = vshrl.u32 %v1682, 7
        %v1684 = vsub.s32 %v1681, %v1683
        %v1685 = vrot.slane %v1675, %v1684
        %v1687 = vunpack.c.l.s4 1966171168
        %v1688 = vunpack.c.0.s8 %v1687
        %v1689 = vlaneseq
        %v1690 = vshrl.u32 %v1689, 7
        %v1691 = vsub.s32 %v1688, %v1690
        %v1692 = vrot.slane %v1676, %v1691
        %v1694 = vunpack.c.l.s4 1966171168
        %v1695 = vunpack.c.0.s8 %v1694
        %v1696 = vlaneseq
        %v1697 = vshrl.u32 %v1696, 7
        %v1698 = vsub.s32 %v1695, %v1697
        %v1699 = vrot.slane %v1677, %v1698
        %v1701 = vunpack.c.l.s4 1966171168
        %v1702 = vunpack.c.0.s8 %v1701
        %v1703 = vlaneseq
        %v1704 = vshrl.u32 %v1703, 7
        %v1705 = vsub.s32 %v1702, %v1704
        %v1706 = vrot.slane %v1678, %v1705
        %v1707 = vcombine.low %v1685, %v1692
        %v1708 = vcombine.low %v1699, %v1706
        %v1710 = vunpack.c.l.s4 1966171168
        %v1711 = vunpack.c.0.s8 %v1710
        %v1712 = vlaneseq
        %v1713 = vshrl.u32 %v1712, 7
        %v1714 = vsub.s32 %v1711, %v1713
        %v1715 = vrot.slane %v1707, %v1714
        %v1717 = vunpack.c.l.s4 1966171168
        %v1718 = vunpack.c.0.s8 %v1717
        %v1719 = vlaneseq
        %v1720 = vshrl.u32 %v1719, 7
        %v1721 = vsub.s32 %v1718, %v1720
        %v1722 = vrot.slane %v1708, %v1721
        %v1723 = vcombine.high %v1715, %v1722
        %v1726 = vadd.f32 %v1589, %v1674
        %v1727 = vadd.f32 %v1593, %v1723
        %1728 = vst [vmem:[%s1586] ss:$8 sm:$0xf] %v1726
        %1729 = vst [vmem:[%s1586] ss:$8 sm:$0xf0] %v1726
        %1730 = vst [vmem:[%s1590] ss:$8 sm:$0xf] %v1727
        %1731 = vst [vmem:[%s1590] ss:$8 sm:$0xf0] %v1727
        %v1748 = vrot.slane %v199, 2
        %v1749 = vrot.slane %v200, 2
        %v1750 = vrot.slane %v201, 2
        %v1751 = vrot.slane %v202, 2
        %v1752 = vrot.slane %v203, 2
        %v1753 = vrot.slane %v204, 2
        %v1754 = vrot.slane %v205, 2
        %v1755 = vrot.slane %v206, 2
        %v1756 = vrot.slane %v207, 2
        %v1757 = vrot.slane %v208, 2
        %v1758 = vrot.slane %v209, 2
        %v1759 = vrot.slane %v210, 2
        %v1760 = vrot.slane %v211, 2
        %v1761 = vrot.slane %v212, 2
        %v1762 = vrot.slane %v213, 2
        %v1763 = vrot.slane %v214, 2
        %v1780 = vmul.f32 %v199, %v1748
        %v1781 = vmul.f32 %v200, %v1749
        %v1782 = vmul.f32 %v201, %v1750
        %v1783 = vmul.f32 %v202, %v1751
        %v1784 = vmul.f32 %v203, %v1752
        %v1785 = vmul.f32 %v204, %v1753
        %v1786 = vmul.f32 %v205, %v1754
        %v1787 = vmul.f32 %v206, %v1755
        %v1788 = vmul.f32 %v207, %v1756
        %v1789 = vmul.f32 %v208, %v1757
        %v1790 = vmul.f32 %v209, %v1758
        %v1791 = vmul.f32 %v210, %v1759
        %v1792 = vmul.f32 %v211, %v1760
        %v1793 = vmul.f32 %v212, %v1761
        %v1794 = vmul.f32 %v213, %v1762
        %v1795 = vmul.f32 %v214, %v1763
        %v1796 = vmul.f32 %v215, %v1748
        %v1797 = vmul.f32 %v216, %v1749
        %v1798 = vmul.f32 %v217, %v1750
        %v1799 = vmul.f32 %v218, %v1751
        %v1800 = vmul.f32 %v219, %v1752
        %v1801 = vmul.f32 %v220, %v1753
        %v1802 = vmul.f32 %v221, %v1754
        %v1803 = vmul.f32 %v222, %v1755
        %v1804 = vmul.f32 %v223, %v1756
        %v1805 = vmul.f32 %v224, %v1757
        %v1806 = vmul.f32 %v225, %v1758
        %v1807 = vmul.f32 %v226, %v1759
        %v1808 = vmul.f32 %v227, %v1760
        %v1809 = vmul.f32 %v228, %v1761
        %v1810 = vmul.f32 %v229, %v1762
        %v1811 = vmul.f32 %v230, %v1763
        %v1828 = vrot.slane %v1796, 1
        %v1829 = vrot.slane %v1797, 1
        %v1830 = vrot.slane %v1798, 1
        %v1831 = vrot.slane %v1799, 1
        %v1832 = vrot.slane %v1800, 1
        %v1833 = vrot.slane %v1801, 1
        %v1834 = vrot.slane %v1802, 1
        %v1835 = vrot.slane %v1803, 1
        %v1836 = vrot.slane %v1804, 1
        %v1837 = vrot.slane %v1805, 1
        %v1838 = vrot.slane %v1806, 1
        %v1839 = vrot.slane %v1807, 1
        %v1840 = vrot.slane %v1808, 1
        %v1841 = vrot.slane %v1809, 1
        %v1842 = vrot.slane %v1810, 1
        %v1843 = vrot.slane %v1811, 1
        %v1860 = vadd.f32 %v1780, %v1828
        %v1861 = vadd.f32 %v1781, %v1829
        %v1862 = vadd.f32 %v1782, %v1830
        %v1863 = vadd.f32 %v1783, %v1831
        %v1864 = vadd.f32 %v1784, %v1832
        %v1865 = vadd.f32 %v1785, %v1833
        %v1866 = vadd.f32 %v1786, %v1834
        %v1867 = vadd.f32 %v1787, %v1835
        %v1868 = vadd.f32 %v1788, %v1836
        %v1869 = vadd.f32 %v1789, %v1837
        %v1870 = vadd.f32 %v1790, %v1838
        %v1871 = vadd.f32 %v1791, %v1839
        %v1872 = vadd.f32 %v1792, %v1840
        %v1873 = vadd.f32 %v1793, %v1841
        %v1874 = vadd.f32 %v1794, %v1842
        %v1875 = vadd.f32 %v1795, %v1843
        %v1876 = vrot.slane %v1796, 2
        %v1877 = vrot.slane %v1797, 2
        %v1878 = vrot.slane %v1798, 2
        %v1879 = vrot.slane %v1799, 2
        %v1880 = vrot.slane %v1800, 2
        %v1881 = vrot.slane %v1801, 2
        %v1882 = vrot.slane %v1802, 2
        %v1883 = vrot.slane %v1803, 2
        %v1884 = vrot.slane %v1804, 2
        %v1885 = vrot.slane %v1805, 2
        %v1886 = vrot.slane %v1806, 2
        %v1887 = vrot.slane %v1807, 2
        %v1888 = vrot.slane %v1808, 2
        %v1889 = vrot.slane %v1809, 2
        %v1890 = vrot.slane %v1810, 2
        %v1891 = vrot.slane %v1811, 2
        %v1908 = vadd.f32 %v1860, %v1876
        %v1909 = vadd.f32 %v1861, %v1877
        %v1910 = vadd.f32 %v1862, %v1878
        %v1911 = vadd.f32 %v1863, %v1879
        %v1912 = vadd.f32 %v1864, %v1880
        %v1913 = vadd.f32 %v1865, %v1881
        %v1914 = vadd.f32 %v1866, %v1882
        %v1915 = vadd.f32 %v1867, %v1883
        %v1916 = vadd.f32 %v1868, %v1884
        %v1917 = vadd.f32 %v1869, %v1885
        %v1918 = vadd.f32 %v1870, %v1886
        %v1919 = vadd.f32 %v1871, %v1887
        %v1920 = vadd.f32 %v1872, %v1888
        %v1921 = vadd.f32 %v1873, %v1889
        %v1922 = vadd.f32 %v1874, %v1890
        %v1923 = vadd.f32 %v1875, %v1891
        %v1924 = vrot.slane %v199, 7
        %v1925 = vrot.slane %v200, 7
        %v1926 = vrot.slane %v201, 7
        %v1927 = vrot.slane %v202, 7
        %v1928 = vrot.slane %v203, 7
        %v1929 = vrot.slane %v204, 7
        %v1930 = vrot.slane %v205, 7
        %v1931 = vrot.slane %v206, 7
        %v1932 = vrot.slane %v207, 7
        %v1933 = vrot.slane %v208, 7
        %v1934 = vrot.slane %v209, 7
        %v1935 = vrot.slane %v210, 7
        %v1936 = vrot.slane %v211, 7
        %v1937 = vrot.slane %v212, 7
        %v1938 = vrot.slane %v213, 7
        %v1939 = vrot.slane %v214, 7
        %v1956 = vmul.f32 %v215, %v1924
        %v1957 = vmul.f32 %v216, %v1925
        %v1958 = vmul.f32 %v217, %v1926
        %v1959 = vmul.f32 %v218, %v1927
        %v1960 = vmul.f32 %v219, %v1928
        %v1961 = vmul.f32 %v220, %v1929
        %v1962 = vmul.f32 %v221, %v1930
        %v1963 = vmul.f32 %v222, %v1931
        %v1964 = vmul.f32 %v223, %v1932
        %v1965 = vmul.f32 %v224, %v1933
        %v1966 = vmul.f32 %v225, %v1934
        %v1967 = vmul.f32 %v226, %v1935
        %v1968 = vmul.f32 %v227, %v1936
        %v1969 = vmul.f32 %v228, %v1937
        %v1970 = vmul.f32 %v229, %v1938
        %v1971 = vmul.f32 %v230, %v1939
        %v1988 = vrot.slane %v1956, 1
        %v1989 = vrot.slane %v1957, 1
        %v1990 = vrot.slane %v1958, 1
        %v1991 = vrot.slane %v1959, 1
        %v1992 = vrot.slane %v1960, 1
        %v1993 = vrot.slane %v1961, 1
        %v1994 = vrot.slane %v1962, 1
        %v1995 = vrot.slane %v1963, 1
        %v1996 = vrot.slane %v1964, 1
        %v1997 = vrot.slane %v1965, 1
        %v1998 = vrot.slane %v1966, 1
        %v1999 = vrot.slane %v1967, 1
        %v2000 = vrot.slane %v1968, 1
        %v2001 = vrot.slane %v1969, 1
        %v2002 = vrot.slane %v1970, 1
        %v2003 = vrot.slane %v1971, 1
        %v2020 = vadd.f32 %v1956, %v1988
        %v2021 = vadd.f32 %v1957, %v1989
        %v2022 = vadd.f32 %v1958, %v1990
        %v2023 = vadd.f32 %v1959, %v1991
        %v2024 = vadd.f32 %v1960, %v1992
        %v2025 = vadd.f32 %v1961, %v1993
        %v2026 = vadd.f32 %v1962, %v1994
        %v2027 = vadd.f32 %v1963, %v1995
        %v2028 = vadd.f32 %v1964, %v1996
        %v2029 = vadd.f32 %v1965, %v1997
        %v2030 = vadd.f32 %v1966, %v1998
        %v2031 = vadd.f32 %v1967, %v1999
        %v2032 = vadd.f32 %v1968, %v2000
        %v2033 = vadd.f32 %v1969, %v2001
        %v2034 = vadd.f32 %v1970, %v2002
        %v2035 = vadd.f32 %v1971, %v2003
        %v2036 = vrot.slane %v1956, 2
        %v2037 = vrot.slane %v1957, 2
        %v2038 = vrot.slane %v1958, 2
        %v2039 = vrot.slane %v1959, 2
        %v2040 = vrot.slane %v1960, 2
        %v2041 = vrot.slane %v1961, 2
        %v2042 = vrot.slane %v1962, 2
        %v2043 = vrot.slane %v1963, 2
        %v2044 = vrot.slane %v1964, 2
        %v2045 = vrot.slane %v1965, 2
        %v2046 = vrot.slane %v1966, 2
        %v2047 = vrot.slane %v1967, 2
        %v2048 = vrot.slane %v1968, 2
        %v2049 = vrot.slane %v1969, 2
        %v2050 = vrot.slane %v1970, 2
        %v2051 = vrot.slane %v1971, 2
        %v2068 = vadd.f32 %v2020, %v2036
        %v2069 = vadd.f32 %v2021, %v2037
        %v2070 = vadd.f32 %v2022, %v2038
        %v2071 = vadd.f32 %v2023, %v2039
        %v2072 = vadd.f32 %v2024, %v2040
        %v2073 = vadd.f32 %v2025, %v2041
        %v2074 = vadd.f32 %v2026, %v2042
        %v2075 = vadd.f32 %v2027, %v2043
        %v2076 = vadd.f32 %v2028, %v2044
        %v2077 = vadd.f32 %v2029, %v2045
        %v2078 = vadd.f32 %v2030, %v2046
        %v2079 = vadd.f32 %v2031, %v2047
        %v2080 = vadd.f32 %v2032, %v2048
        %v2081 = vadd.f32 %v2033, %v2049
        %v2082 = vadd.f32 %v2034, %v2050
        %v2083 = vadd.f32 %v2035, %v2051
        %v2084 = vrot.slane %v199, 4
        %v2085 = vrot.slane %v200, 4
        %v2086 = vrot.slane %v201, 4
        %v2087 = vrot.slane %v202, 4
        %v2088 = vrot.slane %v203, 4
        %v2089 = vrot.slane %v204, 4
        %v2090 = vrot.slane %v205, 4
        %v2091 = vrot.slane %v206, 4
        %v2092 = vrot.slane %v207, 4
        %v2093 = vrot.slane %v208, 4
        %v2094 = vrot.slane %v209, 4
        %v2095 = vrot.slane %v210, 4
        %v2096 = vrot.slane %v211, 4
        %v2097 = vrot.slane %v212, 4
        %v2098 = vrot.slane %v213, 4
        %v2099 = vrot.slane %v214, 4
        %v2116 = vmul.f32 %v215, %v2084
        %v2117 = vmul.f32 %v216, %v2085
        %v2118 = vmul.f32 %v217, %v2086
        %v2119 = vmul.f32 %v218, %v2087
        %v2120 = vmul.f32 %v219, %v2088
        %v2121 = vmul.f32 %v220, %v2089
        %v2122 = vmul.f32 %v221, %v2090
        %v2123 = vmul.f32 %v222, %v2091
        %v2124 = vmul.f32 %v223, %v2092
        %v2125 = vmul.f32 %v224, %v2093
        %v2126 = vmul.f32 %v225, %v2094
        %v2127 = vmul.f32 %v226, %v2095
        %v2128 = vmul.f32 %v227, %v2096
        %v2129 = vmul.f32 %v228, %v2097
        %v2130 = vmul.f32 %v229, %v2098
        %v2131 = vmul.f32 %v230, %v2099
        %v2148 = vrot.slane %v2116, 1
        %v2149 = vrot.slane %v2117, 1
        %v2150 = vrot.slane %v2118, 1
        %v2151 = vrot.slane %v2119, 1
        %v2152 = vrot.slane %v2120, 1
        %v2153 = vrot.slane %v2121, 1
        %v2154 = vrot.slane %v2122, 1
        %v2155 = vrot.slane %v2123, 1
        %v2156 = vrot.slane %v2124, 1
        %v2157 = vrot.slane %v2125, 1
        %v2158 = vrot.slane %v2126, 1
        %v2159 = vrot.slane %v2127, 1
        %v2160 = vrot.slane %v2128, 1
        %v2161 = vrot.slane %v2129, 1
        %v2162 = vrot.slane %v2130, 1
        %v2163 = vrot.slane %v2131, 1
        %v2180 = vadd.f32 %v2116, %v2148
        %v2181 = vadd.f32 %v2117, %v2149
        %v2182 = vadd.f32 %v2118, %v2150
        %v2183 = vadd.f32 %v2119, %v2151
        %v2184 = vadd.f32 %v2120, %v2152
        %v2185 = vadd.f32 %v2121, %v2153
        %v2186 = vadd.f32 %v2122, %v2154
        %v2187 = vadd.f32 %v2123, %v2155
        %v2188 = vadd.f32 %v2124, %v2156
        %v2189 = vadd.f32 %v2125, %v2157
        %v2190 = vadd.f32 %v2126, %v2158
        %v2191 = vadd.f32 %v2127, %v2159
        %v2192 = vadd.f32 %v2128, %v2160
        %v2193 = vadd.f32 %v2129, %v2161
        %v2194 = vadd.f32 %v2130, %v2162
        %v2195 = vadd.f32 %v2131, %v2163
        %v2196 = vrot.slane %v2116, 2
        %v2197 = vrot.slane %v2117, 2
        %v2198 = vrot.slane %v2118, 2
        %v2199 = vrot.slane %v2119, 2
        %v2200 = vrot.slane %v2120, 2
        %v2201 = vrot.slane %v2121, 2
        %v2202 = vrot.slane %v2122, 2
        %v2203 = vrot.slane %v2123, 2
        %v2204 = vrot.slane %v2124, 2
        %v2205 = vrot.slane %v2125, 2
        %v2206 = vrot.slane %v2126, 2
        %v2207 = vrot.slane %v2127, 2
        %v2208 = vrot.slane %v2128, 2
        %v2209 = vrot.slane %v2129, 2
        %v2210 = vrot.slane %v2130, 2
        %v2211 = vrot.slane %v2131, 2
        %v2228 = vadd.f32 %v2180, %v2196
        %v2229 = vadd.f32 %v2181, %v2197
        %v2230 = vadd.f32 %v2182, %v2198
        %v2231 = vadd.f32 %v2183, %v2199
        %v2232 = vadd.f32 %v2184, %v2200
        %v2233 = vadd.f32 %v2185, %v2201
        %v2234 = vadd.f32 %v2186, %v2202
        %v2235 = vadd.f32 %v2187, %v2203
        %v2236 = vadd.f32 %v2188, %v2204
        %v2237 = vadd.f32 %v2189, %v2205
        %v2238 = vadd.f32 %v2190, %v2206
        %v2239 = vadd.f32 %v2191, %v2207
        %v2240 = vadd.f32 %v2192, %v2208
        %v2241 = vadd.f32 %v2193, %v2209
        %v2242 = vadd.f32 %v2194, %v2210
        %v2243 = vadd.f32 %v2195, %v2211
        %v2260 = vrot.slane %v1908, 7
        %v2261 = vrot.slane %v1909, 7
        %v2262 = vrot.slane %v1910, 7
        %v2263 = vrot.slane %v1911, 7
        %v2264 = vrot.slane %v1912, 7
        %v2265 = vrot.slane %v1913, 7
        %v2266 = vrot.slane %v1914, 7
        %v2267 = vrot.slane %v1915, 7
        %v2268 = vrot.slane %v1916, 7
        %v2269 = vrot.slane %v1917, 7
        %v2270 = vrot.slane %v1918, 7
        %v2271 = vrot.slane %v1919, 7
        %v2272 = vrot.slane %v1920, 7
        %v2273 = vrot.slane %v1921, 7
        %v2274 = vrot.slane %v1922, 7
        %v2275 = vrot.slane %v1923, 7
        %v2308 = vrot.slane %v2068, 1
        %v2309 = vrot.slane %v2069, 1
        %v2310 = vrot.slane %v2070, 1
        %v2311 = vrot.slane %v2071, 1
        %v2312 = vrot.slane %v2072, 1
        %v2313 = vrot.slane %v2073, 1
        %v2314 = vrot.slane %v2074, 1
        %v2315 = vrot.slane %v2075, 1
        %v2316 = vrot.slane %v2076, 1
        %v2317 = vrot.slane %v2077, 1
        %v2318 = vrot.slane %v2078, 1
        %v2319 = vrot.slane %v2079, 1
        %v2320 = vrot.slane %v2080, 1
        %v2321 = vrot.slane %v2081, 1
        %v2322 = vrot.slane %v2082, 1
        %v2323 = vrot.slane %v2083, 1
        %v2356 = vrot.slane %v2228, 3
        %v2357 = vrot.slane %v2229, 3
        %v2358 = vrot.slane %v2230, 3
        %v2359 = vrot.slane %v2231, 3
        %v2360 = vrot.slane %v2232, 3
        %v2361 = vrot.slane %v2233, 3
        %v2362 = vrot.slane %v2234, 3
        %v2363 = vrot.slane %v2235, 3
        %v2364 = vrot.slane %v2236, 3
        %v2365 = vrot.slane %v2237, 3
        %v2366 = vrot.slane %v2238, 3
        %v2367 = vrot.slane %v2239, 3
        %v2368 = vrot.slane %v2240, 3
        %v2369 = vrot.slane %v2241, 3
        %v2370 = vrot.slane %v2242, 3
        %v2371 = vrot.slane %v2243, 3
        %vm2388 = vcmask 1040384
        %v2389 = vsel %vm2388, %v2260, %v2308
        %v2390 = vsel %vm2388, %v2261, %v2309
        %v2391 = vsel %vm2388, %v2262, %v2310
        %v2392 = vsel %vm2388, %v2263, %v2311
        %v2393 = vsel %vm2388, %v2264, %v2312
        %v2394 = vsel %vm2388, %v2265, %v2313
        %v2395 = vsel %vm2388, %v2266, %v2314
        %v2396 = vsel %vm2388, %v2267, %v2315
        %v2397 = vsel %vm2388, %v2268, %v2316
        %v2398 = vsel %vm2388, %v2269, %v2317
        %v2399 = vsel %vm2388, %v2270, %v2318
        %v2400 = vsel %vm2388, %v2271, %v2319
        %v2401 = vsel %vm2388, %v2272, %v2320
        %v2402 = vsel %vm2388, %v2273, %v2321
        %v2403 = vsel %vm2388, %v2274, %v2322
        %v2404 = vsel %vm2388, %v2275, %v2323
        %vm2405 = vcmask 1041408
        %v2406 = vsel %vm2405, %v2389, %v2356
        %v2407 = vsel %vm2405, %v2390, %v2357
        %v2408 = vsel %vm2405, %v2391, %v2358
        %v2409 = vsel %vm2405, %v2392, %v2359
        %v2410 = vsel %vm2405, %v2393, %v2360
        %v2411 = vsel %vm2405, %v2394, %v2361
        %v2412 = vsel %vm2405, %v2395, %v2362
        %v2413 = vsel %vm2405, %v2396, %v2363
        %v2414 = vsel %vm2405, %v2397, %v2364
        %v2415 = vsel %vm2405, %v2398, %v2365
        %v2416 = vsel %vm2405, %v2399, %v2366
        %v2417 = vsel %vm2405, %v2400, %v2367
        %v2418 = vsel %vm2405, %v2401, %v2368
        %v2419 = vsel %vm2405, %v2402, %v2369
        %v2420 = vsel %vm2405, %v2403, %v2370
        %v2421 = vsel %vm2405, %v2404, %v2371
        %v2422 = vadd.f32 %v2406, 1.0
        %v2423 = vadd.f32 %v2407, 1.0
        %v2424 = vadd.f32 %v2408, 1.0
        %v2425 = vadd.f32 %v2409, 1.0
        %v2426 = vadd.f32 %v2410, 1.0
        %v2427 = vadd.f32 %v2411, 1.0
        %v2428 = vadd.f32 %v2412, 1.0
        %v2429 = vadd.f32 %v2413, 1.0
        %v2430 = vadd.f32 %v2414, 1.0
        %v2431 = vadd.f32 %v2415, 1.0
        %v2432 = vadd.f32 %v2416, 1.0
        %v2433 = vadd.f32 %v2417, 1.0
        %v2434 = vadd.f32 %v2418, 1.0
        %v2435 = vadd.f32 %v2419, 1.0
        %v2436 = vadd.f32 %v2420, 1.0
        %v2437 = vadd.f32 %v2421, 1.0
        %v2438 = vmul.f32 %v2422, 0.5
        %v2439 = vmul.f32 %v2423, 0.5
        %v2440 = vmul.f32 %v2424, 0.5
        %v2441 = vmul.f32 %v2425, 0.5
        %v2442 = vmul.f32 %v2426, 0.5
        %v2443 = vmul.f32 %v2427, 0.5
        %v2444 = vmul.f32 %v2428, 0.5
        %v2445 = vmul.f32 %v2429, 0.5
        %v2446 = vmul.f32 %v2430, 0.5
        %v2447 = vmul.f32 %v2431, 0.5
        %v2448 = vmul.f32 %v2432, 0.5
        %v2449 = vmul.f32 %v2433, 0.5
        %v2450 = vmul.f32 %v2434, 0.5
        %v2451 = vmul.f32 %v2435, 0.5
        %v2452 = vmul.f32 %v2436, 0.5
        %v2453 = vmul.f32 %v2437, 0.5
        %v2454 = vmax.f32 %v2438, 0.0
        %v2455 = vmax.f32 %v2439, 0.0
        %v2456 = vmax.f32 %v2440, 0.0
        %v2457 = vmax.f32 %v2441, 0.0
        %v2458 = vmax.f32 %v2442, 0.0
        %v2459 = vmax.f32 %v2443, 0.0
        %v2460 = vmax.f32 %v2444, 0.0
        %v2461 = vmax.f32 %v2445, 0.0
        %v2462 = vmax.f32 %v2446, 0.0
        %v2463 = vmax.f32 %v2447, 0.0
        %v2464 = vmax.f32 %v2448, 0.0
        %v2465 = vmax.f32 %v2449, 0.0
        %v2466 = vmax.f32 %v2450, 0.0
        %v2467 = vmax.f32 %v2451, 0.0
        %v2468 = vmax.f32 %v2452, 0.0
        %v2469 = vmax.f32 %v2453, 0.0
        %v2470 = vmin.f32 %v2454, 1.0
        %v2471 = vmin.f32 %v2455, 1.0
        %v2472 = vmin.f32 %v2456, 1.0
        %v2473 = vmin.f32 %v2457, 1.0
        %v2474 = vmin.f32 %v2458, 1.0
        %v2475 = vmin.f32 %v2459, 1.0
        %v2476 = vmin.f32 %v2460, 1.0
        %v2477 = vmin.f32 %v2461, 1.0
        %v2478 = vmin.f32 %v2462, 1.0
        %v2479 = vmin.f32 %v2463, 1.0
        %v2480 = vmin.f32 %v2464, 1.0
        %v2481 = vmin.f32 %v2465, 1.0
        %v2482 = vmin.f32 %v2466, 1.0
        %v2483 = vmin.f32 %v2467, 1.0
        %v2484 = vmin.f32 %v2468, 1.0
        %v2485 = vmin.f32 %v2469, 1.0
        %v2486 = vmul.f32 %v199, %v199
        %v2487 = vmul.f32 %v200, %v200
        %v2488 = vmul.f32 %v201, %v201
        %v2489 = vmul.f32 %v202, %v202
        %v2490 = vmul.f32 %v203, %v203
        %v2491 = vmul.f32 %v204, %v204
        %v2492 = vmul.f32 %v205, %v205
        %v2493 = vmul.f32 %v206, %v206
        %v2494 = vmul.f32 %v207, %v207
        %v2495 = vmul.f32 %v208, %v208
        %v2496 = vmul.f32 %v209, %v209
        %v2497 = vmul.f32 %v210, %v210
        %v2498 = vmul.f32 %v211, %v211
        %v2499 = vmul.f32 %v212, %v212
        %v2500 = vmul.f32 %v213, %v213
        %v2501 = vmul.f32 %v214, %v214
        %v2518 = vrot.slane %v2486, 4
        %v2519 = vrot.slane %v2487, 4
        %v2520 = vrot.slane %v2488, 4
        %v2521 = vrot.slane %v2489, 4
        %v2522 = vrot.slane %v2490, 4
        %v2523 = vrot.slane %v2491, 4
        %v2524 = vrot.slane %v2492, 4
        %v2525 = vrot.slane %v2493, 4
        %v2526 = vrot.slane %v2494, 4
        %v2527 = vrot.slane %v2495, 4
        %v2528 = vrot.slane %v2496, 4
        %v2529 = vrot.slane %v2497, 4
        %v2530 = vrot.slane %v2498, 4
        %v2531 = vrot.slane %v2499, 4
        %v2532 = vrot.slane %v2500, 4
        %v2533 = vrot.slane %v2501, 4
        %v2550 = vsel %vm529, %v2518, 0.0
        %v2551 = vrot.slane %v2550, 4
        %v2552 = vadd.f32 %v2550, %v2551
        %v2553 = vrot.slane %v2552, 2
        %v2554 = vadd.f32 %v2552, %v2553
        %v2555 = vrot.slane %v2554, 1
        %v2556 = vadd.f32 %v2554, %v2555
        %v2557 = vsel %vm529, %v2519, 0.0
        %v2558 = vrot.slane %v2557, 4
        %v2559 = vadd.f32 %v2557, %v2558
        %v2560 = vrot.slane %v2559, 2
        %v2561 = vadd.f32 %v2559, %v2560
        %v2562 = vrot.slane %v2561, 1
        %v2563 = vadd.f32 %v2561, %v2562
        %v2564 = vsel %vm529, %v2520, 0.0
        %v2565 = vrot.slane %v2564, 4
        %v2566 = vadd.f32 %v2564, %v2565
        %v2567 = vrot.slane %v2566, 2
        %v2568 = vadd.f32 %v2566, %v2567
        %v2569 = vrot.slane %v2568, 1
        %v2570 = vadd.f32 %v2568, %v2569
        %v2571 = vsel %vm529, %v2521, 0.0
        %v2572 = vrot.slane %v2571, 4
        %v2573 = vadd.f32 %v2571, %v2572
        %v2574 = vrot.slane %v2573, 2
        %v2575 = vadd.f32 %v2573, %v2574
        %v2576 = vrot.slane %v2575, 1
        %v2577 = vadd.f32 %v2575, %v2576
        %v2578 = vsel %vm529, %v2522, 0.0
        %v2579 = vrot.slane %v2578, 4
        %v2580 = vadd.f32 %v2578, %v2579
        %v2581 = vrot.slane %v2580, 2
        %v2582 = vadd.f32 %v2580, %v2581
        %v2583 = vrot.slane %v2582, 1
        %v2584 = vadd.f32 %v2582, %v2583
        %v2585 = vsel %vm529, %v2523, 0.0
        %v2586 = vrot.slane %v2585, 4
        %v2587 = vadd.f32 %v2585, %v2586
        %v2588 = vrot.slane %v2587, 2
        %v2589 = vadd.f32 %v2587, %v2588
        %v2590 = vrot.slane %v2589, 1
        %v2591 = vadd.f32 %v2589, %v2590
        %v2592 = vsel %vm529, %v2524, 0.0
        %v2593 = vrot.slane %v2592, 4
        %v2594 = vadd.f32 %v2592, %v2593
        %v2595 = vrot.slane %v2594, 2
        %v2596 = vadd.f32 %v2594, %v2595
        %v2597 = vrot.slane %v2596, 1
        %v2598 = vadd.f32 %v2596, %v2597
        %v2599 = vsel %vm529, %v2525, 0.0
        %v2600 = vrot.slane %v2599, 4
        %v2601 = vadd.f32 %v2599, %v2600
        %v2602 = vrot.slane %v2601, 2
        %v2603 = vadd.f32 %v2601, %v2602
        %v2604 = vrot.slane %v2603, 1
        %v2605 = vadd.f32 %v2603, %v2604
        %v2606 = vsel %vm529, %v2526, 0.0
        %v2607 = vrot.slane %v2606, 4
        %v2608 = vadd.f32 %v2606, %v2607
        %v2609 = vrot.slane %v2608, 2
        %v2610 = vadd.f32 %v2608, %v2609
        %v2611 = vrot.slane %v2610, 1
        %v2612 = vadd.f32 %v2610, %v2611
        %v2613 = vsel %vm529, %v2527, 0.0
        %v2614 = vrot.slane %v2613, 4
        %v2615 = vadd.f32 %v2613, %v2614
        %v2616 = vrot.slane %v2615, 2
        %v2617 = vadd.f32 %v2615, %v2616
        %v2618 = vrot.slane %v2617, 1
        %v2619 = vadd.f32 %v2617, %v2618
        %v2620 = vsel %vm529, %v2528, 0.0
        %v2621 = vrot.slane %v2620, 4
        %v2622 = vadd.f32 %v2620, %v2621
        %v2623 = vrot.slane %v2622, 2
        %v2624 = vadd.f32 %v2622, %v2623
        %v2625 = vrot.slane %v2624, 1
        %v2626 = vadd.f32 %v2624, %v2625
        %v2627 = vsel %vm529, %v2529, 0.0
        %v2628 = vrot.slane %v2627, 4
        %v2629 = vadd.f32 %v2627, %v2628
        %v2630 = vrot.slane %v2629, 2
        %v2631 = vadd.f32 %v2629, %v2630
        %v2632 = vrot.slane %v2631, 1
        %v2633 = vadd.f32 %v2631, %v2632
        %v2634 = vsel %vm529, %v2530, 0.0
        %v2635 = vrot.slane %v2634, 4
        %v2636 = vadd.f32 %v2634, %v2635
        %v2637 = vrot.slane %v2636, 2
        %v2638 = vadd.f32 %v2636, %v2637
        %v2639 = vrot.slane %v2638, 1
        %v2640 = vadd.f32 %v2638, %v2639
        %v2641 = vsel %vm529, %v2531, 0.0
        %v2642 = vrot.slane %v2641, 4
        %v2643 = vadd.f32 %v2641, %v2642
        %v2644 = vrot.slane %v2643, 2
        %v2645 = vadd.f32 %v2643, %v2644
        %v2646 = vrot.slane %v2645, 1
        %v2647 = vadd.f32 %v2645, %v2646
        %v2648 = vsel %vm529, %v2532, 0.0
        %v2649 = vrot.slane %v2648, 4
        %v2650 = vadd.f32 %v2648, %v2649
        %v2651 = vrot.slane %v2650, 2
        %v2652 = vadd.f32 %v2650, %v2651
        %v2653 = vrot.slane %v2652, 1
        %v2654 = vadd.f32 %v2652, %v2653
        %v2655 = vsel %vm529, %v2533, 0.0
        %v2656 = vrot.slane %v2655, 4
        %v2657 = vadd.f32 %v2655, %v2656
        %v2658 = vrot.slane %v2657, 2
        %v2659 = vadd.f32 %v2657, %v2658
        %v2660 = vrot.slane %v2659, 1
        %v2661 = vadd.f32 %v2659, %v2660
        %v2662 = vrsqrt.pop %v2556
        %v2663 = vmul.f32 %v2556, %v2662
        %vm2664 = vcmp.eq.f32.partialorder %v2556, inf
        %v2665 = vsel %vm2664, %v2556, %v2663
        %vm2666 = vcmp.eq.f32.partialorder %v2556, 0.0
        %v2667 = vand.u32 %v2556, 2147483648
        %v2668 = vsel %vm2666, %v2667, %v2665
        %v2669 = vrsqrt.pop %v2563
        %v2670 = vmul.f32 %v2563, %v2669
        %vm2671 = vcmp.eq.f32.partialorder %v2563, inf
        %v2672 = vsel %vm2671, %v2563, %v2670
        %vm2673 = vcmp.eq.f32.partialorder %v2563, 0.0
        %v2674 = vand.u32 %v2563, 2147483648
        %v2675 = vsel %vm2673, %v2674, %v2672
        %v2676 = vrsqrt.pop %v2570
        %v2677 = vmul.f32 %v2570, %v2676
        %vm2678 = vcmp.eq.f32.partialorder %v2570, inf
        %v2679 = vsel %vm2678, %v2570, %v2677
        %vm2680 = vcmp.eq.f32.partialorder %v2570, 0.0
        %v2681 = vand.u32 %v2570, 2147483648
        %v2682 = vsel %vm2680, %v2681, %v2679
        %v2683 = vrsqrt.pop %v2577
        %v2684 = vmul.f32 %v2577, %v2683
        %vm2685 = vcmp.eq.f32.partialorder %v2577, inf
        %v2686 = vsel %vm2685, %v2577, %v2684
        %vm2687 = vcmp.eq.f32.partialorder %v2577, 0.0
        %v2688 = vand.u32 %v2577, 2147483648
        %v2689 = vsel %vm2687, %v2688, %v2686
        %v2690 = vrsqrt.pop %v2584
        %v2691 = vmul.f32 %v2584, %v2690
        %vm2692 = vcmp.eq.f32.partialorder %v2584, inf
        %v2693 = vsel %vm2692, %v2584, %v2691
        %vm2694 = vcmp.eq.f32.partialorder %v2584, 0.0
        %v2695 = vand.u32 %v2584, 2147483648
        %v2696 = vsel %vm2694, %v2695, %v2693
        %v2697 = vrsqrt.pop %v2591
        %v2698 = vmul.f32 %v2591, %v2697
        %vm2699 = vcmp.eq.f32.partialorder %v2591, inf
        %v2700 = vsel %vm2699, %v2591, %v2698
        %vm2701 = vcmp.eq.f32.partialorder %v2591, 0.0
        %v2702 = vand.u32 %v2591, 2147483648
        %v2703 = vsel %vm2701, %v2702, %v2700
        %v2704 = vrsqrt.pop %v2598
        %v2705 = vmul.f32 %v2598, %v2704
        %vm2706 = vcmp.eq.f32.partialorder %v2598, inf
        %v2707 = vsel %vm2706, %v2598, %v2705
        %vm2708 = vcmp.eq.f32.partialorder %v2598, 0.0
        %v2709 = vand.u32 %v2598, 2147483648
        %v2710 = vsel %vm2708, %v2709, %v2707
        %v2711 = vrsqrt.pop %v2605
        %v2712 = vmul.f32 %v2605, %v2711
        %vm2713 = vcmp.eq.f32.partialorder %v2605, inf
        %v2714 = vsel %vm2713, %v2605, %v2712
        %vm2715 = vcmp.eq.f32.partialorder %v2605, 0.0
        %v2716 = vand.u32 %v2605, 2147483648
        %v2717 = vsel %vm2715, %v2716, %v2714
        %v2718 = vrsqrt.pop %v2612
        %v2719 = vmul.f32 %v2612, %v2718
        %vm2720 = vcmp.eq.f32.partialorder %v2612, inf
        %v2721 = vsel %vm2720, %v2612, %v2719
        %vm2722 = vcmp.eq.f32.partialorder %v2612, 0.0
        %v2723 = vand.u32 %v2612, 2147483648
        %v2724 = vsel %vm2722, %v2723, %v2721
        %v2725 = vrsqrt.pop %v2619
        %v2726 = vmul.f32 %v2619, %v2725
        %vm2727 = vcmp.eq.f32.partialorder %v2619, inf
        %v2728 = vsel %vm2727, %v2619, %v2726
        %vm2729 = vcmp.eq.f32.partialorder %v2619, 0.0
        %v2730 = vand.u32 %v2619, 2147483648
        %v2731 = vsel %vm2729, %v2730, %v2728
        %v2732 = vrsqrt.pop %v2626
        %v2733 = vmul.f32 %v2626, %v2732
        %vm2734 = vcmp.eq.f32.partialorder %v2626, inf
        %v2735 = vsel %vm2734, %v2626, %v2733
        %vm2736 = vcmp.eq.f32.partialorder %v2626, 0.0
        %v2737 = vand.u32 %v2626, 2147483648
        %v2738 = vsel %vm2736, %v2737, %v2735
        %v2739 = vrsqrt.pop %v2633
        %v2740 = vmul.f32 %v2633, %v2739
        %vm2741 = vcmp.eq.f32.partialorder %v2633, inf
        %v2742 = vsel %vm2741, %v2633, %v2740
        %vm2743 = vcmp.eq.f32.partialorder %v2633, 0.0
        %v2744 = vand.u32 %v2633, 2147483648
        %v2745 = vsel %vm2743, %v2744, %v2742
        %v2746 = vrsqrt.pop %v2640
        %v2747 = vmul.f32 %v2640, %v2746
        %vm2748 = vcmp.eq.f32.partialorder %v2640, inf
        %v2749 = vsel %vm2748, %v2640, %v2747
        %vm2750 = vcmp.eq.f32.partialorder %v2640, 0.0
        %v2751 = vand.u32 %v2640, 2147483648
        %v2752 = vsel %vm2750, %v2751, %v2749
        %v2753 = vrsqrt.pop %v2647
        %v2754 = vmul.f32 %v2647, %v2753
        %vm2755 = vcmp.eq.f32.partialorder %v2647, inf
        %v2756 = vsel %vm2755, %v2647, %v2754
        %vm2757 = vcmp.eq.f32.partialorder %v2647, 0.0
        %v2758 = vand.u32 %v2647, 2147483648
        %v2759 = vsel %vm2757, %v2758, %v2756
        %v2760 = vrsqrt.pop %v2654
        %v2761 = vmul.f32 %v2654, %v2760
        %vm2762 = vcmp.eq.f32.partialorder %v2654, inf
        %v2763 = vsel %vm2762, %v2654, %v2761
        %vm2764 = vcmp.eq.f32.partialorder %v2654, 0.0
        %v2765 = vand.u32 %v2654, 2147483648
        %v2766 = vsel %vm2764, %v2765, %v2763
        %v2767 = vrsqrt.pop %v2661
        %v2768 = vmul.f32 %v2661, %v2767
        %vm2769 = vcmp.eq.f32.partialorder %v2661, inf
        %v2770 = vsel %vm2769, %v2661, %v2768
        %vm2771 = vcmp.eq.f32.partialorder %v2661, 0.0
        %v2772 = vand.u32 %v2661, 2147483648
        %v2773 = vsel %vm2771, %v2772, %v2770
        %v2774 = vmax.f32 %v2668, 1e-12
        %v2775 = vmax.f32 %v2675, 1e-12
        %v2776 = vmax.f32 %v2682, 1e-12
        %v2777 = vmax.f32 %v2689, 1e-12
        %v2778 = vmax.f32 %v2696, 1e-12
        %v2779 = vmax.f32 %v2703, 1e-12
        %v2780 = vmax.f32 %v2710, 1e-12
        %v2781 = vmax.f32 %v2717, 1e-12
        %v2782 = vmax.f32 %v2724, 1e-12
        %v2783 = vmax.f32 %v2731, 1e-12
        %v2784 = vmax.f32 %v2738, 1e-12
        %v2785 = vmax.f32 %v2745, 1e-12
        %v2786 = vmax.f32 %v2752, 1e-12
        %v2787 = vmax.f32 %v2759, 1e-12
        %v2788 = vmax.f32 %v2766, 1e-12
        %v2789 = vmax.f32 %v2773, 1e-12
        %v2790 = vrcp.pop %v2774
        %v2791 = vmul.f32 %v199, %v2790
        %v2792 = vrcp.pop %v2775
        %v2793 = vmul.f32 %v200, %v2792
        %v2794 = vrcp.pop %v2776
        %v2795 = vmul.f32 %v201, %v2794
        %v2796 = vrcp.pop %v2777
        %v2797 = vmul.f32 %v202, %v2796
        %v2798 = vrcp.pop %v2778
        %v2799 = vmul.f32 %v203, %v2798
        %v2800 = vrcp.pop %v2779
        %v2801 = vmul.f32 %v204, %v2800
        %v2802 = vrcp.pop %v2780
        %v2803 = vmul.f32 %v205, %v2802
        %v2804 = vrcp.pop %v2781
        %v2805 = vmul.f32 %v206, %v2804
        %v2806 = vrcp.pop %v2782
        %v2807 = vmul.f32 %v207, %v2806
        %v2808 = vrcp.pop %v2783
        %v2809 = vmul.f32 %v208, %v2808
        %v2810 = vrcp.pop %v2784
        %v2811 = vmul.f32 %v209, %v2810
        %v2812 = vrcp.pop %v2785
        %v2813 = vmul.f32 %v210, %v2812
        %v2814 = vrcp.pop %v2786
        %v2815 = vmul.f32 %v211, %v2814
        %v2816 = vrcp.pop %v2787
        %v2817 = vmul.f32 %v212, %v2816
        %v2818 = vrcp.pop %v2788
        %v2819 = vmul.f32 %v213, %v2818
        %v2820 = vrcp.pop %v2789
        %v2821 = vmul.f32 %v214, %v2820
        %v2822 = vmul.f32 %v2791, %v2791
        %v2823 = vmul.f32 %v2793, %v2793
        %v2824 = vmul.f32 %v2795, %v2795
        %v2825 = vmul.f32 %v2797, %v2797
        %v2826 = vmul.f32 %v2799, %v2799
        %v2827 = vmul.f32 %v2801, %v2801
        %v2828 = vmul.f32 %v2803, %v2803
        %v2829 = vmul.f32 %v2805, %v2805
        %v2830 = vmul.f32 %v2807, %v2807
        %v2831 = vmul.f32 %v2809, %v2809
        %v2832 = vmul.f32 %v2811, %v2811
        %v2833 = vmul.f32 %v2813, %v2813
        %v2834 = vmul.f32 %v2815, %v2815
        %v2835 = vmul.f32 %v2817, %v2817
        %v2836 = vmul.f32 %v2819, %v2819
        %v2837 = vmul.f32 %v2821, %v2821
        %v2854 = vrot.slane %v2822, 4
        %v2855 = vrot.slane %v2823, 4
        %v2856 = vrot.slane %v2824, 4
        %v2857 = vrot.slane %v2825, 4
        %v2858 = vrot.slane %v2826, 4
        %v2859 = vrot.slane %v2827, 4
        %v2860 = vrot.slane %v2828, 4
        %v2861 = vrot.slane %v2829, 4
        %v2862 = vrot.slane %v2830, 4
        %v2863 = vrot.slane %v2831, 4
        %v2864 = vrot.slane %v2832, 4
        %v2865 = vrot.slane %v2833, 4
        %v2866 = vrot.slane %v2834, 4
        %v2867 = vrot.slane %v2835, 4
        %v2868 = vrot.slane %v2836, 4
        %v2869 = vrot.slane %v2837, 4
        %v2886 = vsel %vm529, %v2854, 0.0
        %v2887 = vrot.slane %v2886, 4
        %v2888 = vadd.f32 %v2886, %v2887
        %v2889 = vrot.slane %v2888, 2
        %v2890 = vadd.f32 %v2888, %v2889
        %v2891 = vrot.slane %v2890, 1
        %v2892 = vadd.f32 %v2890, %v2891
        %v2893 = vsel %vm529, %v2855, 0.0
        %v2894 = vrot.slane %v2893, 4
        %v2895 = vadd.f32 %v2893, %v2894
        %v2896 = vrot.slane %v2895, 2
        %v2897 = vadd.f32 %v2895, %v2896
        %v2898 = vrot.slane %v2897, 1
        %v2899 = vadd.f32 %v2897, %v2898
        %v2900 = vsel %vm529, %v2856, 0.0
        %v2901 = vrot.slane %v2900, 4
        %v2902 = vadd.f32 %v2900, %v2901
        %v2903 = vrot.slane %v2902, 2
        %v2904 = vadd.f32 %v2902, %v2903
        %v2905 = vrot.slane %v2904, 1
        %v2906 = vadd.f32 %v2904, %v2905
        %v2907 = vsel %vm529, %v2857, 0.0
        %v2908 = vrot.slane %v2907, 4
        %v2909 = vadd.f32 %v2907, %v2908
        %v2910 = vrot.slane %v2909, 2
        %v2911 = vadd.f32 %v2909, %v2910
        %v2912 = vrot.slane %v2911, 1
        %v2913 = vadd.f32 %v2911, %v2912
        %v2914 = vsel %vm529, %v2858, 0.0
        %v2915 = vrot.slane %v2914, 4
        %v2916 = vadd.f32 %v2914, %v2915
        %v2917 = vrot.slane %v2916, 2
        %v2918 = vadd.f32 %v2916, %v2917
        %v2919 = vrot.slane %v2918, 1
        %v2920 = vadd.f32 %v2918, %v2919
        %v2921 = vsel %vm529, %v2859, 0.0
        %v2922 = vrot.slane %v2921, 4
        %v2923 = vadd.f32 %v2921, %v2922
        %v2924 = vrot.slane %v2923, 2
        %v2925 = vadd.f32 %v2923, %v2924
        %v2926 = vrot.slane %v2925, 1
        %v2927 = vadd.f32 %v2925, %v2926
        %v2928 = vsel %vm529, %v2860, 0.0
        %v2929 = vrot.slane %v2928, 4
        %v2930 = vadd.f32 %v2928, %v2929
        %v2931 = vrot.slane %v2930, 2
        %v2932 = vadd.f32 %v2930, %v2931
        %v2933 = vrot.slane %v2932, 1
        %v2934 = vadd.f32 %v2932, %v2933
        %v2935 = vsel %vm529, %v2861, 0.0
        %v2936 = vrot.slane %v2935, 4
        %v2937 = vadd.f32 %v2935, %v2936
        %v2938 = vrot.slane %v2937, 2
        %v2939 = vadd.f32 %v2937, %v2938
        %v2940 = vrot.slane %v2939, 1
        %v2941 = vadd.f32 %v2939, %v2940
        %v2942 = vsel %vm529, %v2862, 0.0
        %v2943 = vrot.slane %v2942, 4
        %v2944 = vadd.f32 %v2942, %v2943
        %v2945 = vrot.slane %v2944, 2
        %v2946 = vadd.f32 %v2944, %v2945
        %v2947 = vrot.slane %v2946, 1
        %v2948 = vadd.f32 %v2946, %v2947
        %v2949 = vsel %vm529, %v2863, 0.0
        %v2950 = vrot.slane %v2949, 4
        %v2951 = vadd.f32 %v2949, %v2950
        %v2952 = vrot.slane %v2951, 2
        %v2953 = vadd.f32 %v2951, %v2952
        %v2954 = vrot.slane %v2953, 1
        %v2955 = vadd.f32 %v2953, %v2954
        %v2956 = vsel %vm529, %v2864, 0.0
        %v2957 = vrot.slane %v2956, 4
        %v2958 = vadd.f32 %v2956, %v2957
        %v2959 = vrot.slane %v2958, 2
        %v2960 = vadd.f32 %v2958, %v2959
        %v2961 = vrot.slane %v2960, 1
        %v2962 = vadd.f32 %v2960, %v2961
        %v2963 = vsel %vm529, %v2865, 0.0
        %v2964 = vrot.slane %v2963, 4
        %v2965 = vadd.f32 %v2963, %v2964
        %v2966 = vrot.slane %v2965, 2
        %v2967 = vadd.f32 %v2965, %v2966
        %v2968 = vrot.slane %v2967, 1
        %v2969 = vadd.f32 %v2967, %v2968
        %v2970 = vsel %vm529, %v2866, 0.0
        %v2971 = vrot.slane %v2970, 4
        %v2972 = vadd.f32 %v2970, %v2971
        %v2973 = vrot.slane %v2972, 2
        %v2974 = vadd.f32 %v2972, %v2973
        %v2975 = vrot.slane %v2974, 1
        %v2976 = vadd.f32 %v2974, %v2975
        %v2977 = vsel %vm529, %v2867, 0.0
        %v2978 = vrot.slane %v2977, 4
        %v2979 = vadd.f32 %v2977, %v2978
        %v2980 = vrot.slane %v2979, 2
        %v2981 = vadd.f32 %v2979, %v2980
        %v2982 = vrot.slane %v2981, 1
        %v2983 = vadd.f32 %v2981, %v2982
        %v2984 = vsel %vm529, %v2868, 0.0
        %v2985 = vrot.slane %v2984, 4
        %v2986 = vadd.f32 %v2984, %v2985
        %v2987 = vrot.slane %v2986, 2
        %v2988 = vadd.f32 %v2986, %v2987
        %v2989 = vrot.slane %v2988, 1
        %v2990 = vadd.f32 %v2988, %v2989
        %v2991 = vsel %vm529, %v2869, 0.0
        %v2992 = vrot.slane %v2991, 4
        %v2993 = vadd.f32 %v2991, %v2992
        %v2994 = vrot.slane %v2993, 2
        %v2995 = vadd.f32 %v2993, %v2994
        %v2996 = vrot.slane %v2995, 1
        %v2997 = vadd.f32 %v2995, %v2996
        %v2998 = vrsqrt.pop %v2892
        %v2999 = vmul.f32 %v2892, %v2998
        %vm3000 = vcmp.eq.f32.partialorder %v2892, inf
        %v3001 = vsel %vm3000, %v2892, %v2999
        %vm3002 = vcmp.eq.f32.partialorder %v2892, 0.0
        %v3003 = vand.u32 %v2892, 2147483648
        %v3004 = vsel %vm3002, %v3003, %v3001
        %v3005 = vrsqrt.pop %v2899
        %v3006 = vmul.f32 %v2899, %v3005
        %vm3007 = vcmp.eq.f32.partialorder %v2899, inf
        %v3008 = vsel %vm3007, %v2899, %v3006
        %vm3009 = vcmp.eq.f32.partialorder %v2899, 0.0
        %v3010 = vand.u32 %v2899, 2147483648
        %v3011 = vsel %vm3009, %v3010, %v3008
        %v3012 = vrsqrt.pop %v2906
        %v3013 = vmul.f32 %v2906, %v3012
        %vm3014 = vcmp.eq.f32.partialorder %v2906, inf
        %v3015 = vsel %vm3014, %v2906, %v3013
        %vm3016 = vcmp.eq.f32.partialorder %v2906, 0.0
        %v3017 = vand.u32 %v2906, 2147483648
        %v3018 = vsel %vm3016, %v3017, %v3015
        %v3019 = vrsqrt.pop %v2913
        %v3020 = vmul.f32 %v2913, %v3019
        %vm3021 = vcmp.eq.f32.partialorder %v2913, inf
        %v3022 = vsel %vm3021, %v2913, %v3020
        %vm3023 = vcmp.eq.f32.partialorder %v2913, 0.0
        %v3024 = vand.u32 %v2913, 2147483648
        %v3025 = vsel %vm3023, %v3024, %v3022
        %v3026 = vrsqrt.pop %v2920
        %v3027 = vmul.f32 %v2920, %v3026
        %vm3028 = vcmp.eq.f32.partialorder %v2920, inf
        %v3029 = vsel %vm3028, %v2920, %v3027
        %vm3030 = vcmp.eq.f32.partialorder %v2920, 0.0
        %v3031 = vand.u32 %v2920, 2147483648
        %v3032 = vsel %vm3030, %v3031, %v3029
        %v3033 = vrsqrt.pop %v2927
        %v3034 = vmul.f32 %v2927, %v3033
        %vm3035 = vcmp.eq.f32.partialorder %v2927, inf
        %v3036 = vsel %vm3035, %v2927, %v3034
        %vm3037 = vcmp.eq.f32.partialorder %v2927, 0.0
        %v3038 = vand.u32 %v2927, 2147483648
        %v3039 = vsel %vm3037, %v3038, %v3036
        %v3040 = vrsqrt.pop %v2934
        %v3041 = vmul.f32 %v2934, %v3040
        %vm3042 = vcmp.eq.f32.partialorder %v2934, inf
        %v3043 = vsel %vm3042, %v2934, %v3041
        %vm3044 = vcmp.eq.f32.partialorder %v2934, 0.0
        %v3045 = vand.u32 %v2934, 2147483648
        %v3046 = vsel %vm3044, %v3045, %v3043
        %v3047 = vrsqrt.pop %v2941
        %v3048 = vmul.f32 %v2941, %v3047
        %vm3049 = vcmp.eq.f32.partialorder %v2941, inf
        %v3050 = vsel %vm3049, %v2941, %v3048
        %vm3051 = vcmp.eq.f32.partialorder %v2941, 0.0
        %v3052 = vand.u32 %v2941, 2147483648
        %v3053 = vsel %vm3051, %v3052, %v3050
        %v3054 = vrsqrt.pop %v2948
        %v3055 = vmul.f32 %v2948, %v3054
        %vm3056 = vcmp.eq.f32.partialorder %v2948, inf
        %v3057 = vsel %vm3056, %v2948, %v3055
        %vm3058 = vcmp.eq.f32.partialorder %v2948, 0.0
        %v3059 = vand.u32 %v2948, 2147483648
        %v3060 = vsel %vm3058, %v3059, %v3057
        %v3061 = vrsqrt.pop %v2955
        %v3062 = vmul.f32 %v2955, %v3061
        %vm3063 = vcmp.eq.f32.partialorder %v2955, inf
        %v3064 = vsel %vm3063, %v2955, %v3062
        %vm3065 = vcmp.eq.f32.partialorder %v2955, 0.0
        %v3066 = vand.u32 %v2955, 2147483648
        %v3067 = vsel %vm3065, %v3066, %v3064
        %v3068 = vrsqrt.pop %v2962
        %v3069 = vmul.f32 %v2962, %v3068
        %vm3070 = vcmp.eq.f32.partialorder %v2962, inf
        %v3071 = vsel %vm3070, %v2962, %v3069
        %vm3072 = vcmp.eq.f32.partialorder %v2962, 0.0
        %v3073 = vand.u32 %v2962, 2147483648
        %v3074 = vsel %vm3072, %v3073, %v3071
        %v3075 = vrsqrt.pop %v2969
        %v3076 = vmul.f32 %v2969, %v3075
        %vm3077 = vcmp.eq.f32.partialorder %v2969, inf
        %v3078 = vsel %vm3077, %v2969, %v3076
        %vm3079 = vcmp.eq.f32.partialorder %v2969, 0.0
        %v3080 = vand.u32 %v2969, 2147483648
        %v3081 = vsel %vm3079, %v3080, %v3078
        %v3082 = vrsqrt.pop %v2976
        %v3083 = vmul.f32 %v2976, %v3082
        %vm3084 = vcmp.eq.f32.partialorder %v2976, inf
        %v3085 = vsel %vm3084, %v2976, %v3083
        %vm3086 = vcmp.eq.f32.partialorder %v2976, 0.0
        %v3087 = vand.u32 %v2976, 2147483648
        %v3088 = vsel %vm3086, %v3087, %v3085
        %v3089 = vrsqrt.pop %v2983
        %v3090 = vmul.f32 %v2983, %v3089
        %vm3091 = vcmp.eq.f32.partialorder %v2983, inf
        %v3092 = vsel %vm3091, %v2983, %v3090
        %vm3093 = vcmp.eq.f32.partialorder %v2983, 0.0
        %v3094 = vand.u32 %v2983, 2147483648
        %v3095 = vsel %vm3093, %v3094, %v3092
        %v3096 = vrsqrt.pop %v2990
        %v3097 = vmul.f32 %v2990, %v3096
        %vm3098 = vcmp.eq.f32.partialorder %v2990, inf
        %v3099 = vsel %vm3098, %v2990, %v3097
        %vm3100 = vcmp.eq.f32.partialorder %v2990, 0.0
        %v3101 = vand.u32 %v2990, 2147483648
        %v3102 = vsel %vm3100, %v3101, %v3099
        %v3103 = vrsqrt.pop %v2997
        %v3104 = vmul.f32 %v2997, %v3103
        %vm3105 = vcmp.eq.f32.partialorder %v2997, inf
        %v3106 = vsel %vm3105, %v2997, %v3104
        %vm3107 = vcmp.eq.f32.partialorder %v2997, 0.0
        %v3108 = vand.u32 %v2997, 2147483648
        %v3109 = vsel %vm3107, %v3108, %v3106
        %v3110 = vmax.f32 %v3004, 1e-12
        %v3111 = vmax.f32 %v3011, 1e-12
        %v3112 = vmax.f32 %v3018, 1e-12
        %v3113 = vmax.f32 %v3025, 1e-12
        %v3114 = vmax.f32 %v3032, 1e-12
        %v3115 = vmax.f32 %v3039, 1e-12
        %v3116 = vmax.f32 %v3046, 1e-12
        %v3117 = vmax.f32 %v3053, 1e-12
        %v3118 = vmax.f32 %v3060, 1e-12
        %v3119 = vmax.f32 %v3067, 1e-12
        %v3120 = vmax.f32 %v3074, 1e-12
        %v3121 = vmax.f32 %v3081, 1e-12
        %v3122 = vmax.f32 %v3088, 1e-12
        %v3123 = vmax.f32 %v3095, 1e-12
        %v3124 = vmax.f32 %v3102, 1e-12
        %v3125 = vmax.f32 %v3109, 1e-12
        %v3126 = vrcp.pop %v3110
        %v3127 = vmul.f32 %v2791, %v3126
        %v3128 = vrcp.pop %v3111
        %v3129 = vmul.f32 %v2793, %v3128
        %v3130 = vrcp.pop %v3112
        %v3131 = vmul.f32 %v2795, %v3130
        %v3132 = vrcp.pop %v3113
        %v3133 = vmul.f32 %v2797, %v3132
        %v3134 = vrcp.pop %v3114
        %v3135 = vmul.f32 %v2799, %v3134
        %v3136 = vrcp.pop %v3115
        %v3137 = vmul.f32 %v2801, %v3136
        %v3138 = vrcp.pop %v3116
        %v3139 = vmul.f32 %v2803, %v3138
        %v3140 = vrcp.pop %v3117
        %v3141 = vmul.f32 %v2805, %v3140
        %v3142 = vrcp.pop %v3118
        %v3143 = vmul.f32 %v2807, %v3142
        %v3144 = vrcp.pop %v3119
        %v3145 = vmul.f32 %v2809, %v3144
        %v3146 = vrcp.pop %v3120
        %v3147 = vmul.f32 %v2811, %v3146
        %v3148 = vrcp.pop %v3121
        %v3149 = vmul.f32 %v2813, %v3148
        %v3150 = vrcp.pop %v3122
        %v3151 = vmul.f32 %v2815, %v3150
        %v3152 = vrcp.pop %v3123
        %v3153 = vmul.f32 %v2817, %v3152
        %v3154 = vrcp.pop %v3124
        %v3155 = vmul.f32 %v2819, %v3154
        %v3156 = vrcp.pop %v3125
        %v3157 = vmul.f32 %v2821, %v3156
        %v3158 = vmul.f32 %v2470, %v2470
        %v3159 = vmul.f32 %v2471, %v2471
        %v3160 = vmul.f32 %v2472, %v2472
        %v3161 = vmul.f32 %v2473, %v2473
        %v3162 = vmul.f32 %v2474, %v2474
        %v3163 = vmul.f32 %v2475, %v2475
        %v3164 = vmul.f32 %v2476, %v2476
        %v3165 = vmul.f32 %v2477, %v2477
        %v3166 = vmul.f32 %v2478, %v2478
        %v3167 = vmul.f32 %v2479, %v2479
        %v3168 = vmul.f32 %v2480, %v2480
        %v3169 = vmul.f32 %v2481, %v2481
        %v3170 = vmul.f32 %v2482, %v2482
        %v3171 = vmul.f32 %v2483, %v2483
        %v3172 = vmul.f32 %v2484, %v2484
        %v3173 = vmul.f32 %v2485, %v2485
        %v3174 = vsel %vm529, %v3158, 0.0
        %v3175 = vrot.slane %v3174, 4
        %v3176 = vadd.f32 %v3174, %v3175
        %v3177 = vrot.slane %v3176, 2
        %v3178 = vadd.f32 %v3176, %v3177
        %v3179 = vrot.slane %v3178, 1
        %v3180 = vadd.f32 %v3178, %v3179
        %v3181 = vsel %vm529, %v3159, 0.0
        %v3182 = vrot.slane %v3181, 4
        %v3183 = vadd.f32 %v3181, %v3182
        %v3184 = vrot.slane %v3183, 2
        %v3185 = vadd.f32 %v3183, %v3184
        %v3186 = vrot.slane %v3185, 1
        %v3187 = vadd.f32 %v3185, %v3186
        %v3188 = vsel %vm529, %v3160, 0.0
        %v3189 = vrot.slane %v3188, 4
        %v3190 = vadd.f32 %v3188, %v3189
        %v3191 = vrot.slane %v3190, 2
        %v3192 = vadd.f32 %v3190, %v3191
        %v3193 = vrot.slane %v3192, 1
        %v3194 = vadd.f32 %v3192, %v3193
        %v3195 = vsel %vm529, %v3161, 0.0
        %v3196 = vrot.slane %v3195, 4
        %v3197 = vadd.f32 %v3195, %v3196
        %v3198 = vrot.slane %v3197, 2
        %v3199 = vadd.f32 %v3197, %v3198
        %v3200 = vrot.slane %v3199, 1
        %v3201 = vadd.f32 %v3199, %v3200
        %v3202 = vsel %vm529, %v3162, 0.0
        %v3203 = vrot.slane %v3202, 4
        %v3204 = vadd.f32 %v3202, %v3203
        %v3205 = vrot.slane %v3204, 2
        %v3206 = vadd.f32 %v3204, %v3205
        %v3207 = vrot.slane %v3206, 1
        %v3208 = vadd.f32 %v3206, %v3207
        %v3209 = vsel %vm529, %v3163, 0.0
        %v3210 = vrot.slane %v3209, 4
        %v3211 = vadd.f32 %v3209, %v3210
        %v3212 = vrot.slane %v3211, 2
        %v3213 = vadd.f32 %v3211, %v3212
        %v3214 = vrot.slane %v3213, 1
        %v3215 = vadd.f32 %v3213, %v3214
        %v3216 = vsel %vm529, %v3164, 0.0
        %v3217 = vrot.slane %v3216, 4
        %v3218 = vadd.f32 %v3216, %v3217
        %v3219 = vrot.slane %v3218, 2
        %v3220 = vadd.f32 %v3218, %v3219
        %v3221 = vrot.slane %v3220, 1
        %v3222 = vadd.f32 %v3220, %v3221
        %v3223 = vsel %vm529, %v3165, 0.0
        %v3224 = vrot.slane %v3223, 4
        %v3225 = vadd.f32 %v3223, %v3224
        %v3226 = vrot.slane %v3225, 2
        %v3227 = vadd.f32 %v3225, %v3226
        %v3228 = vrot.slane %v3227, 1
        %v3229 = vadd.f32 %v3227, %v3228
        %v3230 = vsel %vm529, %v3166, 0.0
        %v3231 = vrot.slane %v3230, 4
        %v3232 = vadd.f32 %v3230, %v3231
        %v3233 = vrot.slane %v3232, 2
        %v3234 = vadd.f32 %v3232, %v3233
        %v3235 = vrot.slane %v3234, 1
        %v3236 = vadd.f32 %v3234, %v3235
        %v3237 = vsel %vm529, %v3167, 0.0
        %v3238 = vrot.slane %v3237, 4
        %v3239 = vadd.f32 %v3237, %v3238
        %v3240 = vrot.slane %v3239, 2
        %v3241 = vadd.f32 %v3239, %v3240
        %v3242 = vrot.slane %v3241, 1
        %v3243 = vadd.f32 %v3241, %v3242
        %v3244 = vsel %vm529, %v3168, 0.0
        %v3245 = vrot.slane %v3244, 4
        %v3246 = vadd.f32 %v3244, %v3245
        %v3247 = vrot.slane %v3246, 2
        %v3248 = vadd.f32 %v3246, %v3247
        %v3249 = vrot.slane %v3248, 1
        %v3250 = vadd.f32 %v3248, %v3249
        %v3251 = vsel %vm529, %v3169, 0.0
        %v3252 = vrot.slane %v3251, 4
        %v3253 = vadd.f32 %v3251, %v3252
        %v3254 = vrot.slane %v3253, 2
        %v3255 = vadd.f32 %v3253, %v3254
        %v3256 = vrot.slane %v3255, 1
        %v3257 = vadd.f32 %v3255, %v3256
        %v3258 = vsel %vm529, %v3170, 0.0
        %v3259 = vrot.slane %v3258, 4
        %v3260 = vadd.f32 %v3258, %v3259
        %v3261 = vrot.slane %v3260, 2
        %v3262 = vadd.f32 %v3260, %v3261
        %v3263 = vrot.slane %v3262, 1
        %v3264 = vadd.f32 %v3262, %v3263
        %v3265 = vsel %vm529, %v3171, 0.0
        %v3266 = vrot.slane %v3265, 4
        %v3267 = vadd.f32 %v3265, %v3266
        %v3268 = vrot.slane %v3267, 2
        %v3269 = vadd.f32 %v3267, %v3268
        %v3270 = vrot.slane %v3269, 1
        %v3271 = vadd.f32 %v3269, %v3270
        %v3272 = vsel %vm529, %v3172, 0.0
        %v3273 = vrot.slane %v3272, 4
        %v3274 = vadd.f32 %v3272, %v3273
        %v3275 = vrot.slane %v3274, 2
        %v3276 = vadd.f32 %v3274, %v3275
        %v3277 = vrot.slane %v3276, 1
        %v3278 = vadd.f32 %v3276, %v3277
        %v3279 = vsel %vm529, %v3173, 0.0
        %v3280 = vrot.slane %v3279, 4
        %v3281 = vadd.f32 %v3279, %v3280
        %v3282 = vrot.slane %v3281, 2
        %v3283 = vadd.f32 %v3281, %v3282
        %v3284 = vrot.slane %v3283, 1
        %v3285 = vadd.f32 %v3283, %v3284
        %v3286 = vrsqrt.pop %v3180
        %v3287 = vmul.f32 %v3180, %v3286
        %vm3288 = vcmp.eq.f32.partialorder %v3180, inf
        %v3289 = vsel %vm3288, %v3180, %v3287
        %vm3290 = vcmp.eq.f32.partialorder %v3180, 0.0
        %v3291 = vand.u32 %v3180, 2147483648
        %v3292 = vsel %vm3290, %v3291, %v3289
        %v3293 = vrsqrt.pop %v3187
        %v3294 = vmul.f32 %v3187, %v3293
        %vm3295 = vcmp.eq.f32.partialorder %v3187, inf
        %v3296 = vsel %vm3295, %v3187, %v3294
        %vm3297 = vcmp.eq.f32.partialorder %v3187, 0.0
        %v3298 = vand.u32 %v3187, 2147483648
        %v3299 = vsel %vm3297, %v3298, %v3296
        %v3300 = vrsqrt.pop %v3194
        %v3301 = vmul.f32 %v3194, %v3300
        %vm3302 = vcmp.eq.f32.partialorder %v3194, inf
        %v3303 = vsel %vm3302, %v3194, %v3301
        %vm3304 = vcmp.eq.f32.partialorder %v3194, 0.0
        %v3305 = vand.u32 %v3194, 2147483648
        %v3306 = vsel %vm3304, %v3305, %v3303
        %v3307 = vrsqrt.pop %v3201
        %v3308 = vmul.f32 %v3201, %v3307
        %vm3309 = vcmp.eq.f32.partialorder %v3201, inf
        %v3310 = vsel %vm3309, %v3201, %v3308
        %vm3311 = vcmp.eq.f32.partialorder %v3201, 0.0
        %v3312 = vand.u32 %v3201, 2147483648
        %v3313 = vsel %vm3311, %v3312, %v3310
        %v3314 = vrsqrt.pop %v3208
        %v3315 = vmul.f32 %v3208, %v3314
        %vm3316 = vcmp.eq.f32.partialorder %v3208, inf
        %v3317 = vsel %vm3316, %v3208, %v3315
        %vm3318 = vcmp.eq.f32.partialorder %v3208, 0.0
        %v3319 = vand.u32 %v3208, 2147483648
        %v3320 = vsel %vm3318, %v3319, %v3317
        %v3321 = vrsqrt.pop %v3215
        %v3322 = vmul.f32 %v3215, %v3321
        %vm3323 = vcmp.eq.f32.partialorder %v3215, inf
        %v3324 = vsel %vm3323, %v3215, %v3322
        %vm3325 = vcmp.eq.f32.partialorder %v3215, 0.0
        %v3326 = vand.u32 %v3215, 2147483648
        %v3327 = vsel %vm3325, %v3326, %v3324
        %v3328 = vrsqrt.pop %v3222
        %v3329 = vmul.f32 %v3222, %v3328
        %vm3330 = vcmp.eq.f32.partialorder %v3222, inf
        %v3331 = vsel %vm3330, %v3222, %v3329
        %vm3332 = vcmp.eq.f32.partialorder %v3222, 0.0
        %v3333 = vand.u32 %v3222, 2147483648
        %v3334 = vsel %vm3332, %v3333, %v3331
        %v3335 = vrsqrt.pop %v3229
        %v3336 = vmul.f32 %v3229, %v3335
        %vm3337 = vcmp.eq.f32.partialorder %v3229, inf
        %v3338 = vsel %vm3337, %v3229, %v3336
        %vm3339 = vcmp.eq.f32.partialorder %v3229, 0.0
        %v3340 = vand.u32 %v3229, 2147483648
        %v3341 = vsel %vm3339, %v3340, %v3338
        %v3342 = vrsqrt.pop %v3236
        %v3343 = vmul.f32 %v3236, %v3342
        %vm3344 = vcmp.eq.f32.partialorder %v3236, inf
        %v3345 = vsel %vm3344, %v3236, %v3343
        %vm3346 = vcmp.eq.f32.partialorder %v3236, 0.0
        %v3347 = vand.u32 %v3236, 2147483648
        %v3348 = vsel %vm3346, %v3347, %v3345
        %v3349 = vrsqrt.pop %v3243
        %v3350 = vmul.f32 %v3243, %v3349
        %vm3351 = vcmp.eq.f32.partialorder %v3243, inf
        %v3352 = vsel %vm3351, %v3243, %v3350
        %vm3353 = vcmp.eq.f32.partialorder %v3243, 0.0
        %v3354 = vand.u32 %v3243, 2147483648
        %v3355 = vsel %vm3353, %v3354, %v3352
        %v3356 = vrsqrt.pop %v3250
        %v3357 = vmul.f32 %v3250, %v3356
        %vm3358 = vcmp.eq.f32.partialorder %v3250, inf
        %v3359 = vsel %vm3358, %v3250, %v3357
        %vm3360 = vcmp.eq.f32.partialorder %v3250, 0.0
        %v3361 = vand.u32 %v3250, 2147483648
        %v3362 = vsel %vm3360, %v3361, %v3359
        %v3363 = vrsqrt.pop %v3257
        %v3364 = vmul.f32 %v3257, %v3363
        %vm3365 = vcmp.eq.f32.partialorder %v3257, inf
        %v3366 = vsel %vm3365, %v3257, %v3364
        %vm3367 = vcmp.eq.f32.partialorder %v3257, 0.0
        %v3368 = vand.u32 %v3257, 2147483648
        %v3369 = vsel %vm3367, %v3368, %v3366
        %v3370 = vrsqrt.pop %v3264
        %v3371 = vmul.f32 %v3264, %v3370
        %vm3372 = vcmp.eq.f32.partialorder %v3264, inf
        %v3373 = vsel %vm3372, %v3264, %v3371
        %vm3374 = vcmp.eq.f32.partialorder %v3264, 0.0
        %v3375 = vand.u32 %v3264, 2147483648
        %v3376 = vsel %vm3374, %v3375, %v3373
        %v3377 = vrsqrt.pop %v3271
        %v3378 = vmul.f32 %v3271, %v3377
        %vm3379 = vcmp.eq.f32.partialorder %v3271, inf
        %v3380 = vsel %vm3379, %v3271, %v3378
        %vm3381 = vcmp.eq.f32.partialorder %v3271, 0.0
        %v3382 = vand.u32 %v3271, 2147483648
        %v3383 = vsel %vm3381, %v3382, %v3380
        %v3384 = vrsqrt.pop %v3278
        %v3385 = vmul.f32 %v3278, %v3384
        %vm3386 = vcmp.eq.f32.partialorder %v3278, inf
        %v3387 = vsel %vm3386, %v3278, %v3385
        %vm3388 = vcmp.eq.f32.partialorder %v3278, 0.0
        %v3389 = vand.u32 %v3278, 2147483648
        %v3390 = vsel %vm3388, %v3389, %v3387
        %v3391 = vrsqrt.pop %v3285
        %v3392 = vmul.f32 %v3285, %v3391
        %vm3393 = vcmp.eq.f32.partialorder %v3285, inf
        %v3394 = vsel %vm3393, %v3285, %v3392
        %vm3395 = vcmp.eq.f32.partialorder %v3285, 0.0
        %v3396 = vand.u32 %v3285, 2147483648
        %v3397 = vsel %vm3395, %v3396, %v3394
        %v3398 = vmax.f32 %v3292, 1e-12
        %v3399 = vmax.f32 %v3299, 1e-12
        %v3400 = vmax.f32 %v3306, 1e-12
        %v3401 = vmax.f32 %v3313, 1e-12
        %v3402 = vmax.f32 %v3320, 1e-12
        %v3403 = vmax.f32 %v3327, 1e-12
        %v3404 = vmax.f32 %v3334, 1e-12
        %v3405 = vmax.f32 %v3341, 1e-12
        %v3406 = vmax.f32 %v3348, 1e-12
        %v3407 = vmax.f32 %v3355, 1e-12
        %v3408 = vmax.f32 %v3362, 1e-12
        %v3409 = vmax.f32 %v3369, 1e-12
        %v3410 = vmax.f32 %v3376, 1e-12
        %v3411 = vmax.f32 %v3383, 1e-12
        %v3412 = vmax.f32 %v3390, 1e-12
        %v3413 = vmax.f32 %v3397, 1e-12
        %v3414 = vrcp.pop %v3398
        %v3415 = vmul.f32 %v2470, %v3414
        %v3416 = vrcp.pop %v3399
        %v3417 = vmul.f32 %v2471, %v3416
        %v3418 = vrcp.pop %v3400
        %v3419 = vmul.f32 %v2472, %v3418
        %v3420 = vrcp.pop %v3401
        %v3421 = vmul.f32 %v2473, %v3420
        %v3422 = vrcp.pop %v3402
        %v3423 = vmul.f32 %v2474, %v3422
        %v3424 = vrcp.pop %v3403
        %v3425 = vmul.f32 %v2475, %v3424
        %v3426 = vrcp.pop %v3404
        %v3427 = vmul.f32 %v2476, %v3426
        %v3428 = vrcp.pop %v3405
        %v3429 = vmul.f32 %v2477, %v3428
        %v3430 = vrcp.pop %v3406
        %v3431 = vmul.f32 %v2478, %v3430
        %v3432 = vrcp.pop %v3407
        %v3433 = vmul.f32 %v2479, %v3432
        %v3434 = vrcp.pop %v3408
        %v3435 = vmul.f32 %v2480, %v3434
        %v3436 = vrcp.pop %v3409
        %v3437 = vmul.f32 %v2481, %v3436
        %v3438 = vrcp.pop %v3410
        %v3439 = vmul.f32 %v2482, %v3438
        %v3440 = vrcp.pop %v3411
        %v3441 = vmul.f32 %v2483, %v3440
        %v3442 = vrcp.pop %v3412
        %v3443 = vmul.f32 %v2484, %v3442
        %v3444 = vrcp.pop %v3413
        %v3445 = vmul.f32 %v2485, %v3444
        %v3446 = vrot.slane %v314, 1
        %v3447 = vrot.slane %v315, 1
        %v3448 = vrot.slane %v316, 1
        %v3449 = vrot.slane %v317, 1
        %v3450 = vrot.slane %v318, 1
        %v3451 = vrot.slane %v319, 1
        %v3452 = vrot.slane %v320, 1
        %v3453 = vrot.slane %v321, 1
        %v3454 = vrot.slane %v322, 1
        %v3455 = vrot.slane %v323, 1
        %v3456 = vrot.slane %v324, 1
        %v3457 = vrot.slane %v325, 1
        %v3458 = vrot.slane %v326, 1
        %v3459 = vrot.slane %v327, 1
        %v3460 = vrot.slane %v328, 1
        %v3461 = vrot.slane %v329, 1
        %v3478 = vmul.f32 %v378, %v3446
        %v3479 = vmul.f32 %v379, %v3447
        %v3480 = vmul.f32 %v380, %v3448
        %v3481 = vmul.f32 %v381, %v3449
        %v3482 = vmul.f32 %v382, %v3450
        %v3483 = vmul.f32 %v383, %v3451
        %v3484 = vmul.f32 %v384, %v3452
        %v3485 = vmul.f32 %v385, %v3453
        %v3486 = vmul.f32 %v386, %v3454
        %v3487 = vmul.f32 %v387, %v3455
        %v3488 = vmul.f32 %v388, %v3456
        %v3489 = vmul.f32 %v389, %v3457
        %v3490 = vmul.f32 %v390, %v3458
        %v3491 = vmul.f32 %v391, %v3459
        %v3492 = vmul.f32 %v392, %v3460
        %v3493 = vmul.f32 %v393, %v3461
        %v3510 = vrot.slane %v3127, 4
        %v3511 = vrot.slane %v3129, 4
        %v3512 = vrot.slane %v3131, 4
        %v3513 = vrot.slane %v3133, 4
        %v3514 = vrot.slane %v3135, 4
        %v3515 = vrot.slane %v3137, 4
        %v3516 = vrot.slane %v3139, 4
        %v3517 = vrot.slane %v3141, 4
        %v3518 = vrot.slane %v3143, 4
        %v3519 = vrot.slane %v3145, 4
        %v3520 = vrot.slane %v3147, 4
        %v3521 = vrot.slane %v3149, 4
        %v3522 = vrot.slane %v3151, 4
        %v3523 = vrot.slane %v3153, 4
        %v3524 = vrot.slane %v3155, 4
        %v3525 = vrot.slane %v3157, 4
        %v3542 = vsub.f32 %v3415, %v3510
        %v3543 = vsub.f32 %v3417, %v3511
        %v3544 = vsub.f32 %v3419, %v3512
        %v3545 = vsub.f32 %v3421, %v3513
        %v3546 = vsub.f32 %v3423, %v3514
        %v3547 = vsub.f32 %v3425, %v3515
        %v3548 = vsub.f32 %v3427, %v3516
        %v3549 = vsub.f32 %v3429, %v3517
        %v3550 = vsub.f32 %v3431, %v3518
        %v3551 = vsub.f32 %v3433, %v3519
        %v3552 = vsub.f32 %v3435, %v3520
        %v3553 = vsub.f32 %v3437, %v3521
        %v3554 = vsub.f32 %v3439, %v3522
        %v3555 = vsub.f32 %v3441, %v3523
        %v3556 = vsub.f32 %v3443, %v3524
        %v3557 = vsub.f32 %v3445, %v3525
        %v3558 = vand.u32 2147483647, %v3542
        %v3559 = vand.u32 2147483647, %v3543
        %v3560 = vand.u32 2147483647, %v3544
        %v3561 = vand.u32 2147483647, %v3545
        %v3562 = vand.u32 2147483647, %v3546
        %v3563 = vand.u32 2147483647, %v3547
        %v3564 = vand.u32 2147483647, %v3548
        %v3565 = vand.u32 2147483647, %v3549
        %v3566 = vand.u32 2147483647, %v3550
        %v3567 = vand.u32 2147483647, %v3551
        %v3568 = vand.u32 2147483647, %v3552
        %v3569 = vand.u32 2147483647, %v3553
        %v3570 = vand.u32 2147483647, %v3554
        %v3571 = vand.u32 2147483647, %v3555
        %v3572 = vand.u32 2147483647, %v3556
        %v3573 = vand.u32 2147483647, %v3557
        %vm3574 = vcmp.lt.f32.partialorder %v3558, 1.0
        %vm3575 = vcmp.lt.f32.partialorder %v3559, 1.0
        %vm3576 = vcmp.lt.f32.partialorder %v3560, 1.0
        %vm3577 = vcmp.lt.f32.partialorder %v3561, 1.0
        %vm3578 = vcmp.lt.f32.partialorder %v3562, 1.0
        %vm3579 = vcmp.lt.f32.partialorder %v3563, 1.0
        %vm3580 = vcmp.lt.f32.partialorder %v3564, 1.0
        %vm3581 = vcmp.lt.f32.partialorder %v3565, 1.0
        %vm3582 = vcmp.lt.f32.partialorder %v3566, 1.0
        %vm3583 = vcmp.lt.f32.partialorder %v3567, 1.0
        %vm3584 = vcmp.lt.f32.partialorder %v3568, 1.0
        %vm3585 = vcmp.lt.f32.partialorder %v3569, 1.0
        %vm3586 = vcmp.lt.f32.partialorder %v3570, 1.0
        %vm3587 = vcmp.lt.f32.partialorder %v3571, 1.0
        %vm3588 = vcmp.lt.f32.partialorder %v3572, 1.0
        %vm3589 = vcmp.lt.f32.partialorder %v3573, 1.0
        %v3590 = vmul.f32 %v3542, 0.5
        %v3591 = vmul.f32 %v3543, 0.5
        %v3592 = vmul.f32 %v3544, 0.5
        %v3593 = vmul.f32 %v3545, 0.5
        %v3594 = vmul.f32 %v3546, 0.5
        %v3595 = vmul.f32 %v3547, 0.5
        %v3596 = vmul.f32 %v3548, 0.5
        %v3597 = vmul.f32 %v3549, 0.5
        %v3598 = vmul.f32 %v3550, 0.5
        %v3599 = vmul.f32 %v3551, 0.5
        %v3600 = vmul.f32 %v3552, 0.5
        %v3601 = vmul.f32 %v3553, 0.5
        %v3602 = vmul.f32 %v3554, 0.5
        %v3603 = vmul.f32 %v3555, 0.5
        %v3604 = vmul.f32 %v3556, 0.5
        %v3605 = vmul.f32 %v3557, 0.5
        %v3606 = vmul.f32 %v3590, %v3542
        %v3607 = vmul.f32 %v3591, %v3543
        %v3608 = vmul.f32 %v3592, %v3544
        %v3609 = vmul.f32 %v3593, %v3545
        %v3610 = vmul.f32 %v3594, %v3546
        %v3611 = vmul.f32 %v3595, %v3547
        %v3612 = vmul.f32 %v3596, %v3548
        %v3613 = vmul.f32 %v3597, %v3549
        %v3614 = vmul.f32 %v3598, %v3550
        %v3615 = vmul.f32 %v3599, %v3551
        %v3616 = vmul.f32 %v3600, %v3552
        %v3617 = vmul.f32 %v3601, %v3553
        %v3618 = vmul.f32 %v3602, %v3554
        %v3619 = vmul.f32 %v3603, %v3555
        %v3620 = vmul.f32 %v3604, %v3556
        %v3621 = vmul.f32 %v3605, %v3557
        %v3622 = vsub.f32 %v3558, 0.5
        %v3623 = vsub.f32 %v3559, 0.5
        %v3624 = vsub.f32 %v3560, 0.5
        %v3625 = vsub.f32 %v3561, 0.5
        %v3626 = vsub.f32 %v3562, 0.5
        %v3627 = vsub.f32 %v3563, 0.5
        %v3628 = vsub.f32 %v3564, 0.5
        %v3629 = vsub.f32 %v3565, 0.5
        %v3630 = vsub.f32 %v3566, 0.5
        %v3631 = vsub.f32 %v3567, 0.5
        %v3632 = vsub.f32 %v3568, 0.5
        %v3633 = vsub.f32 %v3569, 0.5
        %v3634 = vsub.f32 %v3570, 0.5
        %v3635 = vsub.f32 %v3571, 0.5
        %v3636 = vsub.f32 %v3572, 0.5
        %v3637 = vsub.f32 %v3573, 0.5
        %v3638 = vsel %vm3574, %v3606, %v3622
        %v3639 = vsel %vm3575, %v3607, %v3623
        %v3640 = vsel %vm3576, %v3608, %v3624
        %v3641 = vsel %vm3577, %v3609, %v3625
        %v3642 = vsel %vm3578, %v3610, %v3626
        %v3643 = vsel %vm3579, %v3611, %v3627
        %v3644 = vsel %vm3580, %v3612, %v3628
        %v3645 = vsel %vm3581, %v3613, %v3629
        %v3646 = vsel %vm3582, %v3614, %v3630
        %v3647 = vsel %vm3583, %v3615, %v3631
        %v3648 = vsel %vm3584, %v3616, %v3632
        %v3649 = vsel %vm3585, %v3617, %v3633
        %v3650 = vsel %vm3586, %v3618, %v3634
        %v3651 = vsel %vm3587, %v3619, %v3635
        %v3652 = vsel %vm3588, %v3620, %v3636
        %v3653 = vsel %vm3589, %v3621, %v3637
        %s3654 = scalar_lea.vmem [#allocation2], 5
        %v3655 = vld [vmem:[%s3654] ss:$8 sm:$0xf]
        %v3656 = vld [vmem:[%s3654] ss:$8 sm:$0xf0]
        %v3657 = vor.u32 %v3655, %v3656
        %s3658 = scalar_lea.vmem [#allocation2], 69
        %v3659 = vld [vmem:[%s3658] ss:$8 sm:$0xf]
        %v3660 = vld [vmem:[%s3658] ss:$8 sm:$0xf0]
        %v3661 = vor.u32 %v3659, %v3660
        %v3662 = vsel %vm529, %v3638, 0.0
        %v3663 = vrot.slane %v3662, 4
        %v3664 = vadd.f32 %v3662, %v3663
        %v3665 = vrot.slane %v3664, 2
        %v3666 = vadd.f32 %v3664, %v3665
        %v3667 = vrot.slane %v3666, 1
        %v3668 = vadd.f32 %v3666, %v3667
        %v3669 = vsel %vm529, %v3639, 0.0
        %v3670 = vrot.slane %v3669, 4
        %v3671 = vadd.f32 %v3669, %v3670
        %v3672 = vrot.slane %v3671, 2
        %v3673 = vadd.f32 %v3671, %v3672
        %v3674 = vrot.slane %v3673, 1
        %v3675 = vadd.f32 %v3673, %v3674
        %v3676 = vsel %vm529, %v3640, 0.0
        %v3677 = vrot.slane %v3676, 4
        %v3678 = vadd.f32 %v3676, %v3677
        %v3679 = vrot.slane %v3678, 2
        %v3680 = vadd.f32 %v3678, %v3679
        %v3681 = vrot.slane %v3680, 1
        %v3682 = vadd.f32 %v3680, %v3681
        %v3683 = vsel %vm529, %v3641, 0.0
        %v3684 = vrot.slane %v3683, 4
        %v3685 = vadd.f32 %v3683, %v3684
        %v3686 = vrot.slane %v3685, 2
        %v3687 = vadd.f32 %v3685, %v3686
        %v3688 = vrot.slane %v3687, 1
        %v3689 = vadd.f32 %v3687, %v3688
        %v3690 = vsel %vm529, %v3642, 0.0
        %v3691 = vrot.slane %v3690, 4
        %v3692 = vadd.f32 %v3690, %v3691
        %v3693 = vrot.slane %v3692, 2
        %v3694 = vadd.f32 %v3692, %v3693
        %v3695 = vrot.slane %v3694, 1
        %v3696 = vadd.f32 %v3694, %v3695
        %v3697 = vsel %vm529, %v3643, 0.0
        %v3698 = vrot.slane %v3697, 4
        %v3699 = vadd.f32 %v3697, %v3698
        %v3700 = vrot.slane %v3699, 2
        %v3701 = vadd.f32 %v3699, %v3700
        %v3702 = vrot.slane %v3701, 1
        %v3703 = vadd.f32 %v3701, %v3702
        %v3704 = vsel %vm529, %v3644, 0.0
        %v3705 = vrot.slane %v3704, 4
        %v3706 = vadd.f32 %v3704, %v3705
        %v3707 = vrot.slane %v3706, 2
        %v3708 = vadd.f32 %v3706, %v3707
        %v3709 = vrot.slane %v3708, 1
        %v3710 = vadd.f32 %v3708, %v3709
        %v3711 = vsel %vm529, %v3645, 0.0
        %v3712 = vrot.slane %v3711, 4
        %v3713 = vadd.f32 %v3711, %v3712
        %v3714 = vrot.slane %v3713, 2
        %v3715 = vadd.f32 %v3713, %v3714
        %v3716 = vrot.slane %v3715, 1
        %v3717 = vadd.f32 %v3715, %v3716
        %v3718 = vsel %vm529, %v3646, 0.0
        %v3719 = vrot.slane %v3718, 4
        %v3720 = vadd.f32 %v3718, %v3719
        %v3721 = vrot.slane %v3720, 2
        %v3722 = vadd.f32 %v3720, %v3721
        %v3723 = vrot.slane %v3722, 1
        %v3724 = vadd.f32 %v3722, %v3723
        %v3725 = vsel %vm529, %v3647, 0.0
        %v3726 = vrot.slane %v3725, 4
        %v3727 = vadd.f32 %v3725, %v3726
        %v3728 = vrot.slane %v3727, 2
        %v3729 = vadd.f32 %v3727, %v3728
        %v3730 = vrot.slane %v3729, 1
        %v3731 = vadd.f32 %v3729, %v3730
        %v3732 = vsel %vm529, %v3648, 0.0
        %v3733 = vrot.slane %v3732, 4
        %v3734 = vadd.f32 %v3732, %v3733
        %v3735 = vrot.slane %v3734, 2
        %v3736 = vadd.f32 %v3734, %v3735
        %v3737 = vrot.slane %v3736, 1
        %v3738 = vadd.f32 %v3736, %v3737
        %v3739 = vsel %vm529, %v3649, 0.0
        %v3740 = vrot.slane %v3739, 4
        %v3741 = vadd.f32 %v3739, %v3740
        %v3742 = vrot.slane %v3741, 2
        %v3743 = vadd.f32 %v3741, %v3742
        %v3744 = vrot.slane %v3743, 1
        %v3745 = vadd.f32 %v3743, %v3744
        %v3746 = vsel %vm529, %v3650, 0.0
        %v3747 = vrot.slane %v3746, 4
        %v3748 = vadd.f32 %v3746, %v3747
        %v3749 = vrot.slane %v3748, 2
        %v3750 = vadd.f32 %v3748, %v3749
        %v3751 = vrot.slane %v3750, 1
        %v3752 = vadd.f32 %v3750, %v3751
        %v3753 = vsel %vm529, %v3651, 0.0
        %v3754 = vrot.slane %v3753, 4
        %v3755 = vadd.f32 %v3753, %v3754
        %v3756 = vrot.slane %v3755, 2
        %v3757 = vadd.f32 %v3755, %v3756
        %v3758 = vrot.slane %v3757, 1
        %v3759 = vadd.f32 %v3757, %v3758
        %v3760 = vsel %vm529, %v3652, 0.0
        %v3761 = vrot.slane %v3760, 4
        %v3762 = vadd.f32 %v3760, %v3761
        %v3763 = vrot.slane %v3762, 2
        %v3764 = vadd.f32 %v3762, %v3763
        %v3765 = vrot.slane %v3764, 1
        %v3766 = vadd.f32 %v3764, %v3765
        %v3767 = vsel %vm529, %v3653, 0.0
        %v3768 = vrot.slane %v3767, 4
        %v3769 = vadd.f32 %v3767, %v3768
        %v3770 = vrot.slane %v3769, 2
        %v3771 = vadd.f32 %v3769, %v3770
        %v3772 = vrot.slane %v3771, 1
        %v3773 = vadd.f32 %v3771, %v3772
        %v3774 = vmul.f32 %v3668, %v3478
        %v3775 = vmul.f32 %v3675, %v3479
        %v3776 = vmul.f32 %v3682, %v3480
        %v3777 = vmul.f32 %v3689, %v3481
        %v3778 = vmul.f32 %v3696, %v3482
        %v3779 = vmul.f32 %v3703, %v3483
        %v3780 = vmul.f32 %v3710, %v3484
        %v3781 = vmul.f32 %v3717, %v3485
        %v3782 = vmul.f32 %v3724, %v3486
        %v3783 = vmul.f32 %v3731, %v3487
        %v3784 = vmul.f32 %v3738, %v3488
        %v3785 = vmul.f32 %v3745, %v3489
        %v3786 = vmul.f32 %v3752, %v3490
        %v3787 = vmul.f32 %v3759, %v3491
        %v3788 = vmul.f32 %v3766, %v3492
        %v3789 = vmul.f32 %v3773, %v3493
        %v3806 = vcombine.high %v3774, %v3775
        %v3807 = vcombine.high %v3776, %v3777
        %v3808 = vcombine.high %v3778, %v3779
        %v3809 = vcombine.high %v3780, %v3781
        %v3811 = vunpack.c.l.s4 1966171168
        %v3812 = vunpack.c.0.s8 %v3811
        %v3813 = vlaneseq
        %v3814 = vshrl.u32 %v3813, 7
        %v3815 = vsub.s32 %v3812, %v3814
        %v3816 = vrot.slane %v3806, %v3815
        %v3818 = vunpack.c.l.s4 1966171168
        %v3819 = vunpack.c.0.s8 %v3818
        %v3820 = vlaneseq
        %v3821 = vshrl.u32 %v3820, 7
        %v3822 = vsub.s32 %v3819, %v3821
        %v3823 = vrot.slane %v3807, %v3822
        %v3825 = vunpack.c.l.s4 1966171168
        %v3826 = vunpack.c.0.s8 %v3825
        %v3827 = vlaneseq
        %v3828 = vshrl.u32 %v3827, 7
        %v3829 = vsub.s32 %v3826, %v3828
        %v3830 = vrot.slane %v3808, %v3829
        %v3832 = vunpack.c.l.s4 1966171168
        %v3833 = vunpack.c.0.s8 %v3832
        %v3834 = vlaneseq
        %v3835 = vshrl.u32 %v3834, 7
        %v3836 = vsub.s32 %v3833, %v3835
        %v3837 = vrot.slane %v3809, %v3836
        %v3838 = vcombine.low %v3816, %v3823
        %v3839 = vcombine.low %v3830, %v3837
        %v3841 = vunpack.c.l.s4 1966171168
        %v3842 = vunpack.c.0.s8 %v3841
        %v3843 = vlaneseq
        %v3844 = vshrl.u32 %v3843, 7
        %v3845 = vsub.s32 %v3842, %v3844
        %v3846 = vrot.slane %v3838, %v3845
        %v3848 = vunpack.c.l.s4 1966171168
        %v3849 = vunpack.c.0.s8 %v3848
        %v3850 = vlaneseq
        %v3851 = vshrl.u32 %v3850, 7
        %v3852 = vsub.s32 %v3849, %v3851
        %v3853 = vrot.slane %v3839, %v3852
        %v3854 = vcombine.high %v3846, %v3853
        %v3855 = vcombine.high %v3782, %v3783
        %v3856 = vcombine.high %v3784, %v3785
        %v3857 = vcombine.high %v3786, %v3787
        %v3858 = vcombine.high %v3788, %v3789
        %v3860 = vunpack.c.l.s4 1966171168
        %v3861 = vunpack.c.0.s8 %v3860
        %v3862 = vlaneseq
        %v3863 = vshrl.u32 %v3862, 7
        %v3864 = vsub.s32 %v3861, %v3863
        %v3865 = vrot.slane %v3855, %v3864
        %v3867 = vunpack.c.l.s4 1966171168
        %v3868 = vunpack.c.0.s8 %v3867
        %v3869 = vlaneseq
        %v3870 = vshrl.u32 %v3869, 7
        %v3871 = vsub.s32 %v3868, %v3870
        %v3872 = vrot.slane %v3856, %v3871
        %v3874 = vunpack.c.l.s4 1966171168
        %v3875 = vunpack.c.0.s8 %v3874
        %v3876 = vlaneseq
        %v3877 = vshrl.u32 %v3876, 7
        %v3878 = vsub.s32 %v3875, %v3877
        %v3879 = vrot.slane %v3857, %v3878
        %v3881 = vunpack.c.l.s4 1966171168
        %v3882 = vunpack.c.0.s8 %v3881
        %v3883 = vlaneseq
        %v3884 = vshrl.u32 %v3883, 7
        %v3885 = vsub.s32 %v3882, %v3884
        %v3886 = vrot.slane %v3858, %v3885
        %v3887 = vcombine.low %v3865, %v3872
        %v3888 = vcombine.low %v3879, %v3886
        %v3890 = vunpack.c.l.s4 1966171168
        %v3891 = vunpack.c.0.s8 %v3890
        %v3892 = vlaneseq
        %v3893 = vshrl.u32 %v3892, 7
        %v3894 = vsub.s32 %v3891, %v3893
        %v3895 = vrot.slane %v3887, %v3894
        %v3897 = vunpack.c.l.s4 1966171168
        %v3898 = vunpack.c.0.s8 %v3897
        %v3899 = vlaneseq
        %v3900 = vshrl.u32 %v3899, 7
        %v3901 = vsub.s32 %v3898, %v3900
        %v3902 = vrot.slane %v3888, %v3901
        %v3903 = vcombine.high %v3895, %v3902
        %v3906 = vadd.f32 %v3657, %v3854
        %v3907 = vadd.f32 %v3661, %v3903
        %3908 = vst [vmem:[%s3654] ss:$8 sm:$0xf] %v3906
        %3909 = vst [vmem:[%s3654] ss:$8 sm:$0xf0] %v3906
        %3910 = vst [vmem:[%s3658] ss:$8 sm:$0xf] %v3907
        %3911 = vst [vmem:[%s3658] ss:$8 sm:$0xf0] %v3907
        %s3912 = scalar_lea.vmem [#allocation2], 6
        %v3913 = vld [vmem:[%s3912] ss:$8 sm:$0xf]
        %v3914 = vld [vmem:[%s3912] ss:$8 sm:$0xf0]
        %v3915 = vor.u32 %v3913, %v3914
        %s3916 = scalar_lea.vmem [#allocation2], 70
        %v3917 = vld [vmem:[%s3916] ss:$8 sm:$0xf]
        %v3918 = vld [vmem:[%s3916] ss:$8 sm:$0xf0]
        %v3919 = vor.u32 %v3917, %v3918
        %v3920 = vmul.f32 %v3415, %v3510
        %v3921 = vmul.f32 %v3417, %v3511
        %v3922 = vmul.f32 %v3419, %v3512
        %v3923 = vmul.f32 %v3421, %v3513
        %v3924 = vmul.f32 %v3423, %v3514
        %v3925 = vmul.f32 %v3425, %v3515
        %v3926 = vmul.f32 %v3427, %v3516
        %v3927 = vmul.f32 %v3429, %v3517
        %v3928 = vmul.f32 %v3431, %v3518
        %v3929 = vmul.f32 %v3433, %v3519
        %v3930 = vmul.f32 %v3435, %v3520
        %v3931 = vmul.f32 %v3437, %v3521
        %v3932 = vmul.f32 %v3439, %v3522
        %v3933 = vmul.f32 %v3441, %v3523
        %v3934 = vmul.f32 %v3443, %v3524
        %v3935 = vmul.f32 %v3445, %v3525
        %v3936 = vsel %vm529, %v3920, 0.0
        %v3937 = vrot.slane %v3936, 4
        %v3938 = vadd.f32 %v3936, %v3937
        %v3939 = vrot.slane %v3938, 2
        %v3940 = vadd.f32 %v3938, %v3939
        %v3941 = vrot.slane %v3940, 1
        %v3942 = vadd.f32 %v3940, %v3941
        %v3943 = vsel %vm529, %v3921, 0.0
        %v3944 = vrot.slane %v3943, 4
        %v3945 = vadd.f32 %v3943, %v3944
        %v3946 = vrot.slane %v3945, 2
        %v3947 = vadd.f32 %v3945, %v3946
        %v3948 = vrot.slane %v3947, 1
        %v3949 = vadd.f32 %v3947, %v3948
        %v3950 = vsel %vm529, %v3922, 0.0
        %v3951 = vrot.slane %v3950, 4
        %v3952 = vadd.f32 %v3950, %v3951
        %v3953 = vrot.slane %v3952, 2
        %v3954 = vadd.f32 %v3952, %v3953
        %v3955 = vrot.slane %v3954, 1
        %v3956 = vadd.f32 %v3954, %v3955
        %v3957 = vsel %vm529, %v3923, 0.0
        %v3958 = vrot.slane %v3957, 4
        %v3959 = vadd.f32 %v3957, %v3958
        %v3960 = vrot.slane %v3959, 2
        %v3961 = vadd.f32 %v3959, %v3960
        %v3962 = vrot.slane %v3961, 1
        %v3963 = vadd.f32 %v3961, %v3962
        %v3964 = vsel %vm529, %v3924, 0.0
        %v3965 = vrot.slane %v3964, 4
        %v3966 = vadd.f32 %v3964, %v3965
        %v3967 = vrot.slane %v3966, 2
        %v3968 = vadd.f32 %v3966, %v3967
        %v3969 = vrot.slane %v3968, 1
        %v3970 = vadd.f32 %v3968, %v3969
        %v3971 = vsel %vm529, %v3925, 0.0
        %v3972 = vrot.slane %v3971, 4
        %v3973 = vadd.f32 %v3971, %v3972
        %v3974 = vrot.slane %v3973, 2
        %v3975 = vadd.f32 %v3973, %v3974
        %v3976 = vrot.slane %v3975, 1
        %v3977 = vadd.f32 %v3975, %v3976
        %v3978 = vsel %vm529, %v3926, 0.0
        %v3979 = vrot.slane %v3978, 4
        %v3980 = vadd.f32 %v3978, %v3979
        %v3981 = vrot.slane %v3980, 2
        %v3982 = vadd.f32 %v3980, %v3981
        %v3983 = vrot.slane %v3982, 1
        %v3984 = vadd.f32 %v3982, %v3983
        %v3985 = vsel %vm529, %v3927, 0.0
        %v3986 = vrot.slane %v3985, 4
        %v3987 = vadd.f32 %v3985, %v3986
        %v3988 = vrot.slane %v3987, 2
        %v3989 = vadd.f32 %v3987, %v3988
        %v3990 = vrot.slane %v3989, 1
        %v3991 = vadd.f32 %v3989, %v3990
        %v3992 = vsel %vm529, %v3928, 0.0
        %v3993 = vrot.slane %v3992, 4
        %v3994 = vadd.f32 %v3992, %v3993
        %v3995 = vrot.slane %v3994, 2
        %v3996 = vadd.f32 %v3994, %v3995
        %v3997 = vrot.slane %v3996, 1
        %v3998 = vadd.f32 %v3996, %v3997
        %v3999 = vsel %vm529, %v3929, 0.0
        %v4000 = vrot.slane %v3999, 4
        %v4001 = vadd.f32 %v3999, %v4000
        %v4002 = vrot.slane %v4001, 2
        %v4003 = vadd.f32 %v4001, %v4002
        %v4004 = vrot.slane %v4003, 1
        %v4005 = vadd.f32 %v4003, %v4004
        %v4006 = vsel %vm529, %v3930, 0.0
        %v4007 = vrot.slane %v4006, 4
        %v4008 = vadd.f32 %v4006, %v4007
        %v4009 = vrot.slane %v4008, 2
        %v4010 = vadd.f32 %v4008, %v4009
        %v4011 = vrot.slane %v4010, 1
        %v4012 = vadd.f32 %v4010, %v4011
        %v4013 = vsel %vm529, %v3931, 0.0
        %v4014 = vrot.slane %v4013, 4
        %v4015 = vadd.f32 %v4013, %v4014
        %v4016 = vrot.slane %v4015, 2
        %v4017 = vadd.f32 %v4015, %v4016
        %v4018 = vrot.slane %v4017, 1
        %v4019 = vadd.f32 %v4017, %v4018
        %v4020 = vsel %vm529, %v3932, 0.0
        %v4021 = vrot.slane %v4020, 4
        %v4022 = vadd.f32 %v4020, %v4021
        %v4023 = vrot.slane %v4022, 2
        %v4024 = vadd.f32 %v4022, %v4023
        %v4025 = vrot.slane %v4024, 1
        %v4026 = vadd.f32 %v4024, %v4025
        %v4027 = vsel %vm529, %v3933, 0.0
        %v4028 = vrot.slane %v4027, 4
        %v4029 = vadd.f32 %v4027, %v4028
        %v4030 = vrot.slane %v4029, 2
        %v4031 = vadd.f32 %v4029, %v4030
        %v4032 = vrot.slane %v4031, 1
        %v4033 = vadd.f32 %v4031, %v4032
        %v4034 = vsel %vm529, %v3934, 0.0
        %v4035 = vrot.slane %v4034, 4
        %v4036 = vadd.f32 %v4034, %v4035
        %v4037 = vrot.slane %v4036, 2
        %v4038 = vadd.f32 %v4036, %v4037
        %v4039 = vrot.slane %v4038, 1
        %v4040 = vadd.f32 %v4038, %v4039
        %v4041 = vsel %vm529, %v3935, 0.0
        %v4042 = vrot.slane %v4041, 4
        %v4043 = vadd.f32 %v4041, %v4042
        %v4044 = vrot.slane %v4043, 2
        %v4045 = vadd.f32 %v4043, %v4044
        %v4046 = vrot.slane %v4045, 1
        %v4047 = vadd.f32 %v4045, %v4046
        %v4048 = vsub.f32 1.0, %v3942
        %v4049 = vsub.f32 1.0, %v3949
        %v4050 = vsub.f32 1.0, %v3956
        %v4051 = vsub.f32 1.0, %v3963
        %v4052 = vsub.f32 1.0, %v3970
        %v4053 = vsub.f32 1.0, %v3977
        %v4054 = vsub.f32 1.0, %v3984
        %v4055 = vsub.f32 1.0, %v3991
        %v4056 = vsub.f32 1.0, %v3998
        %v4057 = vsub.f32 1.0, %v4005
        %v4058 = vsub.f32 1.0, %v4012
        %v4059 = vsub.f32 1.0, %v4019
        %v4060 = vsub.f32 1.0, %v4026
        %v4061 = vsub.f32 1.0, %v4033
        %v4062 = vsub.f32 1.0, %v4040
        %v4063 = vsub.f32 1.0, %v4047
        %v4064 = vmul.f32 %v4048, %v3478
        %v4065 = vmul.f32 %v4049, %v3479
        %v4066 = vmul.f32 %v4050, %v3480
        %v4067 = vmul.f32 %v4051, %v3481
        %v4068 = vmul.f32 %v4052, %v3482
        %v4069 = vmul.f32 %v4053, %v3483
        %v4070 = vmul.f32 %v4054, %v3484
        %v4071 = vmul.f32 %v4055, %v3485
        %v4072 = vmul.f32 %v4056, %v3486
        %v4073 = vmul.f32 %v4057, %v3487
        %v4074 = vmul.f32 %v4058, %v3488
        %v4075 = vmul.f32 %v4059, %v3489
        %v4076 = vmul.f32 %v4060, %v3490
        %v4077 = vmul.f32 %v4061, %v3491
        %v4078 = vmul.f32 %v4062, %v3492
        %v4079 = vmul.f32 %v4063, %v3493
        %v4096 = vcombine.high %v4064, %v4065
        %v4097 = vcombine.high %v4066, %v4067
        %v4098 = vcombine.high %v4068, %v4069
        %v4099 = vcombine.high %v4070, %v4071
        %v4101 = vunpack.c.l.s4 1966171168
        %v4102 = vunpack.c.0.s8 %v4101
        %v4103 = vlaneseq
        %v4104 = vshrl.u32 %v4103, 7
        %v4105 = vsub.s32 %v4102, %v4104
        %v4106 = vrot.slane %v4096, %v4105
        %v4108 = vunpack.c.l.s4 1966171168
        %v4109 = vunpack.c.0.s8 %v4108
        %v4110 = vlaneseq
        %v4111 = vshrl.u32 %v4110, 7
        %v4112 = vsub.s32 %v4109, %v4111
        %v4113 = vrot.slane %v4097, %v4112
        %v4115 = vunpack.c.l.s4 1966171168
        %v4116 = vunpack.c.0.s8 %v4115
        %v4117 = vlaneseq
        %v4118 = vshrl.u32 %v4117, 7
        %v4119 = vsub.s32 %v4116, %v4118
        %v4120 = vrot.slane %v4098, %v4119
        %v4122 = vunpack.c.l.s4 1966171168
        %v4123 = vunpack.c.0.s8 %v4122
        %v4124 = vlaneseq
        %v4125 = vshrl.u32 %v4124, 7
        %v4126 = vsub.s32 %v4123, %v4125
        %v4127 = vrot.slane %v4099, %v4126
        %v4128 = vcombine.low %v4106, %v4113
        %v4129 = vcombine.low %v4120, %v4127
        %v4131 = vunpack.c.l.s4 1966171168
        %v4132 = vunpack.c.0.s8 %v4131
        %v4133 = vlaneseq
        %v4134 = vshrl.u32 %v4133, 7
        %v4135 = vsub.s32 %v4132, %v4134
        %v4136 = vrot.slane %v4128, %v4135
        %v4138 = vunpack.c.l.s4 1966171168
        %v4139 = vunpack.c.0.s8 %v4138
        %v4140 = vlaneseq
        %v4141 = vshrl.u32 %v4140, 7
        %v4142 = vsub.s32 %v4139, %v4141
        %v4143 = vrot.slane %v4129, %v4142
        %v4144 = vcombine.high %v4136, %v4143
        %v4145 = vcombine.high %v4072, %v4073
        %v4146 = vcombine.high %v4074, %v4075
        %v4147 = vcombine.high %v4076, %v4077
        %v4148 = vcombine.high %v4078, %v4079
        %v4150 = vunpack.c.l.s4 1966171168
        %v4151 = vunpack.c.0.s8 %v4150
        %v4152 = vlaneseq
        %v4153 = vshrl.u32 %v4152, 7
        %v4154 = vsub.s32 %v4151, %v4153
        %v4155 = vrot.slane %v4145, %v4154
        %v4157 = vunpack.c.l.s4 1966171168
        %v4158 = vunpack.c.0.s8 %v4157
        %v4159 = vlaneseq
        %v4160 = vshrl.u32 %v4159, 7
        %v4161 = vsub.s32 %v4158, %v4160
        %v4162 = vrot.slane %v4146, %v4161
        %v4164 = vunpack.c.l.s4 1966171168
        %v4165 = vunpack.c.0.s8 %v4164
        %v4166 = vlaneseq
        %v4167 = vshrl.u32 %v4166, 7
        %v4168 = vsub.s32 %v4165, %v4167
        %v4169 = vrot.slane %v4147, %v4168
        %v4171 = vunpack.c.l.s4 1966171168
        %v4172 = vunpack.c.0.s8 %v4171
        %v4173 = vlaneseq
        %v4174 = vshrl.u32 %v4173, 7
        %v4175 = vsub.s32 %v4172, %v4174
        %v4176 = vrot.slane %v4148, %v4175
        %v4177 = vcombine.low %v4155, %v4162
        %v4178 = vcombine.low %v4169, %v4176
        %v4180 = vunpack.c.l.s4 1966171168
        %v4181 = vunpack.c.0.s8 %v4180
        %v4182 = vlaneseq
        %v4183 = vshrl.u32 %v4182, 7
        %v4184 = vsub.s32 %v4181, %v4183
        %v4185 = vrot.slane %v4177, %v4184
        %v4187 = vunpack.c.l.s4 1966171168
        %v4188 = vunpack.c.0.s8 %v4187
        %v4189 = vlaneseq
        %v4190 = vshrl.u32 %v4189, 7
        %v4191 = vsub.s32 %v4188, %v4190
        %v4192 = vrot.slane %v4178, %v4191
        %v4193 = vcombine.high %v4185, %v4192
        %v4196 = vadd.f32 %v3915, %v4144
        %v4197 = vadd.f32 %v3919, %v4193
        %4198 = vst [vmem:[%s3912] ss:$8 sm:$0xf] %v4196
        %4199 = vst [vmem:[%s3912] ss:$8 sm:$0xf0] %v4196
        %4200 = vst [vmem:[%s3916] ss:$8 sm:$0xf] %v4197
        %4201 = vst [vmem:[%s3916] ss:$8 sm:$0xf0] %v4197
        %s4202 = scalar_lea.vmem [#allocation2], 7
        %v4203 = vld [vmem:[%s4202] ss:$8 sm:$0xf]
        %v4204 = vld [vmem:[%s4202] ss:$8 sm:$0xf0]
        %v4205 = vor.u32 %v4203, %v4204
        %s4206 = scalar_lea.vmem [#allocation2], 71
        %v4207 = vld [vmem:[%s4206] ss:$8 sm:$0xf]
        %v4208 = vld [vmem:[%s4206] ss:$8 sm:$0xf0]
        %v4209 = vor.u32 %v4207, %v4208
        %v4226 = vcombine.high %v3478, %v3479
        %v4227 = vcombine.high %v3480, %v3481
        %v4228 = vcombine.high %v3482, %v3483
        %v4229 = vcombine.high %v3484, %v3485
        %v4231 = vunpack.c.l.s4 1966171168
        %v4232 = vunpack.c.0.s8 %v4231
        %v4233 = vlaneseq
        %v4234 = vshrl.u32 %v4233, 7
        %v4235 = vsub.s32 %v4232, %v4234
        %v4236 = vrot.slane %v4226, %v4235
        %v4238 = vunpack.c.l.s4 1966171168
        %v4239 = vunpack.c.0.s8 %v4238
        %v4240 = vlaneseq
        %v4241 = vshrl.u32 %v4240, 7
        %v4242 = vsub.s32 %v4239, %v4241
        %v4243 = vrot.slane %v4227, %v4242
        %v4245 = vunpack.c.l.s4 1966171168
        %v4246 = vunpack.c.0.s8 %v4245
        %v4247 = vlaneseq
        %v4248 = vshrl.u32 %v4247, 7
        %v4249 = vsub.s32 %v4246, %v4248
        %v4250 = vrot.slane %v4228, %v4249
        %v4252 = vunpack.c.l.s4 1966171168
        %v4253 = vunpack.c.0.s8 %v4252
        %v4254 = vlaneseq
        %v4255 = vshrl.u32 %v4254, 7
        %v4256 = vsub.s32 %v4253, %v4255
        %v4257 = vrot.slane %v4229, %v4256
        %v4258 = vcombine.low %v4236, %v4243
        %v4259 = vcombine.low %v4250, %v4257
        %v4261 = vunpack.c.l.s4 1966171168
        %v4262 = vunpack.c.0.s8 %v4261
        %v4263 = vlaneseq
        %v4264 = vshrl.u32 %v4263, 7
        %v4265 = vsub.s32 %v4262, %v4264
        %v4266 = vrot.slane %v4258, %v4265
        %v4268 = vunpack.c.l.s4 1966171168
        %v4269 = vunpack.c.0.s8 %v4268
        %v4270 = vlaneseq
        %v4271 = vshrl.u32 %v4270, 7
        %v4272 = vsub.s32 %v4269, %v4271
        %v4273 = vrot.slane %v4259, %v4272
        %v4274 = vcombine.high %v4266, %v4273
        %v4275 = vcombine.high %v3486, %v3487
        %v4276 = vcombine.high %v3488, %v3489
        %v4277 = vcombine.high %v3490, %v3491
        %v4278 = vcombine.high %v3492, %v3493
        %v4280 = vunpack.c.l.s4 1966171168
        %v4281 = vunpack.c.0.s8 %v4280
        %v4282 = vlaneseq
        %v4283 = vshrl.u32 %v4282, 7
        %v4284 = vsub.s32 %v4281, %v4283
        %v4285 = vrot.slane %v4275, %v4284
        %v4287 = vunpack.c.l.s4 1966171168
        %v4288 = vunpack.c.0.s8 %v4287
        %v4289 = vlaneseq
        %v4290 = vshrl.u32 %v4289, 7
        %v4291 = vsub.s32 %v4288, %v4290
        %v4292 = vrot.slane %v4276, %v4291
        %v4294 = vunpack.c.l.s4 1966171168
        %v4295 = vunpack.c.0.s8 %v4294
        %v4296 = vlaneseq
        %v4297 = vshrl.u32 %v4296, 7
        %v4298 = vsub.s32 %v4295, %v4297
        %v4299 = vrot.slane %v4277, %v4298
        %v4301 = vunpack.c.l.s4 1966171168
        %v4302 = vunpack.c.0.s8 %v4301
        %v4303 = vlaneseq
        %v4304 = vshrl.u32 %v4303, 7
        %v4305 = vsub.s32 %v4302, %v4304
        %v4306 = vrot.slane %v4278, %v4305
        %v4307 = vcombine.low %v4285, %v4292
        %v4308 = vcombine.low %v4299, %v4306
        %v4310 = vunpack.c.l.s4 1966171168
        %v4311 = vunpack.c.0.s8 %v4310
        %v4312 = vlaneseq
        %v4313 = vshrl.u32 %v4312, 7
        %v4314 = vsub.s32 %v4311, %v4313
        %v4315 = vrot.slane %v4307, %v4314
        %v4317 = vunpack.c.l.s4 1966171168
        %v4318 = vunpack.c.0.s8 %v4317
        %v4319 = vlaneseq
        %v4320 = vshrl.u32 %v4319, 7
        %v4321 = vsub.s32 %v4318, %v4320
        %v4322 = vrot.slane %v4308, %v4321
        %v4323 = vcombine.high %v4315, %v4322
        %v4326 = vadd.f32 %v4205, %v4274
        %v4327 = vadd.f32 %v4209, %v4323
        %4328 = vst [vmem:[%s4202] ss:$8 sm:$0xf] %v4326
        %4329 = vst [vmem:[%s4202] ss:$8 sm:$0xf0] %v4326
        %4330 = vst [vmem:[%s4206] ss:$8 sm:$0xf] %v4327
        %4331 = vst [vmem:[%s4206] ss:$8 sm:$0xf0] %v4327
        %p4332 = scmp.eq.s32.totalorder %s18, 1
        // Predicated region
        $region41: #{tpu_custom_call.1} parent=27 // pred_check
          %p4333 = pneg %p4332
        $region42: #{tpu_custom_call.1} parent=27 // pred_check_branch
          %4335 = sbr.rel (%p4333) target = $region44
        $region43: #{tpu_custom_call.1} parent=27 // pred_region
          %v4336 = vld [vmem:[#allocation2] ss:$8 sm:$0xf]
          %v4337 = vld [vmem:[#allocation2] ss:$8 sm:$0xf0]
          %v4338 = vor.u32 %v4336, %v4337
          %v4339 = vld [vmem:[%s525] ss:$8 sm:$0xf]
          %v4340 = vld [vmem:[%s525] ss:$8 sm:$0xf0]
          %v4341 = vor.u32 %v4339, %v4340
          %v4344 = vlaneseq
          %v4345 = vshrl.u32 %v4344, 7
          %v4346 = vsub.s32 0, %v4345
          %v4347 = vrot.slane %v4338, %v4346
          %v4348 = vlaneseq
          %v4349 = vshrl.u32 %v4348, 7
          %v4350 = vsub.s32 1, %v4349
          %v4351 = vrot.slane %v4338, %v4350
          %v4352 = vlaneseq
          %v4353 = vshrl.u32 %v4352, 7
          %v4354 = vsub.s32 2, %v4353
          %v4355 = vrot.slane %v4338, %v4354
          %v4356 = vlaneseq
          %v4357 = vshrl.u32 %v4356, 7
          %v4358 = vsub.s32 3, %v4357
          %v4359 = vrot.slane %v4338, %v4358
          %v4360 = vlaneseq
          %v4361 = vshrl.u32 %v4360, 7
          %v4362 = vsub.s32 4, %v4361
          %v4363 = vrot.slane %v4338, %v4362
          %v4364 = vlaneseq
          %v4365 = vshrl.u32 %v4364, 7
          %v4366 = vsub.s32 5, %v4365
          %v4367 = vrot.slane %v4338, %v4366
          %v4368 = vlaneseq
          %v4369 = vshrl.u32 %v4368, 7
          %v4370 = vsub.s32 6, %v4369
          %v4371 = vrot.slane %v4338, %v4370
          %v4372 = vlaneseq
          %v4373 = vshrl.u32 %v4372, 7
          %v4374 = vsub.s32 7, %v4373
          %v4375 = vrot.slane %v4338, %v4374
          %v4376 = vlaneseq
          %v4377 = vshrl.u32 %v4376, 7
          %v4378 = vsub.s32 0, %v4377
          %v4379 = vrot.slane %v4341, %v4378
          %v4380 = vlaneseq
          %v4381 = vshrl.u32 %v4380, 7
          %v4382 = vsub.s32 1, %v4381
          %v4383 = vrot.slane %v4341, %v4382
          %v4384 = vlaneseq
          %v4385 = vshrl.u32 %v4384, 7
          %v4386 = vsub.s32 2, %v4385
          %v4387 = vrot.slane %v4341, %v4386
          %v4388 = vlaneseq
          %v4389 = vshrl.u32 %v4388, 7
          %v4390 = vsub.s32 3, %v4389
          %v4391 = vrot.slane %v4341, %v4390
          %v4392 = vlaneseq
          %v4393 = vshrl.u32 %v4392, 7
          %v4394 = vsub.s32 4, %v4393
          %v4395 = vrot.slane %v4341, %v4394
          %v4396 = vlaneseq
          %v4397 = vshrl.u32 %v4396, 7
          %v4398 = vsub.s32 5, %v4397
          %v4399 = vrot.slane %v4341, %v4398
          %v4400 = vlaneseq
          %v4401 = vshrl.u32 %v4400, 7
          %v4402 = vsub.s32 6, %v4401
          %v4403 = vrot.slane %v4341, %v4402
          %v4404 = vlaneseq
          %v4405 = vshrl.u32 %v4404, 7
          %v4406 = vsub.s32 7, %v4405
          %v4407 = vrot.slane %v4341, %v4406
          %v4424 = vsel %vm2388, %v4347, 0.0
          %v4425 = vsel %vm2388, %v4351, 0.0
          %v4426 = vadd.f32 %v4424, %v4425
          %v4427 = vsel %vm2388, %v4355, 0.0
          %v4428 = vadd.f32 %v4426, %v4427
          %v4429 = vsel %vm2388, %v4359, 0.0
          %v4430 = vadd.f32 %v4428, %v4429
          %v4431 = vsel %vm2388, %v4363, 0.0
          %v4432 = vadd.f32 %v4430, %v4431
          %v4433 = vsel %vm2388, %v4367, 0.0
          %v4434 = vadd.f32 %v4432, %v4433
          %v4435 = vsel %vm2388, %v4371, 0.0
          %v4436 = vadd.f32 %v4434, %v4435
          %v4437 = vsel %vm2388, %v4375, 0.0
          %v4438 = vadd.f32 %v4436, %v4437
          %v4439 = vsel %vm2388, %v4379, 0.0
          %v4440 = vadd.f32 %v4438, %v4439
          %v4441 = vsel %vm2388, %v4383, 0.0
          %v4442 = vadd.f32 %v4440, %v4441
          %v4443 = vsel %vm2388, %v4387, 0.0
          %v4444 = vadd.f32 %v4442, %v4443
          %v4445 = vsel %vm2388, %v4391, 0.0
          %v4446 = vadd.f32 %v4444, %v4445
          %v4447 = vsel %vm2388, %v4395, 0.0
          %v4448 = vadd.f32 %v4446, %v4447
          %v4449 = vsel %vm2388, %v4399, 0.0
          %v4450 = vadd.f32 %v4448, %v4449
          %v4451 = vsel %vm2388, %v4403, 0.0
          %v4452 = vadd.f32 %v4450, %v4451
          %v4453 = vsel %vm2388, %v4407, 0.0
          %v4454 = vadd.f32 %v4452, %v4453
          %4455 = vadd.xlane.f32.xlu0 %v4454
          %v4456 = vpop.xlane.xlu0 %4455
          %v4457 = vrot.slane %v4456, 4
          %v4458 = vadd.f32 %v4456, %v4457
          %v4459 = vrot.slane %v4458, 2
          %v4460 = vadd.f32 %v4458, %v4459
          %v4461 = vrot.slane %v4460, 1
          %v4462 = vadd.f32 %v4460, %v4461
          %s4463 = vtos %v4462
          %v4464 = vld [vmem:[%s780] ss:$8 sm:$0xf]
          %v4465 = vld [vmem:[%s780] ss:$8 sm:$0xf0]
          %v4466 = vor.u32 %v4464, %v4465
          %v4467 = vld [vmem:[%s784] ss:$8 sm:$0xf]
          %v4468 = vld [vmem:[%s784] ss:$8 sm:$0xf0]
          %v4469 = vor.u32 %v4467, %v4468
          %v4472 = vlaneseq
          %v4473 = vshrl.u32 %v4472, 7
          %v4474 = vsub.s32 0, %v4473
          %v4475 = vrot.slane %v4466, %v4474
          %v4476 = vlaneseq
          %v4477 = vshrl.u32 %v4476, 7
          %v4478 = vsub.s32 1, %v4477
          %v4479 = vrot.slane %v4466, %v4478
          %v4480 = vlaneseq
          %v4481 = vshrl.u32 %v4480, 7
          %v4482 = vsub.s32 2, %v4481
          %v4483 = vrot.slane %v4466, %v4482
          %v4484 = vlaneseq
          %v4485 = vshrl.u32 %v4484, 7
          %v4486 = vsub.s32 3, %v4485
          %v4487 = vrot.slane %v4466, %v4486
          %v4488 = vlaneseq
          %v4489 = vshrl.u32 %v4488, 7
          %v4490 = vsub.s32 4, %v4489
          %v4491 = vrot.slane %v4466, %v4490
          %v4492 = vlaneseq
          %v4493 = vshrl.u32 %v4492, 7
          %v4494 = vsub.s32 5, %v4493
          %v4495 = vrot.slane %v4466, %v4494
          %v4496 = vlaneseq
          %v4497 = vshrl.u32 %v4496, 7
          %v4498 = vsub.s32 6, %v4497
          %v4499 = vrot.slane %v4466, %v4498
          %v4500 = vlaneseq
          %v4501 = vshrl.u32 %v4500, 7
          %v4502 = vsub.s32 7, %v4501
          %v4503 = vrot.slane %v4466, %v4502
          %v4504 = vlaneseq
          %v4505 = vshrl.u32 %v4504, 7
          %v4506 = vsub.s32 0, %v4505
          %v4507 = vrot.slane %v4469, %v4506
          %v4508 = vlaneseq
          %v4509 = vshrl.u32 %v4508, 7
          %v4510 = vsub.s32 1, %v4509
          %v4511 = vrot.slane %v4469, %v4510
          %v4512 = vlaneseq
          %v4513 = vshrl.u32 %v4512, 7
          %v4514 = vsub.s32 2, %v4513
          %v4515 = vrot.slane %v4469, %v4514
          %v4516 = vlaneseq
          %v4517 = vshrl.u32 %v4516, 7
          %v4518 = vsub.s32 3, %v4517
          %v4519 = vrot.slane %v4469, %v4518
          %v4520 = vlaneseq
          %v4521 = vshrl.u32 %v4520, 7
          %v4522 = vsub.s32 4, %v4521
          %v4523 = vrot.slane %v4469, %v4522
          %v4524 = vlaneseq
          %v4525 = vshrl.u32 %v4524, 7
          %v4526 = vsub.s32 5, %v4525
          %v4527 = vrot.slane %v4469, %v4526
          %v4528 = vlaneseq
          %v4529 = vshrl.u32 %v4528, 7
          %v4530 = vsub.s32 6, %v4529
          %v4531 = vrot.slane %v4469, %v4530
          %v4532 = vlaneseq
          %v4533 = vshrl.u32 %v4532, 7
          %v4534 = vsub.s32 7, %v4533
          %v4535 = vrot.slane %v4469, %v4534
          %v4552 = vsel %vm2388, %v4475, 0.0
          %v4553 = vsel %vm2388, %v4479, 0.0
          %v4554 = vadd.f32 %v4552, %v4553
          %v4555 = vsel %vm2388, %v4483, 0.0
          %v4556 = vadd.f32 %v4554, %v4555
          %v4557 = vsel %vm2388, %v4487, 0.0
          %v4558 = vadd.f32 %v4556, %v4557
          %v4559 = vsel %vm2388, %v4491, 0.0
          %v4560 = vadd.f32 %v4558, %v4559
          %v4561 = vsel %vm2388, %v4495, 0.0
          %v4562 = vadd.f32 %v4560, %v4561
          %v4563 = vsel %vm2388, %v4499, 0.0
          %v4564 = vadd.f32 %v4562, %v4563
          %v4565 = vsel %vm2388, %v4503, 0.0
          %v4566 = vadd.f32 %v4564, %v4565
          %v4567 = vsel %vm2388, %v4507, 0.0
          %v4568 = vadd.f32 %v4566, %v4567
          %v4569 = vsel %vm2388, %v4511, 0.0
          %v4570 = vadd.f32 %v4568, %v4569
          %v4571 = vsel %vm2388, %v4515, 0.0
          %v4572 = vadd.f32 %v4570, %v4571
          %v4573 = vsel %vm2388, %v4519, 0.0
          %v4574 = vadd.f32 %v4572, %v4573
          %v4575 = vsel %vm2388, %v4523, 0.0
          %v4576 = vadd.f32 %v4574, %v4575
          %v4577 = vsel %vm2388, %v4527, 0.0
          %v4578 = vadd.f32 %v4576, %v4577
          %v4579 = vsel %vm2388, %v4531, 0.0
          %v4580 = vadd.f32 %v4578, %v4579
          %v4581 = vsel %vm2388, %v4535, 0.0
          %v4582 = vadd.f32 %v4580, %v4581
          %4583 = vadd.xlane.f32.xlu0 %v4582
          %v4584 = vpop.xlane.xlu0 %4583
          %v4585 = vrot.slane %v4584, 4
          %v4586 = vadd.f32 %v4584, %v4585
          %v4587 = vrot.slane %v4586, 2
          %v4588 = vadd.f32 %v4586, %v4587
          %v4589 = vrot.slane %v4588, 1
          %v4590 = vadd.f32 %v4588, %v4589
          %s4591 = vtos %v4590
          %v4592 = vld [vmem:[%s910] ss:$8 sm:$0xf]
          %v4593 = vld [vmem:[%s910] ss:$8 sm:$0xf0]
          %v4594 = vor.u32 %v4592, %v4593
          %v4595 = vld [vmem:[%s914] ss:$8 sm:$0xf]
          %v4596 = vld [vmem:[%s914] ss:$8 sm:$0xf0]
          %v4597 = vor.u32 %v4595, %v4596
          %v4600 = vlaneseq
          %v4601 = vshrl.u32 %v4600, 7
          %v4602 = vsub.s32 0, %v4601
          %v4603 = vrot.slane %v4594, %v4602
          %v4604 = vlaneseq
          %v4605 = vshrl.u32 %v4604, 7
          %v4606 = vsub.s32 1, %v4605
          %v4607 = vrot.slane %v4594, %v4606
          %v4608 = vlaneseq
          %v4609 = vshrl.u32 %v4608, 7
          %v4610 = vsub.s32 2, %v4609
          %v4611 = vrot.slane %v4594, %v4610
          %v4612 = vlaneseq
          %v4613 = vshrl.u32 %v4612, 7
          %v4614 = vsub.s32 3, %v4613
          %v4615 = vrot.slane %v4594, %v4614
          %v4616 = vlaneseq
          %v4617 = vshrl.u32 %v4616, 7
          %v4618 = vsub.s32 4, %v4617
          %v4619 = vrot.slane %v4594, %v4618
          %v4620 = vlaneseq
          %v4621 = vshrl.u32 %v4620, 7
          %v4622 = vsub.s32 5, %v4621
          %v4623 = vrot.slane %v4594, %v4622
          %v4624 = vlaneseq
          %v4625 = vshrl.u32 %v4624, 7
          %v4626 = vsub.s32 6, %v4625
          %v4627 = vrot.slane %v4594, %v4626
          %v4628 = vlaneseq
          %v4629 = vshrl.u32 %v4628, 7
          %v4630 = vsub.s32 7, %v4629
          %v4631 = vrot.slane %v4594, %v4630
          %v4632 = vlaneseq
          %v4633 = vshrl.u32 %v4632, 7
          %v4634 = vsub.s32 0, %v4633
          %v4635 = vrot.slane %v4597, %v4634
          %v4636 = vlaneseq
          %v4637 = vshrl.u32 %v4636, 7
          %v4638 = vsub.s32 1, %v4637
          %v4639 = vrot.slane %v4597, %v4638
          %v4640 = vlaneseq
          %v4641 = vshrl.u32 %v4640, 7
          %v4642 = vsub.s32 2, %v4641
          %v4643 = vrot.slane %v4597, %v4642
          %v4644 = vlaneseq
          %v4645 = vshrl.u32 %v4644, 7
          %v4646 = vsub.s32 3, %v4645
          %v4647 = vrot.slane %v4597, %v4646
          %v4648 = vlaneseq
          %v4649 = vshrl.u32 %v4648, 7
          %v4650 = vsub.s32 4, %v4649
          %v4651 = vrot.slane %v4597, %v4650
          %v4652 = vlaneseq
          %v4653 = vshrl.u32 %v4652, 7
          %v4654 = vsub.s32 5, %v4653
          %v4655 = vrot.slane %v4597, %v4654
          %v4656 = vlaneseq
          %v4657 = vshrl.u32 %v4656, 7
          %v4658 = vsub.s32 6, %v4657
          %v4659 = vrot.slane %v4597, %v4658
          %v4660 = vlaneseq
          %v4661 = vshrl.u32 %v4660, 7
          %v4662 = vsub.s32 7, %v4661
          %v4663 = vrot.slane %v4597, %v4662
          %v4680 = vsel %vm2388, %v4603, 0.0
          %v4681 = vsel %vm2388, %v4607, 0.0
          %v4682 = vadd.f32 %v4680, %v4681
          %v4683 = vsel %vm2388, %v4611, 0.0
          %v4684 = vadd.f32 %v4682, %v4683
          %v4685 = vsel %vm2388, %v4615, 0.0
          %v4686 = vadd.f32 %v4684, %v4685
          %v4687 = vsel %vm2388, %v4619, 0.0
          %v4688 = vadd.f32 %v4686, %v4687
          %v4689 = vsel %vm2388, %v4623, 0.0
          %v4690 = vadd.f32 %v4688, %v4689
          %v4691 = vsel %vm2388, %v4627, 0.0
          %v4692 = vadd.f32 %v4690, %v4691
          %v4693 = vsel %vm2388, %v4631, 0.0
          %v4694 = vadd.f32 %v4692, %v4693
          %v4695 = vsel %vm2388, %v4635, 0.0
          %v4696 = vadd.f32 %v4694, %v4695
          %v4697 = vsel %vm2388, %v4639, 0.0
          %v4698 = vadd.f32 %v4696, %v4697
          %v4699 = vsel %vm2388, %v4643, 0.0
          %v4700 = vadd.f32 %v4698, %v4699
          %v4701 = vsel %vm2388, %v4647, 0.0
          %v4702 = vadd.f32 %v4700, %v4701
          %v4703 = vsel %vm2388, %v4651, 0.0
          %v4704 = vadd.f32 %v4702, %v4703
          %v4705 = vsel %vm2388, %v4655, 0.0
          %v4706 = vadd.f32 %v4704, %v4705
          %v4707 = vsel %vm2388, %v4659, 0.0
          %v4708 = vadd.f32 %v4706, %v4707
          %v4709 = vsel %vm2388, %v4663, 0.0
          %v4710 = vadd.f32 %v4708, %v4709
          %4711 = vadd.xlane.f32.xlu0 %v4710
          %v4712 = vpop.xlane.xlu0 %4711
          %v4713 = vrot.slane %v4712, 4
          %v4714 = vadd.f32 %v4712, %v4713
          %v4715 = vrot.slane %v4714, 2
          %v4716 = vadd.f32 %v4714, %v4715
          %v4717 = vrot.slane %v4716, 1
          %v4718 = vadd.f32 %v4716, %v4717
          %s4719 = vtos %v4718
          %v4720 = vld [vmem:[%s1168] ss:$8 sm:$0xf]
          %v4721 = vld [vmem:[%s1168] ss:$8 sm:$0xf0]
          %v4722 = vor.u32 %v4720, %v4721
          %v4723 = vld [vmem:[%s1172] ss:$8 sm:$0xf]
          %v4724 = vld [vmem:[%s1172] ss:$8 sm:$0xf0]
          %v4725 = vor.u32 %v4723, %v4724
          %v4728 = vlaneseq
          %v4729 = vshrl.u32 %v4728, 7
          %v4730 = vsub.s32 0, %v4729
          %v4731 = vrot.slane %v4722, %v4730
          %v4732 = vlaneseq
          %v4733 = vshrl.u32 %v4732, 7
          %v4734 = vsub.s32 1, %v4733
          %v4735 = vrot.slane %v4722, %v4734
          %v4736 = vlaneseq
          %v4737 = vshrl.u32 %v4736, 7
          %v4738 = vsub.s32 2, %v4737
          %v4739 = vrot.slane %v4722, %v4738
          %v4740 = vlaneseq
          %v4741 = vshrl.u32 %v4740, 7
          %v4742 = vsub.s32 3, %v4741
          %v4743 = vrot.slane %v4722, %v4742
          %v4744 = vlaneseq
          %v4745 = vshrl.u32 %v4744, 7
          %v4746 = vsub.s32 4, %v4745
          %v4747 = vrot.slane %v4722, %v4746
          %v4748 = vlaneseq
          %v4749 = vshrl.u32 %v4748, 7
          %v4750 = vsub.s32 5, %v4749
          %v4751 = vrot.slane %v4722, %v4750
          %v4752 = vlaneseq
          %v4753 = vshrl.u32 %v4752, 7
          %v4754 = vsub.s32 6, %v4753
          %v4755 = vrot.slane %v4722, %v4754
          %v4756 = vlaneseq
          %v4757 = vshrl.u32 %v4756, 7
          %v4758 = vsub.s32 7, %v4757
          %v4759 = vrot.slane %v4722, %v4758
          %v4760 = vlaneseq
          %v4761 = vshrl.u32 %v4760, 7
          %v4762 = vsub.s32 0, %v4761
          %v4763 = vrot.slane %v4725, %v4762
          %v4764 = vlaneseq
          %v4765 = vshrl.u32 %v4764, 7
          %v4766 = vsub.s32 1, %v4765
          %v4767 = vrot.slane %v4725, %v4766
          %v4768 = vlaneseq
          %v4769 = vshrl.u32 %v4768, 7
          %v4770 = vsub.s32 2, %v4769
          %v4771 = vrot.slane %v4725, %v4770
          %v4772 = vlaneseq
          %v4773 = vshrl.u32 %v4772, 7
          %v4774 = vsub.s32 3, %v4773
          %v4775 = vrot.slane %v4725, %v4774
          %v4776 = vlaneseq
          %v4777 = vshrl.u32 %v4776, 7
          %v4778 = vsub.s32 4, %v4777
          %v4779 = vrot.slane %v4725, %v4778
          %v4780 = vlaneseq
          %v4781 = vshrl.u32 %v4780, 7
          %v4782 = vsub.s32 5, %v4781
          %v4783 = vrot.slane %v4725, %v4782
          %v4784 = vlaneseq
          %v4785 = vshrl.u32 %v4784, 7
          %v4786 = vsub.s32 6, %v4785
          %v4787 = vrot.slane %v4725, %v4786
          %v4788 = vlaneseq
          %v4789 = vshrl.u32 %v4788, 7
          %v4790 = vsub.s32 7, %v4789
          %v4791 = vrot.slane %v4725, %v4790
          %v4808 = vsel %vm2388, %v4731, 0.0
          %v4809 = vsel %vm2388, %v4735, 0.0
          %v4810 = vadd.f32 %v4808, %v4809
          %v4811 = vsel %vm2388, %v4739, 0.0
          %v4812 = vadd.f32 %v4810, %v4811
          %v4813 = vsel %vm2388, %v4743, 0.0
          %v4814 = vadd.f32 %v4812, %v4813
          %v4815 = vsel %vm2388, %v4747, 0.0
          %v4816 = vadd.f32 %v4814, %v4815
          %v4817 = vsel %vm2388, %v4751, 0.0
          %v4818 = vadd.f32 %v4816, %v4817
          %v4819 = vsel %vm2388, %v4755, 0.0
          %v4820 = vadd.f32 %v4818, %v4819
          %v4821 = vsel %vm2388, %v4759, 0.0
          %v4822 = vadd.f32 %v4820, %v4821
          %v4823 = vsel %vm2388, %v4763, 0.0
          %v4824 = vadd.f32 %v4822, %v4823
          %v4825 = vsel %vm2388, %v4767, 0.0
          %v4826 = vadd.f32 %v4824, %v4825
          %v4827 = vsel %vm2388, %v4771, 0.0
          %v4828 = vadd.f32 %v4826, %v4827
          %v4829 = vsel %vm2388, %v4775, 0.0
          %v4830 = vadd.f32 %v4828, %v4829
          %v4831 = vsel %vm2388, %v4779, 0.0
          %v4832 = vadd.f32 %v4830, %v4831
          %v4833 = vsel %vm2388, %v4783, 0.0
          %v4834 = vadd.f32 %v4832, %v4833
          %v4835 = vsel %vm2388, %v4787, 0.0
          %v4836 = vadd.f32 %v4834, %v4835
          %v4837 = vsel %vm2388, %v4791, 0.0
          %v4838 = vadd.f32 %v4836, %v4837
          %4839 = vadd.xlane.f32.xlu0 %v4838
          %v4840 = vpop.xlane.xlu0 %4839
          %v4841 = vrot.slane %v4840, 4
          %v4842 = vadd.f32 %v4840, %v4841
          %v4843 = vrot.slane %v4842, 2
          %v4844 = vadd.f32 %v4842, %v4843
          %v4845 = vrot.slane %v4844, 1
          %v4846 = vadd.f32 %v4844, %v4845
          %s4847 = vtos %v4846
          %v4848 = vld [vmem:[%s1586] ss:$8 sm:$0xf]
          %v4849 = vld [vmem:[%s1586] ss:$8 sm:$0xf0]
          %v4850 = vor.u32 %v4848, %v4849
          %v4851 = vld [vmem:[%s1590] ss:$8 sm:$0xf]
          %v4852 = vld [vmem:[%s1590] ss:$8 sm:$0xf0]
          %v4853 = vor.u32 %v4851, %v4852
          %v4856 = vlaneseq
          %v4857 = vshrl.u32 %v4856, 7
          %v4858 = vsub.s32 0, %v4857
          %v4859 = vrot.slane %v4850, %v4858
          %v4860 = vlaneseq
          %v4861 = vshrl.u32 %v4860, 7
          %v4862 = vsub.s32 1, %v4861
          %v4863 = vrot.slane %v4850, %v4862
          %v4864 = vlaneseq
          %v4865 = vshrl.u32 %v4864, 7
          %v4866 = vsub.s32 2, %v4865
          %v4867 = vrot.slane %v4850, %v4866
          %v4868 = vlaneseq
          %v4869 = vshrl.u32 %v4868, 7
          %v4870 = vsub.s32 3, %v4869
          %v4871 = vrot.slane %v4850, %v4870
          %v4872 = vlaneseq
          %v4873 = vshrl.u32 %v4872, 7
          %v4874 = vsub.s32 4, %v4873
          %v4875 = vrot.slane %v4850, %v4874
          %v4876 = vlaneseq
          %v4877 = vshrl.u32 %v4876, 7
          %v4878 = vsub.s32 5, %v4877
          %v4879 = vrot.slane %v4850, %v4878
          %v4880 = vlaneseq
          %v4881 = vshrl.u32 %v4880, 7
          %v4882 = vsub.s32 6, %v4881
          %v4883 = vrot.slane %v4850, %v4882
          %v4884 = vlaneseq
          %v4885 = vshrl.u32 %v4884, 7
          %v4886 = vsub.s32 7, %v4885
          %v4887 = vrot.slane %v4850, %v4886
          %v4888 = vlaneseq
          %v4889 = vshrl.u32 %v4888, 7
          %v4890 = vsub.s32 0, %v4889
          %v4891 = vrot.slane %v4853, %v4890
          %v4892 = vlaneseq
          %v4893 = vshrl.u32 %v4892, 7
          %v4894 = vsub.s32 1, %v4893
          %v4895 = vrot.slane %v4853, %v4894
          %v4896 = vlaneseq
          %v4897 = vshrl.u32 %v4896, 7
          %v4898 = vsub.s32 2, %v4897
          %v4899 = vrot.slane %v4853, %v4898
          %v4900 = vlaneseq
          %v4901 = vshrl.u32 %v4900, 7
          %v4902 = vsub.s32 3, %v4901
          %v4903 = vrot.slane %v4853, %v4902
          %v4904 = vlaneseq
          %v4905 = vshrl.u32 %v4904, 7
          %v4906 = vsub.s32 4, %v4905
          %v4907 = vrot.slane %v4853, %v4906
          %v4908 = vlaneseq
          %v4909 = vshrl.u32 %v4908, 7
          %v4910 = vsub.s32 5, %v4909
          %v4911 = vrot.slane %v4853, %v4910
          %v4912 = vlaneseq
          %v4913 = vshrl.u32 %v4912, 7
          %v4914 = vsub.s32 6, %v4913
          %v4915 = vrot.slane %v4853, %v4914
          %v4916 = vlaneseq
          %v4917 = vshrl.u32 %v4916, 7
          %v4918 = vsub.s32 7, %v4917
          %v4919 = vrot.slane %v4853, %v4918
          %v4936 = vsel %vm2388, %v4859, 0.0
          %v4937 = vsel %vm2388, %v4863, 0.0
          %v4938 = vadd.f32 %v4936, %v4937
          %v4939 = vsel %vm2388, %v4867, 0.0
          %v4940 = vadd.f32 %v4938, %v4939
          %v4941 = vsel %vm2388, %v4871, 0.0
          %v4942 = vadd.f32 %v4940, %v4941
          %v4943 = vsel %vm2388, %v4875, 0.0
          %v4944 = vadd.f32 %v4942, %v4943
          %v4945 = vsel %vm2388, %v4879, 0.0
          %v4946 = vadd.f32 %v4944, %v4945
          %v4947 = vsel %vm2388, %v4883, 0.0
          %v4948 = vadd.f32 %v4946, %v4947
          %v4949 = vsel %vm2388, %v4887, 0.0
          %v4950 = vadd.f32 %v4948, %v4949
          %v4951 = vsel %vm2388, %v4891, 0.0
          %v4952 = vadd.f32 %v4950, %v4951
          %v4953 = vsel %vm2388, %v4895, 0.0
          %v4954 = vadd.f32 %v4952, %v4953
          %v4955 = vsel %vm2388, %v4899, 0.0
          %v4956 = vadd.f32 %v4954, %v4955
          %v4957 = vsel %vm2388, %v4903, 0.0
          %v4958 = vadd.f32 %v4956, %v4957
          %v4959 = vsel %vm2388, %v4907, 0.0
          %v4960 = vadd.f32 %v4958, %v4959
          %v4961 = vsel %vm2388, %v4911, 0.0
          %v4962 = vadd.f32 %v4960, %v4961
          %v4963 = vsel %vm2388, %v4915, 0.0
          %v4964 = vadd.f32 %v4962, %v4963
          %v4965 = vsel %vm2388, %v4919, 0.0
          %v4966 = vadd.f32 %v4964, %v4965
          %4967 = vadd.xlane.f32.xlu0 %v4966
          %v4968 = vpop.xlane.xlu0 %4967
          %v4969 = vrot.slane %v4968, 4
          %v4970 = vadd.f32 %v4968, %v4969
          %v4971 = vrot.slane %v4970, 2
          %v4972 = vadd.f32 %v4970, %v4971
          %v4973 = vrot.slane %v4972, 1
          %v4974 = vadd.f32 %v4972, %v4973
          %s4975 = vtos %v4974
          %s4976 = smul.f32 %s4591, 3.0
          %v4977 = vstv %s4976
          %v4978 = vrcp.pop %v4977
          %s4979 = vtos %v4978
          %s4980 = smul.f32 %s4463, %s4979
          %s4981 = smul.f32 %s4847, 3.0
          %v4982 = vstv %s4981
          %v4983 = vrcp.pop %v4982
          %s4984 = vtos %v4983
          %s4985 = smul.f32 %s4719, %s4984
          %s4986 = smul.f32 %s4985, 0.5
          %s4987 = sadd.f32 %s4980, %s4986
          %s4988 = sld [smem:[#allocation3]]
          %s4989 = smul.f32 %s4988, 0.1
          %s4990 = sld [smem:[#allocation3 + $0x1]]
          %s4991 = smul.f32 %s4990, 0.0005
          %s4992 = sld [smem:[#allocation3 + $0x2]]
          %v4993 = vrcp.pop 2500.0
          %s4994 = vtos %v4993
          %s4995 = smul.f32 %s4975, %s4994
          %s4996 = smul.f32 %s4995, 0.1
          %v4997 = vld [vmem:[%s3654] ss:$8 sm:$0xf]
          %v4998 = vld [vmem:[%s3654] ss:$8 sm:$0xf0]
          %v4999 = vor.u32 %v4997, %v4998
          %v5000 = vld [vmem:[%s3658] ss:$8 sm:$0xf]
          %v5001 = vld [vmem:[%s3658] ss:$8 sm:$0xf0]
          %v5002 = vor.u32 %v5000, %v5001
          %v5005 = vlaneseq
          %v5006 = vshrl.u32 %v5005, 7
          %v5007 = vsub.s32 0, %v5006
          %v5008 = vrot.slane %v4999, %v5007
          %v5009 = vlaneseq
          %v5010 = vshrl.u32 %v5009, 7
          %v5011 = vsub.s32 1, %v5010
          %v5012 = vrot.slane %v4999, %v5011
          %v5013 = vlaneseq
          %v5014 = vshrl.u32 %v5013, 7
          %v5015 = vsub.s32 2, %v5014
          %v5016 = vrot.slane %v4999, %v5015
          %v5017 = vlaneseq
          %v5018 = vshrl.u32 %v5017, 7
          %v5019 = vsub.s32 3, %v5018
          %v5020 = vrot.slane %v4999, %v5019
          %v5021 = vlaneseq
          %v5022 = vshrl.u32 %v5021, 7
          %v5023 = vsub.s32 4, %v5022
          %v5024 = vrot.slane %v4999, %v5023
          %v5025 = vlaneseq
          %v5026 = vshrl.u32 %v5025, 7
          %v5027 = vsub.s32 5, %v5026
          %v5028 = vrot.slane %v4999, %v5027
          %v5029 = vlaneseq
          %v5030 = vshrl.u32 %v5029, 7
          %v5031 = vsub.s32 6, %v5030
          %v5032 = vrot.slane %v4999, %v5031
          %v5033 = vlaneseq
          %v5034 = vshrl.u32 %v5033, 7
          %v5035 = vsub.s32 7, %v5034
          %v5036 = vrot.slane %v4999, %v5035
          %v5037 = vlaneseq
          %v5038 = vshrl.u32 %v5037, 7
          %v5039 = vsub.s32 0, %v5038
          %v5040 = vrot.slane %v5002, %v5039
          %v5041 = vlaneseq
          %v5042 = vshrl.u32 %v5041, 7
          %v5043 = vsub.s32 1, %v5042
          %v5044 = vrot.slane %v5002, %v5043
          %v5045 = vlaneseq
          %v5046 = vshrl.u32 %v5045, 7
          %v5047 = vsub.s32 2, %v5046
          %v5048 = vrot.slane %v5002, %v5047
          %v5049 = vlaneseq
          %v5050 = vshrl.u32 %v5049, 7
          %v5051 = vsub.s32 3, %v5050
          %v5052 = vrot.slane %v5002, %v5051
          %v5053 = vlaneseq
          %v5054 = vshrl.u32 %v5053, 7
          %v5055 = vsub.s32 4, %v5054
          %v5056 = vrot.slane %v5002, %v5055
          %v5057 = vlaneseq
          %v5058 = vshrl.u32 %v5057, 7
          %v5059 = vsub.s32 5, %v5058
          %v5060 = vrot.slane %v5002, %v5059
          %v5061 = vlaneseq
          %v5062 = vshrl.u32 %v5061, 7
          %v5063 = vsub.s32 6, %v5062
          %v5064 = vrot.slane %v5002, %v5063
          %v5065 = vlaneseq
          %v5066 = vshrl.u32 %v5065, 7
          %v5067 = vsub.s32 7, %v5066
          %v5068 = vrot.slane %v5002, %v5067
          %v5085 = vsel %vm2388, %v5008, 0.0
          %v5086 = vsel %vm2388, %v5012, 0.0
          %v5087 = vadd.f32 %v5085, %v5086
          %v5088 = vsel %vm2388, %v5016, 0.0
          %v5089 = vadd.f32 %v5087, %v5088
          %v5090 = vsel %vm2388, %v5020, 0.0
          %v5091 = vadd.f32 %v5089, %v5090
          %v5092 = vsel %vm2388, %v5024, 0.0
          %v5093 = vadd.f32 %v5091, %v5092
          %v5094 = vsel %vm2388, %v5028, 0.0
          %v5095 = vadd.f32 %v5093, %v5094
          %v5096 = vsel %vm2388, %v5032, 0.0
          %v5097 = vadd.f32 %v5095, %v5096
          %v5098 = vsel %vm2388, %v5036, 0.0
          %v5099 = vadd.f32 %v5097, %v5098
          %v5100 = vsel %vm2388, %v5040, 0.0
          %v5101 = vadd.f32 %v5099, %v5100
          %v5102 = vsel %vm2388, %v5044, 0.0
          %v5103 = vadd.f32 %v5101, %v5102
          %v5104 = vsel %vm2388, %v5048, 0.0
          %v5105 = vadd.f32 %v5103, %v5104
          %v5106 = vsel %vm2388, %v5052, 0.0
          %v5107 = vadd.f32 %v5105, %v5106
          %v5108 = vsel %vm2388, %v5056, 0.0
          %v5109 = vadd.f32 %v5107, %v5108
          %v5110 = vsel %vm2388, %v5060, 0.0
          %v5111 = vadd.f32 %v5109, %v5110
          %v5112 = vsel %vm2388, %v5064, 0.0
          %v5113 = vadd.f32 %v5111, %v5112
          %v5114 = vsel %vm2388, %v5068, 0.0
          %v5115 = vadd.f32 %v5113, %v5114
          %5116 = vadd.xlane.f32.xlu0 %v5115
          %v5117 = vpop.xlane.xlu0 %5116
          %v5118 = vrot.slane %v5117, 4
          %v5119 = vadd.f32 %v5117, %v5118
          %v5120 = vrot.slane %v5119, 2
          %v5121 = vadd.f32 %v5119, %v5120
          %v5122 = vrot.slane %v5121, 1
          %v5123 = vadd.f32 %v5121, %v5122
          %s5124 = vtos %v5123
          %v5125 = vld [vmem:[%s3912] ss:$8 sm:$0xf]
          %v5126 = vld [vmem:[%s3912] ss:$8 sm:$0xf0]
          %v5127 = vor.u32 %v5125, %v5126
          %v5128 = vld [vmem:[%s3916] ss:$8 sm:$0xf]
          %v5129 = vld [vmem:[%s3916] ss:$8 sm:$0xf0]
          %v5130 = vor.u32 %v5128, %v5129
          %v5133 = vlaneseq
          %v5134 = vshrl.u32 %v5133, 7
          %v5135 = vsub.s32 0, %v5134
          %v5136 = vrot.slane %v5127, %v5135
          %v5137 = vlaneseq
          %v5138 = vshrl.u32 %v5137, 7
          %v5139 = vsub.s32 1, %v5138
          %v5140 = vrot.slane %v5127, %v5139
          %v5141 = vlaneseq
          %v5142 = vshrl.u32 %v5141, 7
          %v5143 = vsub.s32 2, %v5142
          %v5144 = vrot.slane %v5127, %v5143
          %v5145 = vlaneseq
          %v5146 = vshrl.u32 %v5145, 7
          %v5147 = vsub.s32 3, %v5146
          %v5148 = vrot.slane %v5127, %v5147
          %v5149 = vlaneseq
          %v5150 = vshrl.u32 %v5149, 7
          %v5151 = vsub.s32 4, %v5150
          %v5152 = vrot.slane %v5127, %v5151
          %v5153 = vlaneseq
          %v5154 = vshrl.u32 %v5153, 7
          %v5155 = vsub.s32 5, %v5154
          %v5156 = vrot.slane %v5127, %v5155
          %v5157 = vlaneseq
          %v5158 = vshrl.u32 %v5157, 7
          %v5159 = vsub.s32 6, %v5158
          %v5160 = vrot.slane %v5127, %v5159
          %v5161 = vlaneseq
          %v5162 = vshrl.u32 %v5161, 7
          %v5163 = vsub.s32 7, %v5162
          %v5164 = vrot.slane %v5127, %v5163
          %v5165 = vlaneseq
          %v5166 = vshrl.u32 %v5165, 7
          %v5167 = vsub.s32 0, %v5166
          %v5168 = vrot.slane %v5130, %v5167
          %v5169 = vlaneseq
          %v5170 = vshrl.u32 %v5169, 7
          %v5171 = vsub.s32 1, %v5170
          %v5172 = vrot.slane %v5130, %v5171
          %v5173 = vlaneseq
          %v5174 = vshrl.u32 %v5173, 7
          %v5175 = vsub.s32 2, %v5174
          %v5176 = vrot.slane %v5130, %v5175
          %v5177 = vlaneseq
          %v5178 = vshrl.u32 %v5177, 7
          %v5179 = vsub.s32 3, %v5178
          %v5180 = vrot.slane %v5130, %v5179
          %v5181 = vlaneseq
          %v5182 = vshrl.u32 %v5181, 7
          %v5183 = vsub.s32 4, %v5182
          %v5184 = vrot.slane %v5130, %v5183
          %v5185 = vlaneseq
          %v5186 = vshrl.u32 %v5185, 7
          %v5187 = vsub.s32 5, %v5186
          %v5188 = vrot.slane %v5130, %v5187
          %v5189 = vlaneseq
          %v5190 = vshrl.u32 %v5189, 7
          %v5191 = vsub.s32 6, %v5190
          %v5192 = vrot.slane %v5130, %v5191
          %v5193 = vlaneseq
          %v5194 = vshrl.u32 %v5193, 7
          %v5195 = vsub.s32 7, %v5194
          %v5196 = vrot.slane %v5130, %v5195
          %v5213 = vsel %vm2388, %v5136, 0.0
          %v5214 = vsel %vm2388, %v5140, 0.0
          %v5215 = vadd.f32 %v5213, %v5214
          %v5216 = vsel %vm2388, %v5144, 0.0
          %v5217 = vadd.f32 %v5215, %v5216
          %v5218 = vsel %vm2388, %v5148, 0.0
          %v5219 = vadd.f32 %v5217, %v5218
          %v5220 = vsel %vm2388, %v5152, 0.0
          %v5221 = vadd.f32 %v5219, %v5220
          %v5222 = vsel %vm2388, %v5156, 0.0
          %v5223 = vadd.f32 %v5221, %v5222
          %v5224 = vsel %vm2388, %v5160, 0.0
          %v5225 = vadd.f32 %v5223, %v5224
          %v5226 = vsel %vm2388, %v5164, 0.0
          %v5227 = vadd.f32 %v5225, %v5226
          %v5228 = vsel %vm2388, %v5168, 0.0
          %v5229 = vadd.f32 %v5227, %v5228
          %v5230 = vsel %vm2388, %v5172, 0.0
          %v5231 = vadd.f32 %v5229, %v5230
          %v5232 = vsel %vm2388, %v5176, 0.0
          %v5233 = vadd.f32 %v5231, %v5232
          %v5234 = vsel %vm2388, %v5180, 0.0
          %v5235 = vadd.f32 %v5233, %v5234
          %v5236 = vsel %vm2388, %v5184, 0.0
          %v5237 = vadd.f32 %v5235, %v5236
          %v5238 = vsel %vm2388, %v5188, 0.0
          %v5239 = vadd.f32 %v5237, %v5238
          %v5240 = vsel %vm2388, %v5192, 0.0
          %v5241 = vadd.f32 %v5239, %v5240
          %v5242 = vsel %vm2388, %v5196, 0.0
          %v5243 = vadd.f32 %v5241, %v5242
          %5244 = vadd.xlane.f32.xlu0 %v5243
          %v5245 = vpop.xlane.xlu0 %5244
          %v5246 = vrot.slane %v5245, 4
          %v5247 = vadd.f32 %v5245, %v5246
          %v5248 = vrot.slane %v5247, 2
          %v5249 = vadd.f32 %v5247, %v5248
          %v5250 = vrot.slane %v5249, 1
          %v5251 = vadd.f32 %v5249, %v5250
          %s5252 = vtos %v5251
          %v5253 = vld [vmem:[%s4202] ss:$8 sm:$0xf]
          %v5254 = vld [vmem:[%s4202] ss:$8 sm:$0xf0]
          %v5255 = vor.u32 %v5253, %v5254
          %v5256 = vld [vmem:[%s4206] ss:$8 sm:$0xf]
          %v5257 = vld [vmem:[%s4206] ss:$8 sm:$0xf0]
          %v5258 = vor.u32 %v5256, %v5257
          %v5261 = vlaneseq
          %v5262 = vshrl.u32 %v5261, 7
          %v5263 = vsub.s32 0, %v5262
          %v5264 = vrot.slane %v5255, %v5263
          %v5265 = vlaneseq
          %v5266 = vshrl.u32 %v5265, 7
          %v5267 = vsub.s32 1, %v5266
          %v5268 = vrot.slane %v5255, %v5267
          %v5269 = vlaneseq
          %v5270 = vshrl.u32 %v5269, 7
          %v5271 = vsub.s32 2, %v5270
          %v5272 = vrot.slane %v5255, %v5271
          %v5273 = vlaneseq
          %v5274 = vshrl.u32 %v5273, 7
          %v5275 = vsub.s32 3, %v5274
          %v5276 = vrot.slane %v5255, %v5275
          %v5277 = vlaneseq
          %v5278 = vshrl.u32 %v5277, 7
          %v5279 = vsub.s32 4, %v5278
          %v5280 = vrot.slane %v5255, %v5279
          %v5281 = vlaneseq
          %v5282 = vshrl.u32 %v5281, 7
          %v5283 = vsub.s32 5, %v5282
          %v5284 = vrot.slane %v5255, %v5283
          %v5285 = vlaneseq
          %v5286 = vshrl.u32 %v5285, 7
          %v5287 = vsub.s32 6, %v5286
          %v5288 = vrot.slane %v5255, %v5287
          %v5289 = vlaneseq
          %v5290 = vshrl.u32 %v5289, 7
          %v5291 = vsub.s32 7, %v5290
          %v5292 = vrot.slane %v5255, %v5291
          %v5293 = vlaneseq
          %v5294 = vshrl.u32 %v5293, 7
          %v5295 = vsub.s32 0, %v5294
          %v5296 = vrot.slane %v5258, %v5295
          %v5297 = vlaneseq
          %v5298 = vshrl.u32 %v5297, 7
          %v5299 = vsub.s32 1, %v5298
          %v5300 = vrot.slane %v5258, %v5299
          %v5301 = vlaneseq
          %v5302 = vshrl.u32 %v5301, 7
          %v5303 = vsub.s32 2, %v5302
          %v5304 = vrot.slane %v5258, %v5303
          %v5305 = vlaneseq
          %v5306 = vshrl.u32 %v5305, 7
          %v5307 = vsub.s32 3, %v5306
          %v5308 = vrot.slane %v5258, %v5307
          %v5309 = vlaneseq
          %v5310 = vshrl.u32 %v5309, 7
          %v5311 = vsub.s32 4, %v5310
          %v5312 = vrot.slane %v5258, %v5311
          %v5313 = vlaneseq
          %v5314 = vshrl.u32 %v5313, 7
          %v5315 = vsub.s32 5, %v5314
          %v5316 = vrot.slane %v5258, %v5315
          %v5317 = vlaneseq
          %v5318 = vshrl.u32 %v5317, 7
          %v5319 = vsub.s32 6, %v5318
          %v5320 = vrot.slane %v5258, %v5319
          %v5321 = vlaneseq
          %v5322 = vshrl.u32 %v5321, 7
          %v5323 = vsub.s32 7, %v5322
          %v5324 = vrot.slane %v5258, %v5323
          %v5341 = vsel %vm2388, %v5264, 0.0
          %v5342 = vsel %vm2388, %v5268, 0.0
          %v5343 = vadd.f32 %v5341, %v5342
          %v5344 = vsel %vm2388, %v5272, 0.0
          %v5345 = vadd.f32 %v5343, %v5344
          %v5346 = vsel %vm2388, %v5276, 0.0
          %v5347 = vadd.f32 %v5345, %v5346
          %v5348 = vsel %vm2388, %v5280, 0.0
          %v5349 = vadd.f32 %v5347, %v5348
          %v5350 = vsel %vm2388, %v5284, 0.0
          %v5351 = vadd.f32 %v5349, %v5350
          %v5352 = vsel %vm2388, %v5288, 0.0
          %v5353 = vadd.f32 %v5351, %v5352
          %v5354 = vsel %vm2388, %v5292, 0.0
          %v5355 = vadd.f32 %v5353, %v5354
          %v5356 = vsel %vm2388, %v5296, 0.0
          %v5357 = vadd.f32 %v5355, %v5356
          %v5358 = vsel %vm2388, %v5300, 0.0
          %v5359 = vadd.f32 %v5357, %v5358
          %v5360 = vsel %vm2388, %v5304, 0.0
          %v5361 = vadd.f32 %v5359, %v5360
          %v5362 = vsel %vm2388, %v5308, 0.0
          %v5363 = vadd.f32 %v5361, %v5362
          %v5364 = vsel %vm2388, %v5312, 0.0
          %v5365 = vadd.f32 %v5363, %v5364
          %v5366 = vsel %vm2388, %v5316, 0.0
          %v5367 = vadd.f32 %v5365, %v5366
          %v5368 = vsel %vm2388, %v5320, 0.0
          %v5369 = vadd.f32 %v5367, %v5368
          %v5370 = vsel %vm2388, %v5324, 0.0
          %v5371 = vadd.f32 %v5369, %v5370
          %5372 = vadd.xlane.f32.xlu0 %v5371
          %v5373 = vpop.xlane.xlu0 %5372
          %v5374 = vrot.slane %v5373, 4
          %v5375 = vadd.f32 %v5373, %v5374
          %v5376 = vrot.slane %v5375, 2
          %v5377 = vadd.f32 %v5375, %v5376
          %v5378 = vrot.slane %v5377, 1
          %v5379 = vadd.f32 %v5377, %v5378
          %s5380 = vtos %v5379
          %v5381 = vstv %s5380
          %v5382 = vrcp.pop %v5381
          %s5383 = vtos %v5382
          %s5384 = smul.f32 %s5124, %s5383
          %v5385 = vstv %s5380
          %v5386 = vrcp.pop %v5385
          %s5387 = vtos %v5386
          %s5388 = smul.f32 %s5252, %s5387
          %s5389 = sadd.f32 %s5384, %s5388
          %s5390 = smul.f32 %s5389, 0.05
          %s5391 = sadd.f32 %s4987, %s4989
          %s5392 = sadd.f32 %s5391, %s4996
          %s5393 = sadd.f32 %s5392, %s5390
          %s5394 = sadd.f32 %s5393, %s4991
          %s5395 = sadd.f32 %s5394, %s4992
          %s5396 = scalar_lea.smem [#allocation8], 0
          %5397 = sst [smem:[%s5396]] %s5395
          %s5398 = scalar_lea.smem [#allocation8], 1
          %5399 = sst [smem:[%s5398]] %s4987
          %s5400 = scalar_lea.smem [#allocation8], 2
          %5401 = sst [smem:[%s5400]] %s4989
          %s5402 = scalar_lea.smem [#allocation8], 3
          %5403 = sst [smem:[%s5402]] %s4991
          %s5404 = scalar_lea.smem [#allocation8], 4
          %5405 = sst [smem:[%s5404]] %s4992
          %s5406 = scalar_lea.smem [#allocation8], 5
          %5407 = sst [smem:[%s5406]] %s4996
          %s5408 = scalar_lea.smem [#allocation8], 6
          %5409 = sst [smem:[%s5408]] %s5390
          %s5410 = scalar_lea.smem [#allocation8], 7
          %5411 = sst [smem:[%s5410]] 0.0
        $region44: #{tpu_custom_call.1} parent=27 // pred_fallthru
          _
        // Predicated region
        $region45: #{tpu_custom_call.1} parent=27 // pred_check
          %p5412 = pneg %p78
        $region46: #{tpu_custom_call.1} parent=27 // pred_check_branch
          %5414 = sbr.rel (%p5412) target = $region48
        $region47: #{tpu_custom_call.1} parent=27 // pred_region
          %s5416 = ssub.s32 16, 16
          %5417 = vsyncadd [#allocation6], %s5416
          %5420 = dma.smem_to_hbm [#allocation8], 16, %s2, [#allocation6]
        $region48: #{tpu_custom_call.1} parent=27 // pred_fallthru
          _
        // Predicated region
        $region49: #{tpu_custom_call.1} parent=27 // pred_check
          %p5421 = pneg %p78
        $region50: #{tpu_custom_call.1} parent=27 // pred_check_branch
          %5423 = sbr.rel (%p5421) target = $region52
        $region51: #{tpu_custom_call.1} parent=27 // pred_region
          %5424 = dma.done [#allocation6], 16
        $region52: #{tpu_custom_call.1} parent=27 // pred_fallthru
          _
        %5425 = sfence
      $region28: #{tpu_custom_call.1} parent=5 // pred_fallthru
        _
      %p5426 = scmp.le.s32.totalorder 2, %s13
      // Predicated region
      $region53: #{tpu_custom_call.1} parent=5 // pred_check
        %p5427 = pneg %p5426
      $region54: #{tpu_custom_call.1} parent=5 // pred_check_branch
        %5429 = sbr.rel (%p5427) target = $region56
      $region55: #{tpu_custom_call.1} parent=5 // pred_region
        %s5430 = ssub.s32 %s13, 2
      $region56: #{tpu_custom_call.1} parent=5 // pred_fallthru
        _
    $region6: #{tpu_custom_call.1} parent=1 // loop_footer
      %s17 = sadd.s32 1, %s13
    $region7: #{tpu_custom_call.1} parent=1 // loop_footer_branch
      %12 = sbr.rel target = $region3
    $region8: #{tpu_custom_call.1} parent=1 // loop_exit
      _
    %5431 = vsyncpa [#allocation4], 1
    %s5432 = scalar_lea.sflag [#allocation4], 1
    %5433 = vsyncpa %s5432, 1
    %5434 = vsyncpa [#allocation5], 1
    %s5435 = scalar_lea.sflag [#allocation5], 1
    %5436 = vsyncpa %s5435, 1
    %5437 = vsyncpa [#allocation6], 1
    %s5438 = scalar_lea.sflag [#allocation6], 1
    %5439 = vsyncpa %s5438, 1

</llo_original>
